<compile_context>
chip_gen: v6e
topology: v6e:2x2x1
jax: 0.10.0
libtpu: 0.0.40
codegen_flags: <defaults>
</compile_context>

<pallas_src>
import math

import numpy as np
import jax
import jax.numpy as jnp
from jax.experimental import pallas as pl
from jax.experimental.pallas import tpu as pltpu

# Hyperparameters implied by the PyTorch module.
S_MAX = 10            # number of positional embeddings
D_IN = 20
D_MODEL = 32
N_HEAD = 4
HEAD_DIM = D_MODEL // N_HEAD
D_FF = 2048           # nn.TransformerEncoderLayer default dim_feedforward
D_OUT = 5
N_LAYERS = 2
LN_EPS = 1e-5


def _layer_norm(x, w, b):
    mu = jnp.mean(x, axis=-1, keepdims=True)
    var = jnp.mean((x - mu) ** 2, axis=-1, keepdims=True)
    return (x - mu) * jax.lax.rsqrt(var + LN_EPS) * w + b


# ----------------------------- fused Pallas kernel -----------------------------

def make_fused_kernel(seq, batch):
    """One encoder layer per grid step; tokens seq-major (row = s*batch + b)."""
    n_tok = seq * batch
    scale = 1.0 / math.sqrt(HEAD_DIM)

    def kernel(x_ref, pos_ref, mask_ref, emb_ref, fc_ref,
               wqkv_ref, wo_ref, w1_ref, w2_ref, b1_ref, sm_ref,
               o_ref, h_ref):
        l = pl.program_id(0)

        # ---- embedding + positional add (first grid step only) -------------
        @pl.when(l == 0)
        def _():
            ew = emb_ref[0:D_IN, :]                       # (20, 32)
            eb = emb_ref[D_IN:D_IN + 1, :]                # (1, 32)
            h0 = jnp.dot(x_ref[...], ew,
                         preferred_element_type=jnp.float32) + eb
            h_ref[...] = h0 + pos_ref[...]

        # ---- encoder layer `l` (this layer's weights are the current blocks)
        x = h_ref[...]                                    # (n_tok, 32) f32
        sm = sm_ref[...]                                  # (8, 96) packed smalls
        bqkv = sm[0:1, :]                                 # (1, 96)
        bo = sm[1:2, 0:D_MODEL]
        ln1w = sm[2:3, 0:D_MODEL]
        ln1b = sm[3:4, 0:D_MODEL]
        b2 = sm[4:5, 0:D_MODEL]
        ln2w = sm[5:6, 0:D_MODEL]
        ln2b = sm[6:7, 0:D_MODEL]

        qkv = jnp.dot(x, wqkv_ref[...],
                      preferred_element_type=jnp.float32) + bqkv   # (n_tok, 96)
        wo = wo_ref[...]                                  # (32, 32)
        mask = mask_ref[...]                              # (n_tok, n_tok) additive

        # Per-head attention; Wo folded per head (no lane-concat relayout).
        attn = jnp.zeros((n_tok, D_MODEL), jnp.float32) + bo
        for hh in range(N_HEAD):
            c = hh * HEAD_DIM
            qh = qkv[:, c:c + HEAD_DIM] * scale
            kh = qkv[:, D_MODEL + c:D_MODEL + c + HEAD_DIM]
            vh = qkv[:, 2 * D_MODEL + c:2 * D_MODEL + c + HEAD_DIM]
            s = jax.lax.dot_general(qh, kh, (((1,), (1,)), ((), ())),
                                    preferred_element_type=jnp.float32)
            s = s + mask                                   # cross-batch -> -1e30
            s = s - jnp.max(s, axis=-1, keepdims=True)
            p = jnp.exp(s)
            p = p / jnp.sum(p, axis=-1, keepdims=True)
            oh = jnp.dot(p, vh, preferred_element_type=jnp.float32)   # (n_tok, 8)
            attn = attn + jnp.dot(oh, wo[c:c + HEAD_DIM, :],
                                  preferred_element_type=jnp.float32)

        # add & norm 1
        y = _layer_norm(x + attn, ln1w, ln1b)

        # feed-forward (relu); bf16 operands, f32 accumulation & bias
        h1 = jnp.maximum(
            jnp.dot(y.astype(jnp.bfloat16), w1_ref[...],
                    preferred_element_type=jnp.float32) + b1_ref[...], 0.0)
        h2 = jnp.dot(h1.astype(jnp.bfloat16), w2_ref[...],
                     preferred_element_type=jnp.float32) + b2
        h_new = _layer_norm(y + h2, ln2w, ln2b)
        h_ref[...] = h_new

        # ---- classification head on seq position 0 (last grid step only) ---
        @pl.when(l == N_LAYERS - 1)
        def _():
            fcw = fc_ref[0:D_MODEL, :]                    # (32, 5)
            fcb = fc_ref[D_MODEL:D_MODEL + 1, :]          # (1, 5)
            o_ref[...] = jnp.dot(h_new[0:batch, :], fcw,
                                 preferred_element_type=jnp.float32) + fcb

    return kernel


# ----------------------------- wrapper -----------------------------

def positional_transformer_forward(x, kp):
    """x: (S, B, 20) float32, kp: prepared (packed / pre-transposed) params."""
    S, B, _ = x.shape
    n_tok = S * B
    x2 = x.reshape(n_tok, D_IN)                           # seq-major token rows

    # Positional rows expanded to token rows (tiny, fused into the jit).
    pos_tok = jnp.repeat(kp["pos"][:S], B, axis=0)        # (n_tok, 32)

    # Same-batch additive attention mask: compile-time constant (shapes only).
    idx = np.arange(n_tok)
    mask_np = np.where((idx[:, None] % B) == (idx[None, :] % B),
                       0.0, -1e30).astype(np.float32)
    mask = jnp.asarray(mask_np)

    inputs = (x2, pos_tok, mask, kp["emb"], kp["fc"],
              kp["wqkv"], kp["wo"], kp["w1"], kp["w2"], kp["b1"], kp["smalls"])

    grid_spec = pltpu.PrefetchScalarGridSpec(
        num_scalar_prefetch=0,
        grid=(N_LAYERS,),
        in_specs=[
            # constant across layers (fetched once, block index never changes)
            pl.BlockSpec((n_tok, D_IN), lambda l: (0, 0)),            # x2
            pl.BlockSpec((n_tok, D_MODEL), lambda l: (0, 0)),         # pos_tok
            pl.BlockSpec((n_tok, n_tok), lambda l: (0, 0)),           # mask
            pl.BlockSpec((D_IN + 1, D_MODEL), lambda l: (0, 0)),      # embed W|b
            pl.BlockSpec((D_MODEL + 1, D_OUT), lambda l: (0, 0)),     # fc W|b
            # per-layer weights (pipelined across the layer grid axis)
            pl.BlockSpec((None, D_MODEL, 3 * D_MODEL), lambda l: (l, 0, 0)),  # wqkv
            pl.BlockSpec((None, D_MODEL, D_MODEL), lambda l: (l, 0, 0)),      # wo
            pl.BlockSpec((None, D_MODEL, D_FF), lambda l: (l, 0, 0)),         # w1 bf16
            pl.BlockSpec((None, D_FF, D_MODEL), lambda l: (l, 0, 0)),         # w2 bf16
            pl.BlockSpec((None, 1, D_FF), lambda l: (l, 0, 0)),               # b1
            pl.BlockSpec((None, 8, 3 * D_MODEL), lambda l: (l, 0, 0)),        # smalls
        ],
        out_specs=pl.BlockSpec((B, D_OUT), lambda l: (0, 0)),
        scratch_shapes=[pltpu.VMEM((n_tok, D_MODEL), jnp.float32)],   # carried h
    )

    return pl.pallas_call(
        make_fused_kernel(S, B),
        out_shape=jax.ShapeDtypeStruct((B, D_OUT), jnp.float32),
        grid_spec=grid_spec,
        compiler_params=pltpu.CompilerParams(
            dimension_semantics=("arbitrary",)),
    )(*inputs)


# ----------------------------- params -----------------------------

def init_params(key):
    """Parameters in PyTorch (out_features, in_features) convention."""
    keys = iter(jax.random.split(key, 32))

    def w(shape, fan_in):
        return jax.random.normal(next(keys), shape, jnp.float32) / math.sqrt(fan_in)

    params = {
        "embed_w": w((D_MODEL, D_IN), D_IN),
        "embed_b": w((D_MODEL,), D_IN),
        "pos": jax.random.normal(next(keys), (S_MAX, 1, D_MODEL), jnp.float32),
        "fc_w": w((D_OUT, D_MODEL), D_MODEL),
        "fc_b": w((D_OUT,), D_MODEL),
        "layers": [],
    }
    for _ in range(N_LAYERS):
        params["layers"].append({
            "wqkv": w((3 * D_MODEL, D_MODEL), D_MODEL),
            "bqkv": w((3 * D_MODEL,), D_MODEL),
            "wo": w((D_MODEL, D_MODEL), D_MODEL),
            "bo": w((D_MODEL,), D_MODEL),
            "w1": w((D_FF, D_MODEL), D_MODEL),
            "b1": w((D_FF,), D_MODEL),
            "w2": w((D_MODEL, D_FF), D_FF),
            "b2": w((D_MODEL,), D_FF),
            "ln1w": jnp.ones((D_MODEL,), jnp.float32),
            "ln1b": jnp.zeros((D_MODEL,), jnp.float32),
            "ln2w": jnp.ones((D_MODEL,), jnp.float32),
            "ln2b": jnp.zeros((D_MODEL,), jnp.float32),
        })
    return params


def prepare_params(params):
    """One-time host-side prep: pre-transpose weights to (K, N), stack per-layer
    tensors on a leading layer axis, pack all tiny vectors into a few arrays,
    and store the two big FF weights in bfloat16."""
    L = params["layers"]

    def stack(f):
        return jnp.stack([f(lp) for lp in L])

    def pad_row(v):
        v = v.reshape(1, -1)
        return jnp.pad(v, ((0, 0), (0, 3 * D_MODEL - v.shape[1])))

    def smalls(lp):
        rows = [
            lp["bqkv"].reshape(1, 3 * D_MODEL),   # row 0: qkv bias (96)
            pad_row(lp["bo"]),                    # row 1: out-proj bias
            pad_row(lp["ln1w"]),                  # row 2
            pad_row(lp["ln1b"]),                  # row 3
            pad_row(lp["b2"]),                    # row 4: FF-2 bias
            pad_row(lp["ln2w"]),                  # row 5
            pad_row(lp["ln2b"]),                  # row 6
            jnp.zeros((1, 3 * D_MODEL), jnp.float32),  # row 7: padding
        ]
        return jnp.concatenate(rows, axis=0)      # (8, 96)

    emb = jnp.concatenate(
        [params["embed_w"].T, params["embed_b"].reshape(1, D_MODEL)], axis=0)  # (21, 32)
    fc = jnp.concatenate(
        [params["fc_w"].T, params["fc_b"].reshape(1, D_OUT)], axis=0)          # (33, 5)

    return {
        "emb": emb,
        "fc": fc,
        "pos": params["pos"][:, 0, :],                              # (10, 32)
        "wqkv": stack(lambda lp: lp["wqkv"].T),                     # (L, 32, 96) f32
        "wo": stack(lambda lp: lp["wo"].T),                         # (L, 32, 32) f32
        "w1": stack(lambda lp: lp["w1"].T).astype(jnp.bfloat16),    # (L, 32, 2048)
        "w2": stack(lambda lp: lp["w2"].T).astype(jnp.bfloat16),    # (L, 2048, 32)
        "b1": stack(lambda lp: lp["b1"].reshape(1, D_FF)),          # (L, 1, 2048) f32
        "smalls": stack(smalls),                                    # (L, 8, 96) f32
    }


# ----------------------------- pure-JAX reference -----------------------------

def reference_forward(x, params):
    """Pure-JAX (no Pallas) mirror of the PyTorch eval-mode forward."""
    S, B, _ = x.shape
    h = (jnp.einsum("sbi,oi->sbo", x, params["embed_w"])
         + params["embed_b"] + params["pos"][:S])
    for lp in params["layers"]:
        qkv = jnp.einsum("sbd,ed->sbe", h, lp["wqkv"]) + lp["bqkv"]
        q, k, v = (qkv[..., :D_MODEL], qkv[..., D_MODEL:2 * D_MODEL],
                   qkv[..., 2 * D_MODEL:])
        qh = q.reshape(S, B, N_HEAD, HEAD_DIM)
        kh = k.reshape(S, B, N_HEAD, HEAD_DIM)
        vh = v.reshape(S, B, N_HEAD, HEAD_DIM)
        scores = jnp.einsum("sbhd,tbhd->bhst", qh, kh) / math.sqrt(HEAD_DIM)
        p = jax.nn.softmax(scores, axis=-1)
        o = jnp.einsum("bhst,tbhd->sbhd", p, vh).reshape(S, B, D_MODEL)
        attn = jnp.einsum("sbd,ed->sbe", o, lp["wo"]) + lp["bo"]
        h = _layer_norm(h + attn, lp["ln1w"], lp["ln1b"])
        ff = jnp.maximum(jnp.einsum("sbd,fd->sbf", h, lp["w1"]) + lp["b1"], 0.0)
        ff = jnp.einsum("sbf,df->sbd", ff, lp["w2"]) + lp["b2"]
        h = _layer_norm(h + ff, lp["ln2w"], lp["ln2b"])
    return jnp.einsum("bd,od->bo", h[0], params["fc_w"]) + params["fc_b"]


if __name__ == "__main__":
    key = jax.random.PRNGKey(0)
    k_param, k_x = jax.random.split(key)
    params = init_params(k_param)
    kparams = prepare_params(params)          # one-time weight prep (host side)

    S, B = 8, 2                               # seq len (<= 10 pos rows), batch
    x = jax.random.normal(k_x, (S, B, D_IN), jnp.float32)

    fwd = jax.jit(positional_transformer_forward)
    out = jax.block_until_ready(fwd(x, kparams))

    with jax.default_matmul_precision("highest"):
        ref = reference_forward(x, params)

    assert out.shape == (B, D_OUT)
    # bf16 FF weights / operands (by design, per perf review) vs. an f32
    # reference -> tolerance covers bf16-level matmul error through 2 layers.
    err = float(jnp.max(jnp.abs(out - ref)))
    assert jnp.allclose(out, ref, atol=5e-2, rtol=5e-2), err
    print("KERNEL_OK")
</pallas_src>

<mosaic_0001>
module attributes {stable_mosaic.version = 11 : i64} {
  func.func @kernel(%arg0: i32, %arg1: memref<16x20xf32, #tpu.memory_space<vmem>>, %arg2: memref<16x32xf32, #tpu.memory_space<vmem>>, %arg3: memref<16x16xf32, #tpu.memory_space<vmem>>, %arg4: memref<21x32xf32, #tpu.memory_space<vmem>>, %arg5: memref<33x5xf32, #tpu.memory_space<vmem>>, %arg6: memref<1x32x96xf32, #tpu.memory_space<vmem>>, %arg7: memref<1x32x32xf32, #tpu.memory_space<vmem>>, %arg8: memref<1x32x2048xbf16, #tpu.memory_space<vmem>>, %arg9: memref<1x2048x32xbf16, #tpu.memory_space<vmem>>, %arg10: memref<1x1x2048xf32, #tpu.memory_space<vmem>>, %arg11: memref<1x8x96xf32, #tpu.memory_space<vmem>>, %arg12: memref<2x5xf32, #tpu.memory_space<vmem>>, %arg13: memref<16x32xf32, #tpu.memory_space<vmem>>) attributes {dimension_semantics = [#tpu.dimension_semantics<arbitrary>], iteration_bounds = array<i64: 2>, scalar_prefetch = 0 : i64, scratch_operands = 1 : i64, tpu.core_type = #tpu.core_type<tc>, window_params = [{pipeline_mode = #tpu.pipeline_mode<synchronous>, transform_indices = @transform_0, window_bounds = array<i64: 16, 20>}, {pipeline_mode = #tpu.pipeline_mode<synchronous>, transform_indices = @transform_1, window_bounds = array<i64: 16, 32>}, {pipeline_mode = #tpu.pipeline_mode<synchronous>, transform_indices = @transform_2, window_bounds = array<i64: 16, 16>}, {pipeline_mode = #tpu.pipeline_mode<synchronous>, transform_indices = @transform_3, window_bounds = array<i64: 21, 32>}, {pipeline_mode = #tpu.pipeline_mode<synchronous>, transform_indices = @transform_4, window_bounds = array<i64: 33, 5>}, {transform_indices = @transform_5, window_bounds = array<i64: 1, 32, 96>}, {transform_indices = @transform_6, window_bounds = array<i64: 1, 32, 32>}, {transform_indices = @transform_7, window_bounds = array<i64: 1, 32, 2048>}, {transform_indices = @transform_8, window_bounds = array<i64: 1, 2048, 32>}, {transform_indices = @transform_9, window_bounds = array<i64: 1, 1, 2048>}, {transform_indices = @transform_10, window_bounds = array<i64: 1, 8, 96>}, {pipeline_mode = #tpu.pipeline_mode<synchronous>, transform_indices = @transform_11, window_bounds = array<i64: 2, 5>}]} {
    %c0_i32 = arith.constant 0 : i32
    %0 = arith.cmpi eq, %arg0, %c0_i32 : i32
    %1 = arith.extui %0 : i1 to i32
    %c0_i32_0 = arith.constant 0 : i32
    %2 = arith.cmpi ne, %1, %c0_i32_0 : i32
    scf.if %2 {
      %c0_63 = arith.constant 0 : index
      %c0_64 = arith.constant 0 : index
      %170 = vector.load %arg4[%c0_63, %c0_64] : memref<21x32xf32, #tpu.memory_space<vmem>>, vector<20x32xf32>
      %c20 = arith.constant 20 : index
      %c0_65 = arith.constant 0 : index
      %171 = vector.load %arg4[%c20, %c0_65] : memref<21x32xf32, #tpu.memory_space<vmem>>, vector<1x32xf32>
      %c0_66 = arith.constant 0 : index
      %c0_67 = arith.constant 0 : index
      %172 = vector.load %arg1[%c0_66, %c0_67] : memref<16x20xf32, #tpu.memory_space<vmem>>, vector<16x20xf32>
      %cst_68 = arith.constant dense<0.000000e+00> : vector<16x32xf32>
      %173 = tpu.matmul %172, %170, %cst_68 {dimension_numbers = #tpu.dot_dimension_numbers<[1], [0], [0], [1], [0, 0, 1, 1], [], []>} : vector<16x20xf32>, vector<20x32xf32>, vector<16x32xf32> -> vector<16x32xf32>
      %174 = vector.broadcast %171 : vector<1x32xf32> to vector<16x32xf32>
      %175 = arith.addf %173, %174 : vector<16x32xf32>
      %c0_69 = arith.constant 0 : index
      %c0_70 = arith.constant 0 : index
      %176 = vector.load %arg2[%c0_69, %c0_70] : memref<16x32xf32, #tpu.memory_space<vmem>>, vector<16x32xf32>
      %177 = arith.addf %175, %176 : vector<16x32xf32>
      %c0_71 = arith.constant 0 : index
      %c0_72 = arith.constant 0 : index
      %178 = vector.load %arg13[%c0_71, %c0_72] : memref<16x32xf32, #tpu.memory_space<vmem>>, vector<16x32xf32>
      tpu.vector_store %arg13[%c0_71, %c0_72], %177 {strides = array<i32>} : memref<16x32xf32, #tpu.memory_space<vmem>>, vector<16x32xf32>,
    } else {
    }
    %c0 = arith.constant 0 : index
    %c0_1 = arith.constant 0 : index
    %3 = vector.load %arg13[%c0, %c0_1] : memref<16x32xf32, #tpu.memory_space<vmem>>, vector<16x32xf32>
    %c0_2 = arith.constant 0 : index
    %c0_3 = arith.constant 0 : index
    %c0_4 = arith.constant 0 : index
    %4 = vector.load %arg11[%c0_2, %c0_3, %c0_4] : memref<1x8x96xf32, #tpu.memory_space<vmem>>, vector<1x8x96xf32>
    %5 = vector.shape_cast %4 : vector<1x8x96xf32> to vector<8x96xf32>
    %6 = vector.extract_strided_slice %5 {offsets = [0, 0], sizes = [1, 96], strides = [1, 1]} : vector<8x96xf32> to vector<1x96xf32>
    %7 = vector.extract_strided_slice %5 {offsets = [1, 0], sizes = [1, 32], strides = [1, 1]} : vector<8x96xf32> to vector<1x32xf32>
    %8 = vector.extract_strided_slice %5 {offsets = [2, 0], sizes = [1, 32], strides = [1, 1]} : vector<8x96xf32> to vector<1x32xf32>
    %9 = vector.extract_strided_slice %5 {offsets = [3, 0], sizes = [1, 32], strides = [1, 1]} : vector<8x96xf32> to vector<1x32xf32>
    %10 = vector.extract_strided_slice %5 {offsets = [4, 0], sizes = [1, 32], strides = [1, 1]} : vector<8x96xf32> to vector<1x32xf32>
    %11 = vector.extract_strided_slice %5 {offsets = [5, 0], sizes = [1, 32], strides = [1, 1]} : vector<8x96xf32> to vector<1x32xf32>
    %12 = vector.extract_strided_slice %5 {offsets = [6, 0], sizes = [1, 32], strides = [1, 1]} : vector<8x96xf32> to vector<1x32xf32>
    %c0_5 = arith.constant 0 : index
    %c0_6 = arith.constant 0 : index
    %c0_7 = arith.constant 0 : index
    %13 = vector.load %arg6[%c0_5, %c0_6, %c0_7] : memref<1x32x96xf32, #tpu.memory_space<vmem>>, vector<1x32x96xf32>
    %14 = vector.shape_cast %13 : vector<1x32x96xf32> to vector<32x96xf32>
    %cst = arith.constant dense<0.000000e+00> : vector<16x96xf32>
    %15 = tpu.matmul %3, %14, %cst {dimension_numbers = #tpu.dot_dimension_numbers<[1], [0], [0], [1], [0, 0, 1, 1], [], []>} : vector<16x32xf32>, vector<32x96xf32>, vector<16x96xf32> -> vector<16x96xf32>
    %16 = vector.broadcast %6 : vector<1x96xf32> to vector<16x96xf32>
    %17 = arith.addf %15, %16 : vector<16x96xf32>
    %c0_8 = arith.constant 0 : index
    %c0_9 = arith.constant 0 : index
    %c0_10 = arith.constant 0 : index
    %18 = vector.load %arg7[%c0_8, %c0_9, %c0_10] : memref<1x32x32xf32, #tpu.memory_space<vmem>>, vector<1x32x32xf32>
    %19 = vector.shape_cast %18 : vector<1x32x32xf32> to vector<32x32xf32>
    %c0_11 = arith.constant 0 : index
    %c0_12 = arith.constant 0 : index
    %20 = vector.load %arg3[%c0_11, %c0_12] : memref<16x16xf32, #tpu.memory_space<vmem>>, vector<16x16xf32>
    %cst_13 = arith.constant 0.000000e+00 : f32
    %21 = vector.broadcast %cst_13 : f32 to vector<16x32xf32>
    %22 = vector.broadcast %7 : vector<1x32xf32> to vector<16x32xf32>
    %23 = arith.addf %21, %22 : vector<16x32xf32>
    %24 = vector.extract_strided_slice %17 {offsets = [0, 0], sizes = [16, 8], strides = [1, 1]} : vector<16x96xf32> to vector<16x8xf32>
    %cst_14 = arith.constant 0.353553385 : f32
    %25 = vector.broadcast %cst_14 : f32 to vector<16x8xf32>
    %26 = arith.mulf %24, %25 : vector<16x8xf32>
    %27 = vector.extract_strided_slice %17 {offsets = [0, 32], sizes = [16, 8], strides = [1, 1]} : vector<16x96xf32> to vector<16x8xf32>
    %28 = vector.extract_strided_slice %17 {offsets = [0, 64], sizes = [16, 8], strides = [1, 1]} : vector<16x96xf32> to vector<16x8xf32>
    %cst_15 = arith.constant dense<0.000000e+00> : vector<16x16xf32>
    %29 = tpu.matmul %26, %27, %cst_15 {dimension_numbers = #tpu.dot_dimension_numbers<[1], [1], [0], [0], [0, 0, 1, 0], [], []>} : vector<16x8xf32>, vector<16x8xf32>, vector<16x16xf32> -> vector<16x16xf32>
    %30 = arith.addf %29, %20 : vector<16x16xf32>
    %cst_16 = arith.constant dense<0xFF800000> : vector<16xf32>
    %31 = vector.multi_reduction <maximumf>, %30, %cst_16 [1] : vector<16x16xf32> to vector<16xf32>
    %32 = vector.shape_cast %31 : vector<16xf32> to vector<16x1xf32>
    %33 = vector.broadcast %32 : vector<16x1xf32> to vector<16x16xf32>
    %34 = arith.subf %30, %33 : vector<16x16xf32>
    %35 = math.exp %34 : vector<16x16xf32>
    %cst_17 = arith.constant dense<0.000000e+00> : vector<16xf32>
    %36 = vector.multi_reduction <add>, %35, %cst_17 [1] : vector<16x16xf32> to vector<16xf32>
    %37 = vector.shape_cast %36 : vector<16xf32> to vector<16x1xf32>
    %38 = vector.broadcast %37 : vector<16x1xf32> to vector<16x16xf32>
    %39 = arith.divf %35, %38 : vector<16x16xf32>
    %cst_18 = arith.constant dense<0.000000e+00> : vector<16x8xf32>
    %40 = tpu.matmul %39, %28, %cst_18 {dimension_numbers = #tpu.dot_dimension_numbers<[1], [0], [0], [1], [0, 0, 1, 1], [], []>} : vector<16x16xf32>, vector<16x8xf32>, vector<16x8xf32> -> vector<16x8xf32>
    %41 = vector.extract_strided_slice %19 {offsets = [0, 0], sizes = [8, 32], strides = [1, 1]} : vector<32x32xf32> to vector<8x32xf32>
    %cst_19 = arith.constant dense<0.000000e+00> : vector<16x32xf32>
    %42 = tpu.matmul %40, %41, %cst_19 {dimension_numbers = #tpu.dot_dimension_numbers<[1], [0], [0], [1], [0, 0, 1, 1], [], []>} : vector<16x8xf32>, vector<8x32xf32>, vector<16x32xf32> -> vector<16x32xf32>
    %43 = arith.addf %23, %42 : vector<16x32xf32>
    %44 = vector.extract_strided_slice %17 {offsets = [0, 8], sizes = [16, 8], strides = [1, 1]} : vector<16x96xf32> to vector<16x8xf32>
    %cst_20 = arith.constant 0.353553385 : f32
    %45 = vector.broadcast %cst_20 : f32 to vector<16x8xf32>
    %46 = arith.mulf %44, %45 : vector<16x8xf32>
    %47 = vector.extract_strided_slice %17 {offsets = [0, 40], sizes = [16, 8], strides = [1, 1]} : vector<16x96xf32> to vector<16x8xf32>
    %48 = vector.extract_strided_slice %17 {offsets = [0, 72], sizes = [16, 8], strides = [1, 1]} : vector<16x96xf32> to vector<16x8xf32>
    %cst_21 = arith.constant dense<0.000000e+00> : vector<16x16xf32>
    %49 = tpu.matmul %46, %47, %cst_21 {dimension_numbers = #tpu.dot_dimension_numbers<[1], [1], [0], [0], [0, 0, 1, 0], [], []>} : vector<16x8xf32>, vector<16x8xf32>, vector<16x16xf32> -> vector<16x16xf32>
    %50 = arith.addf %49, %20 : vector<16x16xf32>
    %cst_22 = arith.constant dense<0xFF800000> : vector<16xf32>
    %51 = vector.multi_reduction <maximumf>, %50, %cst_22 [1] : vector<16x16xf32> to vector<16xf32>
    %52 = vector.shape_cast %51 : vector<16xf32> to vector<16x1xf32>
    %53 = vector.broadcast %52 : vector<16x1xf32> to vector<16x16xf32>
    %54 = arith.subf %50, %53 : vector<16x16xf32>
    %55 = math.exp %54 : vector<16x16xf32>
    %cst_23 = arith.constant dense<0.000000e+00> : vector<16xf32>
    %56 = vector.multi_reduction <add>, %55, %cst_23 [1] : vector<16x16xf32> to vector<16xf32>
    %57 = vector.shape_cast %56 : vector<16xf32> to vector<16x1xf32>
    %58 = vector.broadcast %57 : vector<16x1xf32> to vector<16x16xf32>
    %59 = arith.divf %55, %58 : vector<16x16xf32>
    %cst_24 = arith.constant dense<0.000000e+00> : vector<16x8xf32>
    %60 = tpu.matmul %59, %48, %cst_24 {dimension_numbers = #tpu.dot_dimension_numbers<[1], [0], [0], [1], [0, 0, 1, 1], [], []>} : vector<16x16xf32>, vector<16x8xf32>, vector<16x8xf32> -> vector<16x8xf32>
    %61 = vector.extract_strided_slice %19 {offsets = [8, 0], sizes = [8, 32], strides = [1, 1]} : vector<32x32xf32> to vector<8x32xf32>
    %cst_25 = arith.constant dense<0.000000e+00> : vector<16x32xf32>
    %62 = tpu.matmul %60, %61, %cst_25 {dimension_numbers = #tpu.dot_dimension_numbers<[1], [0], [0], [1], [0, 0, 1, 1], [], []>} : vector<16x8xf32>, vector<8x32xf32>, vector<16x32xf32> -> vector<16x32xf32>
    %63 = arith.addf %43, %62 : vector<16x32xf32>
    %64 = vector.extract_strided_slice %17 {offsets = [0, 16], sizes = [16, 8], strides = [1, 1]} : vector<16x96xf32> to vector<16x8xf32>
    %cst_26 = arith.constant 0.353553385 : f32
    %65 = vector.broadcast %cst_26 : f32 to vector<16x8xf32>
    %66 = arith.mulf %64, %65 : vector<16x8xf32>
    %67 = vector.extract_strided_slice %17 {offsets = [0, 48], sizes = [16, 8], strides = [1, 1]} : vector<16x96xf32> to vector<16x8xf32>
    %68 = vector.extract_strided_slice %17 {offsets = [0, 80], sizes = [16, 8], strides = [1, 1]} : vector<16x96xf32> to vector<16x8xf32>
    %cst_27 = arith.constant dense<0.000000e+00> : vector<16x16xf32>
    %69 = tpu.matmul %66, %67, %cst_27 {dimension_numbers = #tpu.dot_dimension_numbers<[1], [1], [0], [0], [0, 0, 1, 0], [], []>} : vector<16x8xf32>, vector<16x8xf32>, vector<16x16xf32> -> vector<16x16xf32>
    %70 = arith.addf %69, %20 : vector<16x16xf32>
    %cst_28 = arith.constant dense<0xFF800000> : vector<16xf32>
    %71 = vector.multi_reduction <maximumf>, %70, %cst_28 [1] : vector<16x16xf32> to vector<16xf32>
    %72 = vector.shape_cast %71 : vector<16xf32> to vector<16x1xf32>
    %73 = vector.broadcast %72 : vector<16x1xf32> to vector<16x16xf32>
    %74 = arith.subf %70, %73 : vector<16x16xf32>
    %75 = math.exp %74 : vector<16x16xf32>
    %cst_29 = arith.constant dense<0.000000e+00> : vector<16xf32>
    %76 = vector.multi_reduction <add>, %75, %cst_29 [1] : vector<16x16xf32> to vector<16xf32>
    %77 = vector.shape_cast %76 : vector<16xf32> to vector<16x1xf32>
    %78 = vector.broadcast %77 : vector<16x1xf32> to vector<16x16xf32>
    %79 = arith.divf %75, %78 : vector<16x16xf32>
    %cst_30 = arith.constant dense<0.000000e+00> : vector<16x8xf32>
    %80 = tpu.matmul %79, %68, %cst_30 {dimension_numbers = #tpu.dot_dimension_numbers<[1], [0], [0], [1], [0, 0, 1, 1], [], []>} : vector<16x16xf32>, vector<16x8xf32>, vector<16x8xf32> -> vector<16x8xf32>
    %81 = vector.extract_strided_slice %19 {offsets = [16, 0], sizes = [8, 32], strides = [1, 1]} : vector<32x32xf32> to vector<8x32xf32>
    %cst_31 = arith.constant dense<0.000000e+00> : vector<16x32xf32>
    %82 = tpu.matmul %80, %81, %cst_31 {dimension_numbers = #tpu.dot_dimension_numbers<[1], [0], [0], [1], [0, 0, 1, 1], [], []>} : vector<16x8xf32>, vector<8x32xf32>, vector<16x32xf32> -> vector<16x32xf32>
    %83 = arith.addf %63, %82 : vector<16x32xf32>
    %84 = vector.extract_strided_slice %17 {offsets = [0, 24], sizes = [16, 8], strides = [1, 1]} : vector<16x96xf32> to vector<16x8xf32>
    %cst_32 = arith.constant 0.353553385 : f32
    %85 = vector.broadcast %cst_32 : f32 to vector<16x8xf32>
    %86 = arith.mulf %84, %85 : vector<16x8xf32>
    %87 = vector.extract_strided_slice %17 {offsets = [0, 56], sizes = [16, 8], strides = [1, 1]} : vector<16x96xf32> to vector<16x8xf32>
    %88 = vector.extract_strided_slice %17 {offsets = [0, 88], sizes = [16, 8], strides = [1, 1]} : vector<16x96xf32> to vector<16x8xf32>
    %cst_33 = arith.constant dense<0.000000e+00> : vector<16x16xf32>
    %89 = tpu.matmul %86, %87, %cst_33 {dimension_numbers = #tpu.dot_dimension_numbers<[1], [1], [0], [0], [0, 0, 1, 0], [], []>} : vector<16x8xf32>, vector<16x8xf32>, vector<16x16xf32> -> vector<16x16xf32>
    %90 = arith.addf %89, %20 : vector<16x16xf32>
    %cst_34 = arith.constant dense<0xFF800000> : vector<16xf32>
    %91 = vector.multi_reduction <maximumf>, %90, %cst_34 [1] : vector<16x16xf32> to vector<16xf32>
    %92 = vector.shape_cast %91 : vector<16xf32> to vector<16x1xf32>
    %93 = vector.broadcast %92 : vector<16x1xf32> to vector<16x16xf32>
    %94 = arith.subf %90, %93 : vector<16x16xf32>
    %95 = math.exp %94 : vector<16x16xf32>
    %cst_35 = arith.constant dense<0.000000e+00> : vector<16xf32>
    %96 = vector.multi_reduction <add>, %95, %cst_35 [1] : vector<16x16xf32> to vector<16xf32>
    %97 = vector.shape_cast %96 : vector<16xf32> to vector<16x1xf32>
    %98 = vector.broadcast %97 : vector<16x1xf32> to vector<16x16xf32>
    %99 = arith.divf %95, %98 : vector<16x16xf32>
    %cst_36 = arith.constant dense<0.000000e+00> : vector<16x8xf32>
    %100 = tpu.matmul %99, %88, %cst_36 {dimension_numbers = #tpu.dot_dimension_numbers<[1], [0], [0], [1], [0, 0, 1, 1], [], []>} : vector<16x16xf32>, vector<16x8xf32>, vector<16x8xf32> -> vector<16x8xf32>
    %101 = vector.extract_strided_slice %19 {offsets = [24, 0], sizes = [8, 32], strides = [1, 1]} : vector<32x32xf32> to vector<8x32xf32>
    %cst_37 = arith.constant dense<0.000000e+00> : vector<16x32xf32>
    %102 = tpu.matmul %100, %101, %cst_37 {dimension_numbers = #tpu.dot_dimension_numbers<[1], [0], [0], [1], [0, 0, 1, 1], [], []>} : vector<16x8xf32>, vector<8x32xf32>, vector<16x32xf32> -> vector<16x32xf32>
    %103 = arith.addf %83, %102 : vector<16x32xf32>
    %104 = arith.addf %3, %103 : vector<16x32xf32>
    %cst_38 = arith.constant dense<0.000000e+00> : vector<16xf32>
    %105 = vector.multi_reduction <add>, %104, %cst_38 [1] : vector<16x32xf32> to vector<16xf32>
    %106 = vector.shape_cast %105 : vector<16xf32> to vector<16x1xf32>
    %cst_39 = arith.constant 3.200000e+01 : f32
    %107 = vector.broadcast %cst_39 : f32 to vector<16x1xf32>
    %108 = arith.divf %106, %107 : vector<16x1xf32>
    %109 = vector.broadcast %108 : vector<16x1xf32> to vector<16x32xf32>
    %110 = arith.subf %104, %109 : vector<16x32xf32>
    %111 = arith.mulf %110, %110 : vector<16x32xf32>
    %cst_40 = arith.constant dense<0.000000e+00> : vector<16xf32>
    %112 = vector.multi_reduction <add>, %111, %cst_40 [1] : vector<16x32xf32> to vector<16xf32>
    %113 = vector.shape_cast %112 : vector<16xf32> to vector<16x1xf32>
    %cst_41 = arith.constant 3.200000e+01 : f32
    %114 = vector.broadcast %cst_41 : f32 to vector<16x1xf32>
    %115 = arith.divf %113, %114 : vector<16x1xf32>
    %116 = vector.broadcast %108 : vector<16x1xf32> to vector<16x32xf32>
    %117 = arith.subf %104, %116 : vector<16x32xf32>
    %cst_42 = arith.constant 9.99999974E-6 : f32
    %118 = vector.broadcast %cst_42 : f32 to vector<16x1xf32>
    %119 = arith.addf %115, %118 : vector<16x1xf32>
    %120 = math.rsqrt %119 : vector<16x1xf32>
    %121 = vector.broadcast %120 : vector<16x1xf32> to vector<16x32xf32>
    %122 = arith.mulf %117, %121 : vector<16x32xf32>
    %123 = vector.broadcast %8 : vector<1x32xf32> to vector<16x32xf32>
    %124 = arith.mulf %122, %123 : vector<16x32xf32>
    %125 = vector.broadcast %9 : vector<1x32xf32> to vector<16x32xf32>
    %126 = arith.addf %124, %125 : vector<16x32xf32>
    %127 = arith.truncf %126 : vector<16x32xf32> to vector<16x32xbf16>
    %c0_43 = arith.constant 0 : index
    %c0_44 = arith.constant 0 : index
    %c0_45 = arith.constant 0 : index
    %128 = vector.load %arg8[%c0_43, %c0_44, %c0_45] : memref<1x32x2048xbf16, #tpu.memory_space<vmem>>, vector<1x32x2048xbf16>
    %129 = vector.shape_cast %128 : vector<1x32x2048xbf16> to vector<32x2048xbf16>
    %cst_46 = arith.constant dense<0.000000e+00> : vector<16x2048xf32>
    %130 = tpu.matmul %127, %129, %cst_46 {dimension_numbers = #tpu.dot_dimension_numbers<[1], [0], [0], [1], [0, 0, 1, 1], [], []>} : vector<16x32xbf16>, vector<32x2048xbf16>, vector<16x2048xf32> -> vector<16x2048xf32>
    %c0_47 = arith.constant 0 : index
    %c0_48 = arith.constant 0 : index
    %c0_49 = arith.constant 0 : index
    %131 = vector.load %arg10[%c0_47, %c0_48, %c0_49] : memref<1x1x2048xf32, #tpu.memory_space<vmem>>, vector<1x1x2048xf32>
    %132 = vector.shape_cast %131 : vector<1x1x2048xf32> to vector<1x2048xf32>
    %133 = vector.broadcast %132 : vector<1x2048xf32> to vector<16x2048xf32>
    %134 = arith.addf %130, %133 : vector<16x2048xf32>
    %cst_50 = arith.constant 0.000000e+00 : f32
    %135 = vector.broadcast %cst_50 : f32 to vector<16x2048xf32>
    %136 = arith.maximumf %134, %135 : vector<16x2048xf32>
    %137 = arith.truncf %136 : vector<16x2048xf32> to vector<16x2048xbf16>
    %c0_51 = arith.constant 0 : index
    %c0_52 = arith.constant 0 : index
    %c0_53 = arith.constant 0 : index
    %138 = vector.load %arg9[%c0_51, %c0_52, %c0_53] : memref<1x2048x32xbf16, #tpu.memory_space<vmem>>, vector<1x2048x32xbf16>
    %139 = vector.shape_cast %138 : vector<1x2048x32xbf16> to vector<2048x32xbf16>
    %cst_54 = arith.constant dense<0.000000e+00> : vector<16x32xf32>
    %140 = tpu.matmul %137, %139, %cst_54 {dimension_numbers = #tpu.dot_dimension_numbers<[1], [0], [0], [1], [0, 0, 1, 1], [], []>} : vector<16x2048xbf16>, vector<2048x32xbf16>, vector<16x32xf32> -> vector<16x32xf32>
    %141 = vector.broadcast %10 : vector<1x32xf32> to vector<16x32xf32>
    %142 = arith.addf %140, %141 : vector<16x32xf32>
    %143 = arith.addf %126, %142 : vector<16x32xf32>
    %cst_55 = arith.constant dense<0.000000e+00> : vector<16xf32>
    %144 = vector.multi_reduction <add>, %143, %cst_55 [1] : vector<16x32xf32> to vector<16xf32>
    %145 = vector.shape_cast %144 : vector<16xf32> to vector<16x1xf32>
    %cst_56 = arith.constant 3.200000e+01 : f32
    %146 = vector.broadcast %cst_56 : f32 to vector<16x1xf32>
    %147 = arith.divf %145, %146 : vector<16x1xf32>
    %148 = vector.broadcast %147 : vector<16x1xf32> to vector<16x32xf32>
    %149 = arith.subf %143, %148 : vector<16x32xf32>
    %150 = arith.mulf %149, %149 : vector<16x32xf32>
    %cst_57 = arith.constant dense<0.000000e+00> : vector<16xf32>
    %151 = vector.multi_reduction <add>, %150, %cst_57 [1] : vector<16x32xf32> to vector<16xf32>
    %152 = vector.shape_cast %151 : vector<16xf32> to vector<16x1xf32>
    %cst_58 = arith.constant 3.200000e+01 : f32
    %153 = vector.broadcast %cst_58 : f32 to vector<16x1xf32>
    %154 = arith.divf %152, %153 : vector<16x1xf32>
    %155 = vector.broadcast %147 : vector<16x1xf32> to vector<16x32xf32>
    %156 = arith.subf %143, %155 : vector<16x32xf32>
    %cst_59 = arith.constant 9.99999974E-6 : f32
    %157 = vector.broadcast %cst_59 : f32 to vector<16x1xf32>
    %158 = arith.addf %154, %157 : vector<16x1xf32>
    %159 = math.rsqrt %158 : vector<16x1xf32>
    %160 = vector.broadcast %159 : vector<16x1xf32> to vector<16x32xf32>
    %161 = arith.mulf %156, %160 : vector<16x32xf32>
    %162 = vector.broadcast %11 : vector<1x32xf32> to vector<16x32xf32>
    %163 = arith.mulf %161, %162 : vector<16x32xf32>
    %164 = vector.broadcast %12 : vector<1x32xf32> to vector<16x32xf32>
    %165 = arith.addf %163, %164 : vector<16x32xf32>
    %c0_60 = arith.constant 0 : index
    %c0_61 = arith.constant 0 : index
    %166 = vector.load %arg13[%c0_60, %c0_61] : memref<16x32xf32, #tpu.memory_space<vmem>>, vector<16x32xf32>
    tpu.vector_store %arg13[%c0_60, %c0_61], %165 {strides = array<i32>} : memref<16x32xf32, #tpu.memory_space<vmem>>, vector<16x32xf32>,
    %c1_i32 = arith.constant 1 : i32
    %167 = arith.cmpi eq, %arg0, %c1_i32 : i32
    %168 = arith.extui %167 : i1 to i32
    %c0_i32_62 = arith.constant 0 : i32
    %169 = arith.cmpi ne, %168, %c0_i32_62 : i32
    scf.if %169 {
      %c0_63 = arith.constant 0 : index
      %c0_64 = arith.constant 0 : index
      %170 = vector.load %arg5[%c0_63, %c0_64] : memref<33x5xf32, #tpu.memory_space<vmem>>, vector<32x5xf32>
      %c32 = arith.constant 32 : index
      %c0_65 = arith.constant 0 : index
      %171 = vector.load %arg5[%c32, %c0_65] : memref<33x5xf32, #tpu.memory_space<vmem>>, vector<1x5xf32>
      %172 = vector.extract_strided_slice %165 {offsets = [0, 0], sizes = [2, 32], strides = [1, 1]} : vector<16x32xf32> to vector<2x32xf32>
      %cst_66 = arith.constant dense<0.000000e+00> : vector<2x5xf32>
      %173 = tpu.matmul %172, %170, %cst_66 {dimension_numbers = #tpu.dot_dimension_numbers<[1], [0], [0], [1], [0, 0, 1, 1], [], []>} : vector<2x32xf32>, vector<32x5xf32>, vector<2x5xf32> -> vector<2x5xf32>
      %174 = vector.broadcast %171 : vector<1x5xf32> to vector<2x5xf32>
      %175 = arith.addf %173, %174 : vector<2x5xf32>
      %c0_67 = arith.constant 0 : index
      %c0_68 = arith.constant 0 : index
      %176 = vector.load %arg12[%c0_67, %c0_68] : memref<2x5xf32, #tpu.memory_space<vmem>>, vector<2x5xf32>
      tpu.vector_store %arg12[%c0_67, %c0_68], %175 {strides = array<i32>} : memref<2x5xf32, #tpu.memory_space<vmem>>, vector<2x5xf32>,
    } else {
    }
    return
  }
  func.func @transform_0(%arg0: i32) -> (i32, i32) {
    %c0_i32 = arith.constant 0 : i32
    %c0_i32_0 = arith.constant 0 : i32
    %c0_i32_1 = arith.constant 0 : i32
    return %c0_i32, %c0_i32_0 : i32, i32
  }
  func.func @transform_1(%arg0: i32) -> (i32, i32) {
    %c0_i32 = arith.constant 0 : i32
    %c0_i32_0 = arith.constant 0 : i32
    %c0_i32_1 = arith.constant 0 : i32
    return %c0_i32, %c0_i32_0 : i32, i32
  }
  func.func @transform_2(%arg0: i32) -> (i32, i32) {
    %c0_i32 = arith.constant 0 : i32
    %c0_i32_0 = arith.constant 0 : i32
    %c0_i32_1 = arith.constant 0 : i32
    return %c0_i32, %c0_i32_0 : i32, i32
  }
  func.func @transform_3(%arg0: i32) -> (i32, i32) {
    %c0_i32 = arith.constant 0 : i32
    %c0_i32_0 = arith.constant 0 : i32
    %c0_i32_1 = arith.constant 0 : i32
    return %c0_i32, %c0_i32_0 : i32, i32
  }
  func.func @transform_4(%arg0: i32) -> (i32, i32) {
    %c0_i32 = arith.constant 0 : i32
    %c0_i32_0 = arith.constant 0 : i32
    %c0_i32_1 = arith.constant 0 : i32
    return %c0_i32, %c0_i32_0 : i32, i32
  }
  func.func @transform_5(%arg0: i32) -> (i32, i32, i32) {
    %c0_i32 = arith.constant 0 : i32
    %c0_i32_0 = arith.constant 0 : i32
    %c0_i32_1 = arith.constant 0 : i32
    return %arg0, %c0_i32, %c0_i32_0 : i32, i32, i32
  }
  func.func @transform_6(%arg0: i32) -> (i32, i32, i32) {
    %c0_i32 = arith.constant 0 : i32
    %c0_i32_0 = arith.constant 0 : i32
    %c0_i32_1 = arith.constant 0 : i32
    return %arg0, %c0_i32, %c0_i32_0 : i32, i32, i32
  }
  func.func @transform_7(%arg0: i32) -> (i32, i32, i32) {
    %c0_i32 = arith.constant 0 : i32
    %c0_i32_0 = arith.constant 0 : i32
    %c0_i32_1 = arith.constant 0 : i32
    return %arg0, %c0_i32, %c0_i32_0 : i32, i32, i32
  }
  func.func @transform_8(%arg0: i32) -> (i32, i32, i32) {
    %c0_i32 = arith.constant 0 : i32
    %c0_i32_0 = arith.constant 0 : i32
    %c0_i32_1 = arith.constant 0 : i32
    return %arg0, %c0_i32, %c0_i32_0 : i32, i32, i32
  }
  func.func @transform_9(%arg0: i32) -> (i32, i32, i32) {
    %c0_i32 = arith.constant 0 : i32
    %c0_i32_0 = arith.constant 0 : i32
    %c0_i32_1 = arith.constant 0 : i32
    return %arg0, %c0_i32, %c0_i32_0 : i32, i32, i32
  }
  func.func @transform_10(%arg0: i32) -> (i32, i32, i32) {
    %c0_i32 = arith.constant 0 : i32
    %c0_i32_0 = arith.constant 0 : i32
    %c0_i32_1 = arith.constant 0 : i32
    return %arg0, %c0_i32, %c0_i32_0 : i32, i32, i32
  }
  func.func @transform_11(%arg0: i32) -> (i32, i32) {
    %c0_i32 = arith.constant 0 : i32
    %c0_i32_0 = arith.constant 0 : i32
    %c0_i32_1 = arith.constant 0 : i32
    return %c0_i32, %c0_i32_0 : i32, i32
  }
}

</mosaic_0001>

<llo_original>
// kernel: positional_transformer_forward.1
$region0: #{positional_transformer_forward.1}
  #allocation0 [shape = 'u32[]', space=smem, size = 0x4, offset = 0x4, fixed_abs, tag = 'smem constant byte address 0x4 - core index']
  #allocation1 [shape = 'u32[144,128]{1,0:T(1,128)}', space=vmem, size = 0x12000, scoped, tag = 'internal scratch']
  #allocation2 [shape = 'f32[16,32]{1,0:T(8,128)}', space=vmem, size = 0x2000, scoped, tag = 'scratch operand']
  %s0 = inlined_call_operand.vmem [shape: f32[16,20], index: 0, kind: input, shape index: {}]
  %s1 = inlined_call_operand.vmem [shape: f32[16,32], index: 1, kind: input, shape index: {}]
  %s2 = inlined_call_operand.vmem [shape: f32[16,16], index: 2, kind: input, shape index: {}]
  %s3 = inlined_call_operand.vmem [shape: f32[21,32], index: 3, kind: input, shape index: {}]
  %s4 = inlined_call_operand.vmem [shape: f32[33,5], index: 4, kind: input, shape index: {}]
  %s5 = inlined_call_operand.vmem [shape: f32[2,32,96], index: 5, kind: input, shape index: {}]
  %s6 = inlined_call_operand.vmem [shape: f32[2,32,32], index: 6, kind: input, shape index: {}]
  %s7 = inlined_call_operand.vmem [shape: bf16[2,32,2048], index: 7, kind: input, shape index: {}]
  %s8 = inlined_call_operand.vmem [shape: bf16[2,2048,32], index: 8, kind: input, shape index: {}]
  %s9 = inlined_call_operand.vmem [shape: f32[2,1,2048], index: 9, kind: input, shape index: {}]
  %s10 = inlined_call_operand.vmem [shape: f32[2,8,96], index: 10, kind: input, shape index: {}]
  %s11 = inlined_call_operand.hbm [shape: f32[2,5], index: 11, kind: output, shape index: {}]
  %s12 = sld [smem:[#allocation0]]
  $region85: #{positional_transformer_forward.1} parent=0
    _
  %s14 = ssub.s32 1, %s12
  %s15 = scalar_select 0, %s14, %s12
  $region1: #{positional_transformer_forward.1} parent=0
    #allocation3 [shape = 'u8[1024]{0}', space=vmem, size = 0x400, scoped, tag = 'output window, operand 0, single buffered']
    #allocation4 [shape = 's32[2]{0}', space=sflag, size = 0x8, scoped, tag = 'scoped memory for positional_transformer_forward.1']
    %16 = vsyncpa [#allocation4], 0
    loop: start=0, step=1, limit=4
    $region2: #{positional_transformer_forward.1} parent=1 // loop_pre_header
      _
    $region3: #{positional_transformer_forward.1} parent=1 // loop_header
      %s18 = sphi 0, %s22
      %p19 = scmp.ge.s32.totalorder %s18, 4
      %s26 = sphi 0, %s26
      %s28 = sphi 0, %s26
      %s29 = sphi 0, %s28
      %s43 = sphi 0, %s29
      %s47 = sphi 0, %s47
      %s49 = sphi 0, %s47
      %s50 = sphi 0, %s49
      %s64 = sphi 0, %s50
      %s68 = sphi 0, %s68
      %s70 = sphi 0, %s68
      %s71 = sphi 0, %s70
      %s85 = sphi 0, %s71
      %s89 = sphi 0, %s89
      %s91 = sphi 0, %s89
      %s92 = sphi 0, %s91
      %s106 = sphi 0, %s92
      %s110 = sphi 0, %s110
      %s112 = sphi 0, %s110
      %s113 = sphi 0, %s112
      %s127 = sphi 0, %s113
      %s133 = sphi 0, %s135
      %s136 = sphi 0, %s133
      %s137 = sphi 0, %s136
      %s153 = sphi 0, %s137
      %s159 = sphi 0, %s161
      %s162 = sphi 0, %s159
      %s163 = sphi 0, %s162
      %s179 = sphi 0, %s163
      %s185 = sphi 0, %s187
      %s188 = sphi 0, %s185
      %s189 = sphi 0, %s188
      %s205 = sphi 0, %s189
      %s211 = sphi 0, %s213
      %s214 = sphi 0, %s211
      %s215 = sphi 0, %s214
      %s231 = sphi 0, %s215
      %s237 = sphi 0, %s239
      %s240 = sphi 0, %s237
      %s241 = sphi 0, %s240
      %s257 = sphi 0, %s241
      %s263 = sphi 0, %s265
      %s266 = sphi 0, %s263
      %s267 = sphi 0, %s266
      %s283 = sphi 0, %s267
      %s287 = sphi 0, %s287
      %s289 = sphi 0, %s287
      %s290 = sphi 0, %s289
      %s304 = sphi 0, %s290
    $region4: #{positional_transformer_forward.1} parent=1 // loop_header_branch
      %21 = sbr.rel (%p19) target = $region8
    $region5: #{positional_transformer_forward.1} parent=1 // loop_body
      %s23 = ssub.s32 %s18, 1
      %s24 = ssub.s32 %s18, 2
      %s25 = sadd.s32 %s18, 1
      %s27 = sadd.s32 %s26, 1
      %p30 = scmp.eq.s32.totalorder %s18, 1
      %p31 = scmp.ne.s32.totalorder %s26, %s28
      %p32 = scmp.eq.s32.totalorder %s18, 0
      %p33 = por %p31, %p32
      %p34 = scmp.ne.s32.totalorder %s26, %s28
      %p35 = scmp.eq.s32.totalorder %s23, 1
      %p36 = por %p34, %p35
      %p37 = scmp.ne.s32.totalorder %s28, %s29
      %p38 = scmp.eq.s32.totalorder %s23, 0
      %p39 = por %p37, %p38
      %p40 = scmp.ne.s32.totalorder %s28, %s29
      %p41 = scmp.eq.s32.totalorder %s24, 1
      %p42 = por %p40, %p41
      %p44 = scmp.ne.s32.totalorder %s29, %s43
      %p45 = scmp.eq.s32.totalorder %s24, 0
      %p46 = por %p44, %p45
      %s48 = sadd.s32 %s47, 1
      %p51 = scmp.eq.s32.totalorder %s18, 1
      %p52 = scmp.ne.s32.totalorder %s47, %s49
      %p53 = scmp.eq.s32.totalorder %s18, 0
      %p54 = por %p52, %p53
      %p55 = scmp.ne.s32.totalorder %s47, %s49
      %p56 = scmp.eq.s32.totalorder %s23, 1
      %p57 = por %p55, %p56
      %p58 = scmp.ne.s32.totalorder %s49, %s50
      %p59 = scmp.eq.s32.totalorder %s23, 0
      %p60 = por %p58, %p59
      %p61 = scmp.ne.s32.totalorder %s49, %s50
      %p62 = scmp.eq.s32.totalorder %s24, 1
      %p63 = por %p61, %p62
      %p65 = scmp.ne.s32.totalorder %s50, %s64
      %p66 = scmp.eq.s32.totalorder %s24, 0
      %p67 = por %p65, %p66
      %s69 = sadd.s32 %s68, 1
      %p72 = scmp.eq.s32.totalorder %s18, 1
      %p73 = scmp.ne.s32.totalorder %s68, %s70
      %p74 = scmp.eq.s32.totalorder %s18, 0
      %p75 = por %p73, %p74
      %p76 = scmp.ne.s32.totalorder %s68, %s70
      %p77 = scmp.eq.s32.totalorder %s23, 1
      %p78 = por %p76, %p77
      %p79 = scmp.ne.s32.totalorder %s70, %s71
      %p80 = scmp.eq.s32.totalorder %s23, 0
      %p81 = por %p79, %p80
      %p82 = scmp.ne.s32.totalorder %s70, %s71
      %p83 = scmp.eq.s32.totalorder %s24, 1
      %p84 = por %p82, %p83
      %p86 = scmp.ne.s32.totalorder %s71, %s85
      %p87 = scmp.eq.s32.totalorder %s24, 0
      %p88 = por %p86, %p87
      %s90 = sadd.s32 %s89, 1
      %p93 = scmp.eq.s32.totalorder %s18, 1
      %p94 = scmp.ne.s32.totalorder %s89, %s91
      %p95 = scmp.eq.s32.totalorder %s18, 0
      %p96 = por %p94, %p95
      %p97 = scmp.ne.s32.totalorder %s89, %s91
      %p98 = scmp.eq.s32.totalorder %s23, 1
      %p99 = por %p97, %p98
      %p100 = scmp.ne.s32.totalorder %s91, %s92
      %p101 = scmp.eq.s32.totalorder %s23, 0
      %p102 = por %p100, %p101
      %p103 = scmp.ne.s32.totalorder %s91, %s92
      %p104 = scmp.eq.s32.totalorder %s24, 1
      %p105 = por %p103, %p104
      %p107 = scmp.ne.s32.totalorder %s92, %s106
      %p108 = scmp.eq.s32.totalorder %s24, 0
      %p109 = por %p107, %p108
      %s111 = sadd.s32 %s110, 1
      %p114 = scmp.eq.s32.totalorder %s18, 1
      %p115 = scmp.ne.s32.totalorder %s110, %s112
      %p116 = scmp.eq.s32.totalorder %s18, 0
      %p117 = por %p115, %p116
      %p118 = scmp.ne.s32.totalorder %s110, %s112
      %p119 = scmp.eq.s32.totalorder %s23, 1
      %p120 = por %p118, %p119
      %p121 = scmp.ne.s32.totalorder %s112, %s113
      %p122 = scmp.eq.s32.totalorder %s23, 0
      %p123 = por %p121, %p122
      %p124 = scmp.ne.s32.totalorder %s112, %s113
      %p125 = scmp.eq.s32.totalorder %s24, 1
      %p126 = por %p124, %p125
      %p128 = scmp.ne.s32.totalorder %s113, %s127
      %p129 = scmp.eq.s32.totalorder %s24, 0
      %p130 = por %p128, %p129
      %s131 = ssub.s32 %s18, %s25
      %p132 = scmp.eq.s32.totalorder %s131, 0
      %s134 = sadd.s32 %s133, 1
      %s135 = scalar_select %p132, %s133, %s134
      %p138 = pneg %p132
      %p139 = scmp.eq.s32.totalorder %s18, 1
      %p140 = por %p138, %p139
      %p141 = scmp.ne.s32.totalorder %s133, %s136
      %p142 = scmp.eq.s32.totalorder %s18, 0
      %p143 = por %p141, %p142
      %p144 = scmp.ne.s32.totalorder %s133, %s136
      %p145 = scmp.eq.s32.totalorder %s23, 1
      %p146 = por %p144, %p145
      %p147 = scmp.ne.s32.totalorder %s136, %s137
      %p148 = scmp.eq.s32.totalorder %s23, 0
      %p149 = por %p147, %p148
      %p150 = scmp.ne.s32.totalorder %s136, %s137
      %p151 = scmp.eq.s32.totalorder %s24, 1
      %p152 = por %p150, %p151
      %p154 = scmp.ne.s32.totalorder %s137, %s153
      %p155 = scmp.eq.s32.totalorder %s24, 0
      %p156 = por %p154, %p155
      %s157 = ssub.s32 %s18, %s25
      %p158 = scmp.eq.s32.totalorder %s157, 0
      %s160 = sadd.s32 %s159, 1
      %s161 = scalar_select %p158, %s159, %s160
      %p164 = pneg %p158
      %p165 = scmp.eq.s32.totalorder %s18, 1
      %p166 = por %p164, %p165
      %p167 = scmp.ne.s32.totalorder %s159, %s162
      %p168 = scmp.eq.s32.totalorder %s18, 0
      %p169 = por %p167, %p168
      %p170 = scmp.ne.s32.totalorder %s159, %s162
      %p171 = scmp.eq.s32.totalorder %s23, 1
      %p172 = por %p170, %p171
      %p173 = scmp.ne.s32.totalorder %s162, %s163
      %p174 = scmp.eq.s32.totalorder %s23, 0
      %p175 = por %p173, %p174
      %p176 = scmp.ne.s32.totalorder %s162, %s163
      %p177 = scmp.eq.s32.totalorder %s24, 1
      %p178 = por %p176, %p177
      %p180 = scmp.ne.s32.totalorder %s163, %s179
      %p181 = scmp.eq.s32.totalorder %s24, 0
      %p182 = por %p180, %p181
      %s183 = ssub.s32 %s18, %s25
      %p184 = scmp.eq.s32.totalorder %s183, 0
      %s186 = sadd.s32 %s185, 1
      %s187 = scalar_select %p184, %s185, %s186
      %p190 = pneg %p184
      %p191 = scmp.eq.s32.totalorder %s18, 1
      %p192 = por %p190, %p191
      %p193 = scmp.ne.s32.totalorder %s185, %s188
      %p194 = scmp.eq.s32.totalorder %s18, 0
      %p195 = por %p193, %p194
      %p196 = scmp.ne.s32.totalorder %s185, %s188
      %p197 = scmp.eq.s32.totalorder %s23, 1
      %p198 = por %p196, %p197
      %p199 = scmp.ne.s32.totalorder %s188, %s189
      %p200 = scmp.eq.s32.totalorder %s23, 0
      %p201 = por %p199, %p200
      %p202 = scmp.ne.s32.totalorder %s188, %s189
      %p203 = scmp.eq.s32.totalorder %s24, 1
      %p204 = por %p202, %p203
      %p206 = scmp.ne.s32.totalorder %s189, %s205
      %p207 = scmp.eq.s32.totalorder %s24, 0
      %p208 = por %p206, %p207
      %s209 = ssub.s32 %s18, %s25
      %p210 = scmp.eq.s32.totalorder %s209, 0
      %s212 = sadd.s32 %s211, 1
      %s213 = scalar_select %p210, %s211, %s212
      %p216 = pneg %p210
      %p217 = scmp.eq.s32.totalorder %s18, 1
      %p218 = por %p216, %p217
      %p219 = scmp.ne.s32.totalorder %s211, %s214
      %p220 = scmp.eq.s32.totalorder %s18, 0
      %p221 = por %p219, %p220
      %p222 = scmp.ne.s32.totalorder %s211, %s214
      %p223 = scmp.eq.s32.totalorder %s23, 1
      %p224 = por %p222, %p223
      %p225 = scmp.ne.s32.totalorder %s214, %s215
      %p226 = scmp.eq.s32.totalorder %s23, 0
      %p227 = por %p225, %p226
      %p228 = scmp.ne.s32.totalorder %s214, %s215
      %p229 = scmp.eq.s32.totalorder %s24, 1
      %p230 = por %p228, %p229
      %p232 = scmp.ne.s32.totalorder %s215, %s231
      %p233 = scmp.eq.s32.totalorder %s24, 0
      %p234 = por %p232, %p233
      %s235 = ssub.s32 %s18, %s25
      %p236 = scmp.eq.s32.totalorder %s235, 0
      %s238 = sadd.s32 %s237, 1
      %s239 = scalar_select %p236, %s237, %s238
      %p242 = pneg %p236
      %p243 = scmp.eq.s32.totalorder %s18, 1
      %p244 = por %p242, %p243
      %p245 = scmp.ne.s32.totalorder %s237, %s240
      %p246 = scmp.eq.s32.totalorder %s18, 0
      %p247 = por %p245, %p246
      %p248 = scmp.ne.s32.totalorder %s237, %s240
      %p249 = scmp.eq.s32.totalorder %s23, 1
      %p250 = por %p248, %p249
      %p251 = scmp.ne.s32.totalorder %s240, %s241
      %p252 = scmp.eq.s32.totalorder %s23, 0
      %p253 = por %p251, %p252
      %p254 = scmp.ne.s32.totalorder %s240, %s241
      %p255 = scmp.eq.s32.totalorder %s24, 1
      %p256 = por %p254, %p255
      %p258 = scmp.ne.s32.totalorder %s241, %s257
      %p259 = scmp.eq.s32.totalorder %s24, 0
      %p260 = por %p258, %p259
      %s261 = ssub.s32 %s18, %s25
      %p262 = scmp.eq.s32.totalorder %s261, 0
      %s264 = sadd.s32 %s263, 1
      %s265 = scalar_select %p262, %s263, %s264
      %p268 = pneg %p262
      %p269 = scmp.eq.s32.totalorder %s18, 1
      %p270 = por %p268, %p269
      %p271 = scmp.ne.s32.totalorder %s263, %s266
      %p272 = scmp.eq.s32.totalorder %s18, 0
      %p273 = por %p271, %p272
      %p274 = scmp.ne.s32.totalorder %s263, %s266
      %p275 = scmp.eq.s32.totalorder %s23, 1
      %p276 = por %p274, %p275
      %p277 = scmp.ne.s32.totalorder %s266, %s267
      %p278 = scmp.eq.s32.totalorder %s23, 0
      %p279 = por %p277, %p278
      %p280 = scmp.ne.s32.totalorder %s266, %s267
      %p281 = scmp.eq.s32.totalorder %s24, 1
      %p282 = por %p280, %p281
      %p284 = scmp.ne.s32.totalorder %s267, %s283
      %p285 = scmp.eq.s32.totalorder %s24, 0
      %p286 = por %p284, %p285
      %s288 = sadd.s32 %s287, 1
      %p291 = scmp.eq.s32.totalorder %s18, 1
      %p292 = scmp.ne.s32.totalorder %s287, %s289
      %p293 = scmp.eq.s32.totalorder %s18, 0
      %p294 = por %p292, %p293
      %p295 = scmp.ne.s32.totalorder %s287, %s289
      %p296 = scmp.eq.s32.totalorder %s23, 1
      %p297 = por %p295, %p296
      %p298 = scmp.ne.s32.totalorder %s289, %s290
      %p299 = scmp.eq.s32.totalorder %s23, 0
      %p300 = por %p298, %p299
      %p301 = scmp.ne.s32.totalorder %s289, %s290
      %p302 = scmp.eq.s32.totalorder %s24, 1
      %p303 = por %p301, %p302
      %p305 = scmp.ne.s32.totalorder %s290, %s304
      %p306 = scmp.eq.s32.totalorder %s24, 0
      %p307 = por %p305, %p306
      %p308 = scmp.le.s32.totalorder 1, %s18
      %p309 = scmp.lt.s32.totalorder %s18, 3
      %p310 = pnand %p308, %p309
      %p311 = pneg %p310
      // Predicated region
      $region9: #{positional_transformer_forward.1} parent=5 // pred_check
        _
      $region10: #{positional_transformer_forward.1} parent=5 // pred_check_branch
        %313 = sbr.rel (%p310) target = $region12
      $region11: #{positional_transformer_forward.1} parent=5 // pred_region
        %s314 = ssub.s32 %s18, 1
        // Predicated region
        $region13: #{positional_transformer_forward.1} parent=11 // pred_check
          %p315 = pneg %p39
        $region14: #{positional_transformer_forward.1} parent=11 // pred_check_branch
          %317 = sbr.rel (%p315) target = $region16
        $region15: #{positional_transformer_forward.1} parent=11 // pred_region
          _
        $region16: #{positional_transformer_forward.1} parent=11 // pred_fallthru
          _
        // Predicated region
        $region17: #{positional_transformer_forward.1} parent=11 // pred_check
          %p318 = pneg %p60
        $region18: #{positional_transformer_forward.1} parent=11 // pred_check_branch
          %320 = sbr.rel (%p318) target = $region20
        $region19: #{positional_transformer_forward.1} parent=11 // pred_region
          _
        $region20: #{positional_transformer_forward.1} parent=11 // pred_fallthru
          _
        // Predicated region
        $region21: #{positional_transformer_forward.1} parent=11 // pred_check
          %p321 = pneg %p81
        $region22: #{positional_transformer_forward.1} parent=11 // pred_check_branch
          %323 = sbr.rel (%p321) target = $region24
        $region23: #{positional_transformer_forward.1} parent=11 // pred_region
          _
        $region24: #{positional_transformer_forward.1} parent=11 // pred_fallthru
          _
        // Predicated region
        $region25: #{positional_transformer_forward.1} parent=11 // pred_check
          %p324 = pneg %p102
        $region26: #{positional_transformer_forward.1} parent=11 // pred_check_branch
          %326 = sbr.rel (%p324) target = $region28
        $region27: #{positional_transformer_forward.1} parent=11 // pred_region
          _
        $region28: #{positional_transformer_forward.1} parent=11 // pred_fallthru
          _
        // Predicated region
        $region29: #{positional_transformer_forward.1} parent=11 // pred_check
          %p327 = pneg %p123
        $region30: #{positional_transformer_forward.1} parent=11 // pred_check_branch
          %329 = sbr.rel (%p327) target = $region32
        $region31: #{positional_transformer_forward.1} parent=11 // pred_region
          _
        $region32: #{positional_transformer_forward.1} parent=11 // pred_fallthru
          _
      $region12: #{positional_transformer_forward.1} parent=5 // pred_fallthru
        _
      %p330 = scmp.lt.s32.totalorder %s18, 2
      // Predicated region
      $region33: #{positional_transformer_forward.1} parent=5 // pred_check
        %p331 = pneg %p330
      $region34: #{positional_transformer_forward.1} parent=5 // pred_check_branch
        %333 = sbr.rel (%p331) target = $region36
      $region35: #{positional_transformer_forward.1} parent=5 // pred_region
        // Predicated region
        $region37: #{positional_transformer_forward.1} parent=35 // pred_check
          %p334 = pneg %p143
        $region38: #{positional_transformer_forward.1} parent=35 // pred_check_branch
          %336 = sbr.rel (%p334) target = $region40
        $region39: #{positional_transformer_forward.1} parent=35 // pred_region
          %p337 = scmp.lt.s32.totalorder %s18, 1
          %s338 = scalar_select %p337, %s18, 1
          %s339 = smul.addr %s338, 4
          %s340 = smul.addr %s339, 8
          %s341 = scalar_lea.vmem %s5, %s340
        $region40: #{positional_transformer_forward.1} parent=35 // pred_fallthru
          _
        // Predicated region
        $region41: #{positional_transformer_forward.1} parent=35 // pred_check
          %p342 = pneg %p169
        $region42: #{positional_transformer_forward.1} parent=35 // pred_check_branch
          %344 = sbr.rel (%p342) target = $region44
        $region43: #{positional_transformer_forward.1} parent=35 // pred_region
          %p345 = scmp.lt.s32.totalorder %s18, 1
          %s346 = scalar_select %p345, %s18, 1
          %s347 = smul.addr %s346, 4
          %s348 = smul.addr %s347, 8
          %s349 = scalar_lea.vmem %s6, %s348
        $region44: #{positional_transformer_forward.1} parent=35 // pred_fallthru
          _
        // Predicated region
        $region45: #{positional_transformer_forward.1} parent=35 // pred_check
          %p350 = pneg %p195
        $region46: #{positional_transformer_forward.1} parent=35 // pred_check_branch
          %352 = sbr.rel (%p350) target = $region48
        $region47: #{positional_transformer_forward.1} parent=35 // pred_region
          %p353 = scmp.lt.s32.totalorder %s18, 1
          %s354 = scalar_select %p353, %s18, 1
          %s355 = smul.addr %s354, 64
          %s356 = smul.addr %s355, 4
          %s357 = scalar_lea.vmem %s7, %s356
        $region48: #{positional_transformer_forward.1} parent=35 // pred_fallthru
          _
        // Predicated region
        $region49: #{positional_transformer_forward.1} parent=35 // pred_check
          %p358 = pneg %p221
        $region50: #{positional_transformer_forward.1} parent=35 // pred_check_branch
          %360 = sbr.rel (%p358) target = $region52
        $region51: #{positional_transformer_forward.1} parent=35 // pred_region
          %p361 = scmp.lt.s32.totalorder %s18, 1
          %s362 = scalar_select %p361, %s18, 1
          %s363 = smul.addr %s362, 256
          %s364 = smul.addr %s363, 4
          %s365 = scalar_lea.vmem %s8, %s364
        $region52: #{positional_transformer_forward.1} parent=35 // pred_fallthru
          _
        // Predicated region
        $region53: #{positional_transformer_forward.1} parent=35 // pred_check
          %p366 = pneg %p247
        $region54: #{positional_transformer_forward.1} parent=35 // pred_check_branch
          %368 = sbr.rel (%p366) target = $region56
        $region55: #{positional_transformer_forward.1} parent=35 // pred_region
          %p369 = scmp.lt.s32.totalorder %s18, 1
          %s370 = scalar_select %p369, %s18, 1
          %s371 = smul.addr %s370, 16
          %s372 = scalar_lea.vmem %s9, %s371
        $region56: #{positional_transformer_forward.1} parent=35 // pred_fallthru
          _
        // Predicated region
        $region57: #{positional_transformer_forward.1} parent=35 // pred_check
          %p373 = pneg %p273
        $region58: #{positional_transformer_forward.1} parent=35 // pred_check_branch
          %375 = sbr.rel (%p373) target = $region60
        $region59: #{positional_transformer_forward.1} parent=35 // pred_region
          %p376 = scmp.lt.s32.totalorder %s18, 1
          %s377 = scalar_select %p376, %s18, 1
          %s378 = smul.addr %s377, 8
          %s379 = scalar_lea.vmem %s10, %s378
        $region60: #{positional_transformer_forward.1} parent=35 // pred_fallthru
          _
      $region36: #{positional_transformer_forward.1} parent=5 // pred_fallthru
        _
      %p380 = scmp.le.s32.totalorder 1, %s18
      %p381 = scmp.lt.s32.totalorder %s18, 3
      %p382 = pnand %p380, %p381
      %p383 = pneg %p382
      // Predicated region
      $region61: #{positional_transformer_forward.1} parent=5 // pred_check
        _
      $region62: #{positional_transformer_forward.1} parent=5 // pred_check_branch
        %385 = sbr.rel (%p382) target = $region64
      $region63: #{positional_transformer_forward.1} parent=5 // pred_region
        %s386 = ssub.s32 %s18, 1
        %p387 = pneg %p39
        %p388 = pneg %p36
        %p389 = pneg %p60
        %p390 = pneg %p57
        %p391 = pneg %p81
        %p392 = pneg %p78
        %p393 = pneg %p102
        %p394 = pneg %p99
        %p395 = pneg %p123
        %p396 = pneg %p120
        %p397 = scmp.lt.s32.totalorder %s23, 1
        %s398 = scalar_select %p397, %s23, 1
        %s399 = smul.addr %s398, 4
        %s400 = smul.addr %s399, 8
        %s401 = scalar_lea.vmem %s5, %s400
        %p402 = pneg %p149
        %p403 = pneg %p146
        %p404 = scmp.lt.s32.totalorder %s23, 1
        %s405 = scalar_select %p404, %s23, 1
        %s406 = smul.addr %s405, 4
        %s407 = smul.addr %s406, 8
        %s408 = scalar_lea.vmem %s6, %s407
        %p409 = pneg %p175
        %p410 = pneg %p172
        %p411 = scmp.lt.s32.totalorder %s23, 1
        %s412 = scalar_select %p411, %s23, 1
        %s413 = smul.addr %s412, 64
        %s414 = smul.addr %s413, 4
        %s415 = scalar_lea.vmem %s7, %s414
        %p416 = pneg %p201
        %p417 = pneg %p198
        %p418 = scmp.lt.s32.totalorder %s23, 1
        %s419 = scalar_select %p418, %s23, 1
        %s420 = smul.addr %s419, 256
        %s421 = smul.addr %s420, 4
        %s422 = scalar_lea.vmem %s8, %s421
        %p423 = pneg %p227
        %p424 = pneg %p224
        %p425 = scmp.lt.s32.totalorder %s23, 1
        %s426 = scalar_select %p425, %s23, 1
        %s427 = smul.addr %s426, 16
        %s428 = scalar_lea.vmem %s9, %s427
        %p429 = pneg %p253
        %p430 = pneg %p250
        %p431 = scmp.lt.s32.totalorder %s23, 1
        %s432 = scalar_select %p431, %s23, 1
        %s433 = smul.addr %s432, 8
        %s434 = scalar_lea.vmem %s10, %s433
        %p435 = pneg %p279
        %p436 = pneg %p276
        %p437 = pneg %p300
        %p438 = pneg %p297
        %p439 = scmp.lt.s32.totalorder %s23, 1
        %s440 = scalar_select %p439, %s23, 1
        %s441 = smul.addr %s440, 4
        %s442 = smul.addr %s441, 8
        %s443 = scalar_lea.vmem %s5, %s442
        %p444 = scmp.lt.s32.totalorder %s23, 1
        %s445 = scalar_select %p444, %s23, 1
        %s446 = smul.addr %s445, 4
        %s447 = smul.addr %s446, 8
        %s448 = scalar_lea.vmem %s6, %s447
        %p449 = scmp.lt.s32.totalorder %s23, 1
        %s450 = scalar_select %p449, %s23, 1
        %s451 = smul.addr %s450, 64
        %s452 = smul.addr %s451, 4
        %s453 = scalar_lea.vmem %s7, %s452
        %p454 = scmp.lt.s32.totalorder %s23, 1
        %s455 = scalar_select %p454, %s23, 1
        %s456 = smul.addr %s455, 256
        %s457 = smul.addr %s456, 4
        %s458 = scalar_lea.vmem %s8, %s457
        %p459 = scmp.lt.s32.totalorder %s23, 1
        %s460 = scalar_select %p459, %s23, 1
        %s461 = smul.addr %s460, 16
        %s462 = scalar_lea.vmem %s9, %s461
        %p463 = scmp.lt.s32.totalorder %s23, 1
        %s464 = scalar_select %p463, %s23, 1
        %s465 = smul.addr %s464, 8
        %s466 = scalar_lea.vmem %s10, %s465
        %p468 = scmp.eq.s32.totalorder %s23, 0
        // Predicated region
        $region65: #{positional_transformer_forward.1} parent=63 // pred_check
          %p469 = pneg %p468
        $region66: #{positional_transformer_forward.1} parent=63 // pred_check_branch
          %471 = sbr.rel (%p469) target = $region68
        $region67: #{positional_transformer_forward.1} parent=63 // pred_region
          %v472 = vld [vmem:[%s3] sm:$0xff]
          %v473 = vld [vmem:[%s3 + $0x8] sm:$0xff]
          %v474 = vld [vmem:[%s3 + $0x10] sm:$0xf]
          %v475 = vld [vmem:[%s3 + $0x14] sm:$0x1]
          %v476 = vld [vmem:[%s0] sm:$0xff]
          %v477 = vld [vmem:[%s0 + $0x8] sm:$0xff]
          %v478 = vlaneseq
          %v479 = vshrl.u32 %v478, 7
          %v480 = vsub.s32 0, %v479
          %v481 = vrot.slane %v475, %v480
          %vm482 = vcmask 162816
          %v484 = vsel %vm482, %v476, 0
          %v487 = vsel %vm482, %v477, 0
          %vm489 = vcmask 1043456
          %v491 = vsel %vm489, %v474, 0
          %493 = vmatprep.subr.mxu0 0.0
          %494 = vmatpush1.msra.mxu0 0.0
          %495 = vmatprep.subr.mxu0 0.0
          %496 = vmatpush1.msra.mxu0 0.0
          %497 = vmatprep.subr.mxu0 0.0
          %498 = vmatpush1.msra.mxu0 0.0
          %499 = vmatprep.subr.mxu0 0.0
          %500 = vmatpush1.msra.mxu0 0.0
          %501 = vmatprep.subr.mxu0 0.0
          %502 = vmatpush1.msra.mxu0 0.0
          %503 = vmatprep.subr.mxu0 0.0
          %504 = vmatpush1.msra.mxu0 0.0
          %505 = vmatprep.subr.mxu0 0.0
          %506 = vmatpush1.msra.mxu0 0.0
          %507 = vmatprep.subr.mxu0 0.0
          %508 = vmatpush1.msra.mxu0 0.0
          %509 = vmatprep.subr.mxu0 0.0
          %510 = vmatpush1.msra.mxu0 0.0
          %511 = vmatprep.subr.mxu0 0.0
          %512 = vmatpush1.msra.mxu0 0.0
          %513 = vmatprep.subr.mxu0 0.0
          %514 = vmatpush1.msra.mxu0 0.0
          %515 = vmatprep.subr.mxu0 0.0
          %516 = vmatpush1.msra.mxu0 0.0
          %517 = vmatprep.subr.mxu0 0.0
          %518 = vmatpush1.msra.mxu0 0.0
          %519 = vmatprep.subr.mxu0 0.0
          %520 = vmatpush1.msra.mxu0 %v491
          %521 = vmatprep.subr.mxu0 0.0
          %522 = vmatpush1.msra.mxu0 %v473
          %523 = vmatprep.subr.mxu0 0.0
          %524 = vmatpush1.msra.mxu0 %v472
          %525 = vmatprep.subr.mxu0 0.0
          %526 = vmatpush2.msra.mxu0 0.0
          %527 = vmatprep.subr.mxu0 0.0
          %528 = vmatpush2.msra.mxu0 0.0
          %529 = vmatprep.subr.mxu0 0.0
          %530 = vmatpush2.msra.mxu0 0.0
          %531 = vmatprep.subr.mxu0 0.0
          %532 = vmatpush2.msra.mxu0 0.0
          %533 = vmatprep.subr.mxu0 0.0
          %534 = vmatpush2.msra.mxu0 0.0
          %535 = vmatprep.subr.mxu0 0.0
          %536 = vmatpush2.msra.mxu0 0.0
          %537 = vmatprep.subr.mxu0 0.0
          %538 = vmatpush2.msra.mxu0 0.0
          %539 = vmatprep.subr.mxu0 0.0
          %540 = vmatpush2.msra.mxu0 0.0
          %541 = vmatprep.subr.mxu0 0.0
          %542 = vmatpush2.msra.mxu0 0.0
          %543 = vmatprep.subr.mxu0 0.0
          %544 = vmatpush2.msra.mxu0 0.0
          %545 = vmatprep.subr.mxu0 0.0
          %546 = vmatpush2.msra.mxu0 0.0
          %547 = vmatprep.subr.mxu0 0.0
          %548 = vmatpush2.msra.mxu0 0.0
          %549 = vmatprep.subr.mxu0 0.0
          %550 = vmatpush2.msra.mxu0 0.0
          %551 = vmatprep.subr.mxu0 0.0
          %552 = vmatpush2.msra.mxu0 0.0
          %553 = vmatprep.subr.mxu0 0.0
          %554 = vmatpush2.msra.mxu0 0.0
          %555 = vmatprep.subr.mxu0 0.0
          %556 = vmatpush2.msra.mxu0 0.0
          %557 = vmatprep.mubr.f32.mxu0 0.0
          %558 = vmatmul.mubr.f32.gmra.mxu0 %v484
          %v559 = vpop.f32.mrf.mxu0
          %v560 = vadd.f32 %v481, %v559
          %v561 = vpop.f32.mrf.mxu0
          %562 = vmatprep.mubr.f32.mxu0 0.0
          %563 = vmatmul.mubr.f32.gmra.mxu0 %v487
          %v564 = vpop.f32.mrf.mxu0
          %v565 = vadd.f32 %v481, %v564
          %v566 = vpop.f32.mrf.mxu0
          %567 = vdwg.mxu0
          %v568 = vld [vmem:[%s1] sm:$0xff]
          %v569 = vld [vmem:[%s1 + $0x8] sm:$0xff]
          %v570 = vadd.f32 %v560, %v568
          %v571 = vadd.f32 %v565, %v569
          %vm572 = vcmask 261120
          %573 = vst.msk [vmem:[#allocation2] sm:$0xff] %vm572, %v570
          %574 = vst.msk [vmem:[#allocation2 + $0x8] sm:$0xff] %vm572, %v571
        $region68: #{positional_transformer_forward.1} parent=63 // pred_fallthru
          _
        %v575 = vld [vmem:[#allocation2] sm:$0xff]
        %v576 = vld [vmem:[#allocation2 + $0x8] sm:$0xff]
        %v577 = vld [vmem:[%s466] sm:$0xff]
        %v578 = vld [vmem:[%s443] sm:$0xff]
        %v579 = vld [vmem:[%s443 + $0x8] sm:$0xff]
        %v580 = vld [vmem:[%s443 + $0x10] sm:$0xff]
        %v581 = vld [vmem:[%s443 + $0x18] sm:$0xff]
        %v582 = vlaneseq
        %v583 = vshrl.u32 %v582, 7
        %v584 = vsub.s32 0, %v583
        %v585 = vrot.slane %v577, %v584
        %vm586 = vcmask 261120
        %v588 = vsel %vm586, %v575, 0
        %v591 = vsel %vm586, %v576, 0
        %593 = vmatprep.subr.mxu0 0.0
        %594 = vmatpush1.msra.mxu0 0.0
        %595 = vmatprep.subr.mxu0 0.0
        %596 = vmatpush1.msra.mxu0 0.0
        %597 = vmatprep.subr.mxu0 0.0
        %598 = vmatpush1.msra.mxu0 0.0
        %599 = vmatprep.subr.mxu0 0.0
        %600 = vmatpush1.msra.mxu0 0.0
        %601 = vmatprep.subr.mxu0 0.0
        %602 = vmatpush1.msra.mxu0 0.0
        %603 = vmatprep.subr.mxu0 0.0
        %604 = vmatpush1.msra.mxu0 0.0
        %605 = vmatprep.subr.mxu0 0.0
        %606 = vmatpush1.msra.mxu0 0.0
        %607 = vmatprep.subr.mxu0 0.0
        %608 = vmatpush1.msra.mxu0 0.0
        %609 = vmatprep.subr.mxu0 0.0
        %610 = vmatpush1.msra.mxu0 0.0
        %611 = vmatprep.subr.mxu0 0.0
        %612 = vmatpush1.msra.mxu0 0.0
        %613 = vmatprep.subr.mxu0 0.0
        %614 = vmatpush1.msra.mxu0 0.0
        %615 = vmatprep.subr.mxu0 0.0
        %616 = vmatpush1.msra.mxu0 0.0
        %617 = vmatprep.subr.mxu0 0.0
        %618 = vmatpush1.msra.mxu0 %v581
        %619 = vmatprep.subr.mxu0 0.0
        %620 = vmatpush1.msra.mxu0 %v580
        %621 = vmatprep.subr.mxu0 0.0
        %622 = vmatpush1.msra.mxu0 %v579
        %623 = vmatprep.subr.mxu0 0.0
        %624 = vmatpush1.msra.mxu0 %v578
        %625 = vmatprep.subr.mxu0 0.0
        %626 = vmatpush2.msra.mxu0 0.0
        %627 = vmatprep.subr.mxu0 0.0
        %628 = vmatpush2.msra.mxu0 0.0
        %629 = vmatprep.subr.mxu0 0.0
        %630 = vmatpush2.msra.mxu0 0.0
        %631 = vmatprep.subr.mxu0 0.0
        %632 = vmatpush2.msra.mxu0 0.0
        %633 = vmatprep.subr.mxu0 0.0
        %634 = vmatpush2.msra.mxu0 0.0
        %635 = vmatprep.subr.mxu0 0.0
        %636 = vmatpush2.msra.mxu0 0.0
        %637 = vmatprep.subr.mxu0 0.0
        %638 = vmatpush2.msra.mxu0 0.0
        %639 = vmatprep.subr.mxu0 0.0
        %640 = vmatpush2.msra.mxu0 0.0
        %641 = vmatprep.subr.mxu0 0.0
        %642 = vmatpush2.msra.mxu0 0.0
        %643 = vmatprep.subr.mxu0 0.0
        %644 = vmatpush2.msra.mxu0 0.0
        %645 = vmatprep.subr.mxu0 0.0
        %646 = vmatpush2.msra.mxu0 0.0
        %647 = vmatprep.subr.mxu0 0.0
        %648 = vmatpush2.msra.mxu0 0.0
        %649 = vmatprep.subr.mxu0 0.0
        %650 = vmatpush2.msra.mxu0 0.0
        %651 = vmatprep.subr.mxu0 0.0
        %652 = vmatpush2.msra.mxu0 0.0
        %653 = vmatprep.subr.mxu0 0.0
        %654 = vmatpush2.msra.mxu0 0.0
        %655 = vmatprep.subr.mxu0 0.0
        %656 = vmatpush2.msra.mxu0 0.0
        %657 = vmatprep.mubr.f32.mxu0 0.0
        %658 = vmatmul.mubr.f32.gmra.mxu0 %v588
        %v659 = vpop.f32.mrf.mxu0
        %v660 = vadd.f32 %v585, %v659
        %v661 = vpop.f32.mrf.mxu0
        %662 = vmatprep.mubr.f32.mxu0 0.0
        %663 = vmatmul.mubr.f32.gmra.mxu0 %v591
        %v664 = vpop.f32.mrf.mxu0
        %v665 = vadd.f32 %v585, %v664
        %v666 = vpop.f32.mrf.mxu0
        %667 = vdwg.mxu0
        %v668 = vld [vmem:[%s448] sm:$0xff]
        %v669 = vld [vmem:[%s448 + $0x8] sm:$0xff]
        %v670 = vld [vmem:[%s448 + $0x10] sm:$0xff]
        %v671 = vld [vmem:[%s448 + $0x18] sm:$0xff]
        %v672 = vld [vmem:[%s2] sm:$0xff]
        %v673 = vld [vmem:[%s2 + $0x8] sm:$0xff]
        %v674 = vlaneseq
        %v675 = vshrl.u32 %v674, 7
        %v676 = vsub.s32 1, %v675
        %v677 = vrot.slane %v577, %v676
        %v678 = vadd.f32 %v677, 0.0
        %v679 = vmul.f32 %v660, 0.35355338
        %v680 = vmul.f32 %v665, 0.35355338
        %683 = vrot.lane.b32.xlu0 %v660, 96
        %v684 = vpop.permute.xlu0 %683
        %685 = vrot.lane.b32.xlu0 %v665, 96
        %v686 = vpop.permute.xlu0 %685
        %vm687 = vcmask 64512
        %v689 = vsel %vm687, %v679, 0
        %v692 = vsel %vm687, %v680, 0
        %v694 = vsel %vm687, %v684, 0
        %v696 = vsel %vm687, %v686, 0
        %698 = vmatprep.subr.mxu0 0.0
        %699 = vmatpush1.xpose.msra.mxu0 0.0
        %700 = vmatprep.subr.mxu0 0.0
        %701 = vmatpush1.xpose.msra.mxu0 0.0
        %702 = vmatprep.subr.mxu0 0.0
        %703 = vmatpush1.xpose.msra.mxu0 0.0
        %704 = vmatprep.subr.mxu0 0.0
        %705 = vmatpush1.xpose.msra.mxu0 0.0
        %706 = vmatprep.subr.mxu0 0.0
        %707 = vmatpush1.xpose.msra.mxu0 0.0
        %708 = vmatprep.subr.mxu0 0.0
        %709 = vmatpush1.xpose.msra.mxu0 0.0
        %710 = vmatprep.subr.mxu0 0.0
        %711 = vmatpush1.xpose.msra.mxu0 0.0
        %712 = vmatprep.subr.mxu0 0.0
        %713 = vmatpush1.xpose.msra.mxu0 0.0
        %714 = vmatprep.subr.mxu0 0.0
        %715 = vmatpush1.xpose.msra.mxu0 0.0
        %716 = vmatprep.subr.mxu0 0.0
        %717 = vmatpush1.xpose.msra.mxu0 0.0
        %718 = vmatprep.subr.mxu0 0.0
        %719 = vmatpush1.xpose.msra.mxu0 0.0
        %720 = vmatprep.subr.mxu0 0.0
        %721 = vmatpush1.xpose.msra.mxu0 0.0
        %722 = vmatprep.subr.mxu0 0.0
        %723 = vmatpush1.xpose.msra.mxu0 0.0
        %724 = vmatprep.subr.mxu0 0.0
        %725 = vmatpush1.xpose.msra.mxu0 0.0
        %726 = vmatprep.subr.mxu0 0.0
        %727 = vmatpush1.xpose.msra.mxu0 %v696
        %728 = vmatprep.subr.mxu0 0.0
        %729 = vmatpush1.xpose.msra.mxu0 %v694
        %730 = vmatprep.subr.mxu0 0.0
        %731 = vmatpush2.xpose.msra.mxu0 0.0
        %732 = vmatprep.subr.mxu0 0.0
        %733 = vmatpush2.xpose.msra.mxu0 0.0
        %734 = vmatprep.subr.mxu0 0.0
        %735 = vmatpush2.xpose.msra.mxu0 0.0
        %736 = vmatprep.subr.mxu0 0.0
        %737 = vmatpush2.xpose.msra.mxu0 0.0
        %738 = vmatprep.subr.mxu0 0.0
        %739 = vmatpush2.xpose.msra.mxu0 0.0
        %740 = vmatprep.subr.mxu0 0.0
        %741 = vmatpush2.xpose.msra.mxu0 0.0
        %742 = vmatprep.subr.mxu0 0.0
        %743 = vmatpush2.xpose.msra.mxu0 0.0
        %744 = vmatprep.subr.mxu0 0.0
        %745 = vmatpush2.xpose.msra.mxu0 0.0
        %746 = vmatprep.subr.mxu0 0.0
        %747 = vmatpush2.xpose.msra.mxu0 0.0
        %748 = vmatprep.subr.mxu0 0.0
        %749 = vmatpush2.xpose.msra.mxu0 0.0
        %750 = vmatprep.subr.mxu0 0.0
        %751 = vmatpush2.xpose.msra.mxu0 0.0
        %752 = vmatprep.subr.mxu0 0.0
        %753 = vmatpush2.xpose.msra.mxu0 0.0
        %754 = vmatprep.subr.mxu0 0.0
        %755 = vmatpush2.xpose.msra.mxu0 0.0
        %756 = vmatprep.subr.mxu0 0.0
        %757 = vmatpush2.xpose.msra.mxu0 0.0
        %758 = vmatprep.subr.mxu0 0.0
        %759 = vmatpush2.xpose.msra.mxu0 0.0
        %760 = vmatprep.subr.mxu0 0.0
        %761 = vmatpush2.xpose.msra.mxu0 0.0
        %762 = vmatprep.mubr.f32.mxu0 0.0
        %763 = vmatmul.mubr.f32.gmra.mxu0 %v689
        %v764 = vpop.f32.mrf.mxu0
        %v765 = vadd.f32 %v672, %v764
        %v766 = vpop.f32.mrf.mxu0
        %767 = vmatprep.mubr.f32.mxu0 0.0
        %768 = vmatmul.mubr.f32.gmra.mxu0 %v692
        %v769 = vpop.f32.mrf.mxu0
        %v770 = vadd.f32 %v673, %v769
        %v771 = vpop.f32.mrf.mxu0
        %772 = vdwg.mxu0
        %vm773 = vcmask 130048
        %v774 = vsel %vm773, %v765, -inf
        %775 = vmax.xlane.f32.xlu0 %v774
        %v776 = vpop.xlane.xlu0 %775
        %v777 = vsel %vm773, %v770, -inf
        %778 = vmax.xlane.f32.xlu0 %v777
        %v779 = vpop.xlane.xlu0 %778
        %v780 = vsub.f32 %v765, %v776
        %v781 = vsub.f32 %v770, %v779
        %v782 = vmul.f32 %v780, 1.442695
        %v783 = vpow.pop %v782
        %v784 = vmul.f32 %v781, 1.442695
        %v785 = vpow.pop %v784
        %v786 = vsel %vm773, %v783, 0.0
        %787 = vadd.xlane.f32.xlu0 %v786
        %v788 = vpop.xlane.xlu0 %787
        %v789 = vsel %vm773, %v785, 0.0
        %790 = vadd.xlane.f32.xlu0 %v789
        %v791 = vpop.xlane.xlu0 %790
        %v792 = vrcp.pop %v788
        %v793 = vmul.f32 %v783, %v792
        %v794 = vrcp.pop %v791
        %v795 = vmul.f32 %v785, %v794
        %796 = vrot.lane.b32.xlu0 %v660, 64
        %v797 = vpop.permute.xlu0 %796
        %798 = vrot.lane.b32.xlu0 %v665, 64
        %v799 = vpop.permute.xlu0 %798
        %v803 = vsel %vm773, %v793, 0
        %v806 = vsel %vm773, %v795, 0
        %808 = vmatprep.subr.mxu0 0.0
        %809 = vmatpush1.msra.mxu0 0.0
        %810 = vmatprep.subr.mxu0 0.0
        %811 = vmatpush1.msra.mxu0 0.0
        %812 = vmatprep.subr.mxu0 0.0
        %813 = vmatpush1.msra.mxu0 0.0
        %814 = vmatprep.subr.mxu0 0.0
        %815 = vmatpush1.msra.mxu0 0.0
        %816 = vmatprep.subr.mxu0 0.0
        %817 = vmatpush1.msra.mxu0 0.0
        %818 = vmatprep.subr.mxu0 0.0
        %819 = vmatpush1.msra.mxu0 0.0
        %820 = vmatprep.subr.mxu0 0.0
        %821 = vmatpush1.msra.mxu0 0.0
        %822 = vmatprep.subr.mxu0 0.0
        %823 = vmatpush1.msra.mxu0 0.0
        %824 = vmatprep.subr.mxu0 0.0
        %825 = vmatpush1.msra.mxu0 0.0
        %826 = vmatprep.subr.mxu0 0.0
        %827 = vmatpush1.msra.mxu0 0.0
        %828 = vmatprep.subr.mxu0 0.0
        %829 = vmatpush1.msra.mxu0 0.0
        %830 = vmatprep.subr.mxu0 0.0
        %831 = vmatpush1.msra.mxu0 0.0
        %832 = vmatprep.subr.mxu0 0.0
        %833 = vmatpush1.msra.mxu0 0.0
        %834 = vmatprep.subr.mxu0 0.0
        %835 = vmatpush1.msra.mxu0 0.0
        %836 = vmatprep.subr.mxu0 0.0
        %837 = vmatpush1.msra.mxu0 %v799
        %838 = vmatprep.subr.mxu0 0.0
        %839 = vmatpush1.msra.mxu0 %v797
        %840 = vmatprep.subr.mxu0 0.0
        %841 = vmatpush2.msra.mxu0 0.0
        %842 = vmatprep.subr.mxu0 0.0
        %843 = vmatpush2.msra.mxu0 0.0
        %844 = vmatprep.subr.mxu0 0.0
        %845 = vmatpush2.msra.mxu0 0.0
        %846 = vmatprep.subr.mxu0 0.0
        %847 = vmatpush2.msra.mxu0 0.0
        %848 = vmatprep.subr.mxu0 0.0
        %849 = vmatpush2.msra.mxu0 0.0
        %850 = vmatprep.subr.mxu0 0.0
        %851 = vmatpush2.msra.mxu0 0.0
        %852 = vmatprep.subr.mxu0 0.0
        %853 = vmatpush2.msra.mxu0 0.0
        %854 = vmatprep.subr.mxu0 0.0
        %855 = vmatpush2.msra.mxu0 0.0
        %856 = vmatprep.subr.mxu0 0.0
        %857 = vmatpush2.msra.mxu0 0.0
        %858 = vmatprep.subr.mxu0 0.0
        %859 = vmatpush2.msra.mxu0 0.0
        %860 = vmatprep.subr.mxu0 0.0
        %861 = vmatpush2.msra.mxu0 0.0
        %862 = vmatprep.subr.mxu0 0.0
        %863 = vmatpush2.msra.mxu0 0.0
        %864 = vmatprep.subr.mxu0 0.0
        %865 = vmatpush2.msra.mxu0 0.0
        %866 = vmatprep.subr.mxu0 0.0
        %867 = vmatpush2.msra.mxu0 0.0
        %868 = vmatprep.subr.mxu0 0.0
        %869 = vmatpush2.msra.mxu0 0.0
        %870 = vmatprep.subr.mxu0 0.0
        %871 = vmatpush2.msra.mxu0 0.0
        %872 = vmatprep.mubr.f32.mxu0 0.0
        %873 = vmatmul.mubr.f32.gmra.mxu0 %v803
        %v874 = vpop.f32.mrf.mxu0
        %v875 = vadd.f32 0.0, %v874
        %v876 = vpop.f32.mrf.mxu0
        %877 = vmatprep.mubr.f32.mxu0 0.0
        %878 = vmatmul.mubr.f32.gmra.mxu0 %v806
        %v879 = vpop.f32.mrf.mxu0
        %v880 = vadd.f32 0.0, %v879
        %v881 = vpop.f32.mrf.mxu0
        %882 = vdwg.mxu0
        %v884 = vsel %vm687, %v875, 0
        %v887 = vsel %vm687, %v880, 0
        %889 = vmatprep.subr.mxu0 0.0
        %890 = vmatpush1.msra.mxu0 0.0
        %891 = vmatprep.subr.mxu0 0.0
        %892 = vmatpush1.msra.mxu0 0.0
        %893 = vmatprep.subr.mxu0 0.0
        %894 = vmatpush1.msra.mxu0 0.0
        %895 = vmatprep.subr.mxu0 0.0
        %896 = vmatpush1.msra.mxu0 0.0
        %897 = vmatprep.subr.mxu0 0.0
        %898 = vmatpush1.msra.mxu0 0.0
        %899 = vmatprep.subr.mxu0 0.0
        %900 = vmatpush1.msra.mxu0 0.0
        %901 = vmatprep.subr.mxu0 0.0
        %902 = vmatpush1.msra.mxu0 0.0
        %903 = vmatprep.subr.mxu0 0.0
        %904 = vmatpush1.msra.mxu0 0.0
        %905 = vmatprep.subr.mxu0 0.0
        %906 = vmatpush1.msra.mxu0 0.0
        %907 = vmatprep.subr.mxu0 0.0
        %908 = vmatpush1.msra.mxu0 0.0
        %909 = vmatprep.subr.mxu0 0.0
        %910 = vmatpush1.msra.mxu0 0.0
        %911 = vmatprep.subr.mxu0 0.0
        %912 = vmatpush1.msra.mxu0 0.0
        %913 = vmatprep.subr.mxu0 0.0
        %914 = vmatpush1.msra.mxu0 0.0
        %915 = vmatprep.subr.mxu0 0.0
        %916 = vmatpush1.msra.mxu0 0.0
        %917 = vmatprep.subr.mxu0 0.0
        %918 = vmatpush1.msra.mxu0 0.0
        %919 = vmatprep.subr.mxu0 0.0
        %920 = vmatpush1.msra.mxu0 %v668
        %921 = vmatprep.subr.mxu0 0.0
        %922 = vmatpush2.msra.mxu0 0.0
        %923 = vmatprep.subr.mxu0 0.0
        %924 = vmatpush2.msra.mxu0 0.0
        %925 = vmatprep.subr.mxu0 0.0
        %926 = vmatpush2.msra.mxu0 0.0
        %927 = vmatprep.subr.mxu0 0.0
        %928 = vmatpush2.msra.mxu0 0.0
        %929 = vmatprep.subr.mxu0 0.0
        %930 = vmatpush2.msra.mxu0 0.0
        %931 = vmatprep.subr.mxu0 0.0
        %932 = vmatpush2.msra.mxu0 0.0
        %933 = vmatprep.subr.mxu0 0.0
        %934 = vmatpush2.msra.mxu0 0.0
        %935 = vmatprep.subr.mxu0 0.0
        %936 = vmatpush2.msra.mxu0 0.0
        %937 = vmatprep.subr.mxu0 0.0
        %938 = vmatpush2.msra.mxu0 0.0
        %939 = vmatprep.subr.mxu0 0.0
        %940 = vmatpush2.msra.mxu0 0.0
        %941 = vmatprep.subr.mxu0 0.0
        %942 = vmatpush2.msra.mxu0 0.0
        %943 = vmatprep.subr.mxu0 0.0
        %944 = vmatpush2.msra.mxu0 0.0
        %945 = vmatprep.subr.mxu0 0.0
        %946 = vmatpush2.msra.mxu0 0.0
        %947 = vmatprep.subr.mxu0 0.0
        %948 = vmatpush2.msra.mxu0 0.0
        %949 = vmatprep.subr.mxu0 0.0
        %950 = vmatpush2.msra.mxu0 0.0
        %951 = vmatprep.subr.mxu0 0.0
        %952 = vmatpush2.msra.mxu0 0.0
        %953 = vmatprep.mubr.f32.mxu0 0.0
        %954 = vmatmul.mubr.f32.gmra.mxu0 %v884
        %v955 = vpop.f32.mrf.mxu0
        %v956 = vadd.f32 0.0, %v955
        %v957 = vpop.f32.mrf.mxu0
        %958 = vmatprep.mubr.f32.mxu0 0.0
        %959 = vmatmul.mubr.f32.gmra.mxu0 %v887
        %v960 = vpop.f32.mrf.mxu0
        %v961 = vadd.f32 0.0, %v960
        %v962 = vpop.f32.mrf.mxu0
        %963 = vdwg.mxu0
        %v964 = vadd.f32 %v678, %v956
        %v965 = vadd.f32 %v678, %v961
        %966 = vrot.lane.b32.xlu0 %v679, 120
        %v967 = vpop.permute.xlu0 %966
        %968 = vrot.lane.b32.xlu0 %v680, 120
        %v969 = vpop.permute.xlu0 %968
        %970 = vrot.lane.b32.xlu0 %v660, 88
        %v971 = vpop.permute.xlu0 %970
        %972 = vrot.lane.b32.xlu0 %v665, 88
        %v973 = vpop.permute.xlu0 %972
        %v974 = vsel %vm687, %v967, 0
        %v976 = vsel %vm687, %v969, 0
        %v978 = vsel %vm687, %v971, 0
        %v980 = vsel %vm687, %v973, 0
        %982 = vmatprep.subr.mxu0 0.0
        %983 = vmatpush1.xpose.msra.mxu0 0.0
        %984 = vmatprep.subr.mxu0 0.0
        %985 = vmatpush1.xpose.msra.mxu0 0.0
        %986 = vmatprep.subr.mxu0 0.0
        %987 = vmatpush1.xpose.msra.mxu0 0.0
        %988 = vmatprep.subr.mxu0 0.0
        %989 = vmatpush1.xpose.msra.mxu0 0.0
        %990 = vmatprep.subr.mxu0 0.0
        %991 = vmatpush1.xpose.msra.mxu0 0.0
        %992 = vmatprep.subr.mxu0 0.0
        %993 = vmatpush1.xpose.msra.mxu0 0.0
        %994 = vmatprep.subr.mxu0 0.0
        %995 = vmatpush1.xpose.msra.mxu0 0.0
        %996 = vmatprep.subr.mxu0 0.0
        %997 = vmatpush1.xpose.msra.mxu0 0.0
        %998 = vmatprep.subr.mxu0 0.0
        %999 = vmatpush1.xpose.msra.mxu0 0.0
        %1000 = vmatprep.subr.mxu0 0.0
        %1001 = vmatpush1.xpose.msra.mxu0 0.0
        %1002 = vmatprep.subr.mxu0 0.0
        %1003 = vmatpush1.xpose.msra.mxu0 0.0
        %1004 = vmatprep.subr.mxu0 0.0
        %1005 = vmatpush1.xpose.msra.mxu0 0.0
        %1006 = vmatprep.subr.mxu0 0.0
        %1007 = vmatpush1.xpose.msra.mxu0 0.0
        %1008 = vmatprep.subr.mxu0 0.0
        %1009 = vmatpush1.xpose.msra.mxu0 0.0
        %1010 = vmatprep.subr.mxu0 0.0
        %1011 = vmatpush1.xpose.msra.mxu0 %v980
        %1012 = vmatprep.subr.mxu0 0.0
        %1013 = vmatpush1.xpose.msra.mxu0 %v978
        %1014 = vmatprep.subr.mxu0 0.0
        %1015 = vmatpush2.xpose.msra.mxu0 0.0
        %1016 = vmatprep.subr.mxu0 0.0
        %1017 = vmatpush2.xpose.msra.mxu0 0.0
        %1018 = vmatprep.subr.mxu0 0.0
        %1019 = vmatpush2.xpose.msra.mxu0 0.0
        %1020 = vmatprep.subr.mxu0 0.0
        %1021 = vmatpush2.xpose.msra.mxu0 0.0
        %1022 = vmatprep.subr.mxu0 0.0
        %1023 = vmatpush2.xpose.msra.mxu0 0.0
        %1024 = vmatprep.subr.mxu0 0.0
        %1025 = vmatpush2.xpose.msra.mxu0 0.0
        %1026 = vmatprep.subr.mxu0 0.0
        %1027 = vmatpush2.xpose.msra.mxu0 0.0
        %1028 = vmatprep.subr.mxu0 0.0
        %1029 = vmatpush2.xpose.msra.mxu0 0.0
        %1030 = vmatprep.subr.mxu0 0.0
        %1031 = vmatpush2.xpose.msra.mxu0 0.0
        %1032 = vmatprep.subr.mxu0 0.0
        %1033 = vmatpush2.xpose.msra.mxu0 0.0
        %1034 = vmatprep.subr.mxu0 0.0
        %1035 = vmatpush2.xpose.msra.mxu0 0.0
        %1036 = vmatprep.subr.mxu0 0.0
        %1037 = vmatpush2.xpose.msra.mxu0 0.0
        %1038 = vmatprep.subr.mxu0 0.0
        %1039 = vmatpush2.xpose.msra.mxu0 0.0
        %1040 = vmatprep.subr.mxu0 0.0
        %1041 = vmatpush2.xpose.msra.mxu0 0.0
        %1042 = vmatprep.subr.mxu0 0.0
        %1043 = vmatpush2.xpose.msra.mxu0 0.0
        %1044 = vmatprep.subr.mxu0 0.0
        %1045 = vmatpush2.xpose.msra.mxu0 0.0
        %1046 = vmatprep.mubr.f32.mxu0 0.0
        %1047 = vmatmul.mubr.f32.gmra.mxu0 %v974
        %v1048 = vpop.f32.mrf.mxu0
        %v1049 = vadd.f32 %v672, %v1048
        %v1050 = vpop.f32.mrf.mxu0
        %1051 = vmatprep.mubr.f32.mxu0 0.0
        %1052 = vmatmul.mubr.f32.gmra.mxu0 %v976
        %v1053 = vpop.f32.mrf.mxu0
        %v1054 = vadd.f32 %v673, %v1053
        %v1055 = vpop.f32.mrf.mxu0
        %1056 = vdwg.mxu0
        %v1057 = vsel %vm773, %v1049, -inf
        %1058 = vmax.xlane.f32.xlu0 %v1057
        %v1059 = vpop.xlane.xlu0 %1058
        %v1060 = vsel %vm773, %v1054, -inf
        %1061 = vmax.xlane.f32.xlu0 %v1060
        %v1062 = vpop.xlane.xlu0 %1061
        %v1063 = vsub.f32 %v1049, %v1059
        %v1064 = vsub.f32 %v1054, %v1062
        %v1065 = vmul.f32 %v1063, 1.442695
        %v1066 = vpow.pop %v1065
        %v1067 = vmul.f32 %v1064, 1.442695
        %v1068 = vpow.pop %v1067
        %v1069 = vsel %vm773, %v1066, 0.0
        %1070 = vadd.xlane.f32.xlu0 %v1069
        %v1071 = vpop.xlane.xlu0 %1070
        %v1072 = vsel %vm773, %v1068, 0.0
        %1073 = vadd.xlane.f32.xlu0 %v1072
        %v1074 = vpop.xlane.xlu0 %1073
        %v1075 = vrcp.pop %v1071
        %v1076 = vmul.f32 %v1066, %v1075
        %v1077 = vrcp.pop %v1074
        %v1078 = vmul.f32 %v1068, %v1077
        %1079 = vrot.lane.b32.xlu0 %v660, 56
        %v1080 = vpop.permute.xlu0 %1079
        %1081 = vrot.lane.b32.xlu0 %v665, 56
        %v1082 = vpop.permute.xlu0 %1081
        %v1086 = vsel %vm773, %v1076, 0
        %v1089 = vsel %vm773, %v1078, 0
        %1091 = vmatprep.subr.mxu0 0.0
        %1092 = vmatpush1.msra.mxu0 0.0
        %1093 = vmatprep.subr.mxu0 0.0
        %1094 = vmatpush1.msra.mxu0 0.0
        %1095 = vmatprep.subr.mxu0 0.0
        %1096 = vmatpush1.msra.mxu0 0.0
        %1097 = vmatprep.subr.mxu0 0.0
        %1098 = vmatpush1.msra.mxu0 0.0
        %1099 = vmatprep.subr.mxu0 0.0
        %1100 = vmatpush1.msra.mxu0 0.0
        %1101 = vmatprep.subr.mxu0 0.0
        %1102 = vmatpush1.msra.mxu0 0.0
        %1103 = vmatprep.subr.mxu0 0.0
        %1104 = vmatpush1.msra.mxu0 0.0
        %1105 = vmatprep.subr.mxu0 0.0
        %1106 = vmatpush1.msra.mxu0 0.0
        %1107 = vmatprep.subr.mxu0 0.0
        %1108 = vmatpush1.msra.mxu0 0.0
        %1109 = vmatprep.subr.mxu0 0.0
        %1110 = vmatpush1.msra.mxu0 0.0
        %1111 = vmatprep.subr.mxu0 0.0
        %1112 = vmatpush1.msra.mxu0 0.0
        %1113 = vmatprep.subr.mxu0 0.0
        %1114 = vmatpush1.msra.mxu0 0.0
        %1115 = vmatprep.subr.mxu0 0.0
        %1116 = vmatpush1.msra.mxu0 0.0
        %1117 = vmatprep.subr.mxu0 0.0
        %1118 = vmatpush1.msra.mxu0 0.0
        %1119 = vmatprep.subr.mxu0 0.0
        %1120 = vmatpush1.msra.mxu0 %v1082
        %1121 = vmatprep.subr.mxu0 0.0
        %1122 = vmatpush1.msra.mxu0 %v1080
        %1123 = vmatprep.subr.mxu0 0.0
        %1124 = vmatpush2.msra.mxu0 0.0
        %1125 = vmatprep.subr.mxu0 0.0
        %1126 = vmatpush2.msra.mxu0 0.0
        %1127 = vmatprep.subr.mxu0 0.0
        %1128 = vmatpush2.msra.mxu0 0.0
        %1129 = vmatprep.subr.mxu0 0.0
        %1130 = vmatpush2.msra.mxu0 0.0
        %1131 = vmatprep.subr.mxu0 0.0
        %1132 = vmatpush2.msra.mxu0 0.0
        %1133 = vmatprep.subr.mxu0 0.0
        %1134 = vmatpush2.msra.mxu0 0.0
        %1135 = vmatprep.subr.mxu0 0.0
        %1136 = vmatpush2.msra.mxu0 0.0
        %1137 = vmatprep.subr.mxu0 0.0
        %1138 = vmatpush2.msra.mxu0 0.0
        %1139 = vmatprep.subr.mxu0 0.0
        %1140 = vmatpush2.msra.mxu0 0.0
        %1141 = vmatprep.subr.mxu0 0.0
        %1142 = vmatpush2.msra.mxu0 0.0
        %1143 = vmatprep.subr.mxu0 0.0
        %1144 = vmatpush2.msra.mxu0 0.0
        %1145 = vmatprep.subr.mxu0 0.0
        %1146 = vmatpush2.msra.mxu0 0.0
        %1147 = vmatprep.subr.mxu0 0.0
        %1148 = vmatpush2.msra.mxu0 0.0
        %1149 = vmatprep.subr.mxu0 0.0
        %1150 = vmatpush2.msra.mxu0 0.0
        %1151 = vmatprep.subr.mxu0 0.0
        %1152 = vmatpush2.msra.mxu0 0.0
        %1153 = vmatprep.subr.mxu0 0.0
        %1154 = vmatpush2.msra.mxu0 0.0
        %1155 = vmatprep.mubr.f32.mxu0 0.0
        %1156 = vmatmul.mubr.f32.gmra.mxu0 %v1086
        %v1157 = vpop.f32.mrf.mxu0
        %v1158 = vadd.f32 0.0, %v1157
        %v1159 = vpop.f32.mrf.mxu0
        %1160 = vmatprep.mubr.f32.mxu0 0.0
        %1161 = vmatmul.mubr.f32.gmra.mxu0 %v1089
        %v1162 = vpop.f32.mrf.mxu0
        %v1163 = vadd.f32 0.0, %v1162
        %v1164 = vpop.f32.mrf.mxu0
        %1165 = vdwg.mxu0
        %v1167 = vsel %vm687, %v1158, 0
        %v1170 = vsel %vm687, %v1163, 0
        %1172 = vmatprep.subr.mxu0 0.0
        %1173 = vmatpush1.msra.mxu0 0.0
        %1174 = vmatprep.subr.mxu0 0.0
        %1175 = vmatpush1.msra.mxu0 0.0
        %1176 = vmatprep.subr.mxu0 0.0
        %1177 = vmatpush1.msra.mxu0 0.0
        %1178 = vmatprep.subr.mxu0 0.0
        %1179 = vmatpush1.msra.mxu0 0.0
        %1180 = vmatprep.subr.mxu0 0.0
        %1181 = vmatpush1.msra.mxu0 0.0
        %1182 = vmatprep.subr.mxu0 0.0
        %1183 = vmatpush1.msra.mxu0 0.0
        %1184 = vmatprep.subr.mxu0 0.0
        %1185 = vmatpush1.msra.mxu0 0.0
        %1186 = vmatprep.subr.mxu0 0.0
        %1187 = vmatpush1.msra.mxu0 0.0
        %1188 = vmatprep.subr.mxu0 0.0
        %1189 = vmatpush1.msra.mxu0 0.0
        %1190 = vmatprep.subr.mxu0 0.0
        %1191 = vmatpush1.msra.mxu0 0.0
        %1192 = vmatprep.subr.mxu0 0.0
        %1193 = vmatpush1.msra.mxu0 0.0
        %1194 = vmatprep.subr.mxu0 0.0
        %1195 = vmatpush1.msra.mxu0 0.0
        %1196 = vmatprep.subr.mxu0 0.0
        %1197 = vmatpush1.msra.mxu0 0.0
        %1198 = vmatprep.subr.mxu0 0.0
        %1199 = vmatpush1.msra.mxu0 0.0
        %1200 = vmatprep.subr.mxu0 0.0
        %1201 = vmatpush1.msra.mxu0 0.0
        %1202 = vmatprep.subr.mxu0 0.0
        %1203 = vmatpush1.msra.mxu0 %v669
        %1204 = vmatprep.subr.mxu0 0.0
        %1205 = vmatpush2.msra.mxu0 0.0
        %1206 = vmatprep.subr.mxu0 0.0
        %1207 = vmatpush2.msra.mxu0 0.0
        %1208 = vmatprep.subr.mxu0 0.0
        %1209 = vmatpush2.msra.mxu0 0.0
        %1210 = vmatprep.subr.mxu0 0.0
        %1211 = vmatpush2.msra.mxu0 0.0
        %1212 = vmatprep.subr.mxu0 0.0
        %1213 = vmatpush2.msra.mxu0 0.0
        %1214 = vmatprep.subr.mxu0 0.0
        %1215 = vmatpush2.msra.mxu0 0.0
        %1216 = vmatprep.subr.mxu0 0.0
        %1217 = vmatpush2.msra.mxu0 0.0
        %1218 = vmatprep.subr.mxu0 0.0
        %1219 = vmatpush2.msra.mxu0 0.0
        %1220 = vmatprep.subr.mxu0 0.0
        %1221 = vmatpush2.msra.mxu0 0.0
        %1222 = vmatprep.subr.mxu0 0.0
        %1223 = vmatpush2.msra.mxu0 0.0
        %1224 = vmatprep.subr.mxu0 0.0
        %1225 = vmatpush2.msra.mxu0 0.0
        %1226 = vmatprep.subr.mxu0 0.0
        %1227 = vmatpush2.msra.mxu0 0.0
        %1228 = vmatprep.subr.mxu0 0.0
        %1229 = vmatpush2.msra.mxu0 0.0
        %1230 = vmatprep.subr.mxu0 0.0
        %1231 = vmatpush2.msra.mxu0 0.0
        %1232 = vmatprep.subr.mxu0 0.0
        %1233 = vmatpush2.msra.mxu0 0.0
        %1234 = vmatprep.subr.mxu0 0.0
        %1235 = vmatpush2.msra.mxu0 0.0
        %1236 = vmatprep.mubr.f32.mxu0 0.0
        %1237 = vmatmul.mubr.f32.gmra.mxu0 %v1167
        %v1238 = vpop.f32.mrf.mxu0
        %v1239 = vadd.f32 0.0, %v1238
        %v1240 = vpop.f32.mrf.mxu0
        %1241 = vmatprep.mubr.f32.mxu0 0.0
        %1242 = vmatmul.mubr.f32.gmra.mxu0 %v1170
        %v1243 = vpop.f32.mrf.mxu0
        %v1244 = vadd.f32 0.0, %v1243
        %v1245 = vpop.f32.mrf.mxu0
        %1246 = vdwg.mxu0
        %v1247 = vadd.f32 %v964, %v1239
        %v1248 = vadd.f32 %v965, %v1244
        %1249 = vrot.lane.b32.xlu0 %v679, 112
        %v1250 = vpop.permute.xlu0 %1249
        %1251 = vrot.lane.b32.xlu0 %v680, 112
        %v1252 = vpop.permute.xlu0 %1251
        %1253 = vrot.lane.b32.xlu0 %v660, 80
        %v1254 = vpop.permute.xlu0 %1253
        %1255 = vrot.lane.b32.xlu0 %v665, 80
        %v1256 = vpop.permute.xlu0 %1255
        %v1257 = vsel %vm687, %v1250, 0
        %v1259 = vsel %vm687, %v1252, 0
        %v1261 = vsel %vm687, %v1254, 0
        %v1263 = vsel %vm687, %v1256, 0
        %1265 = vmatprep.subr.mxu0 0.0
        %1266 = vmatpush1.xpose.msra.mxu0 0.0
        %1267 = vmatprep.subr.mxu0 0.0
        %1268 = vmatpush1.xpose.msra.mxu0 0.0
        %1269 = vmatprep.subr.mxu0 0.0
        %1270 = vmatpush1.xpose.msra.mxu0 0.0
        %1271 = vmatprep.subr.mxu0 0.0
        %1272 = vmatpush1.xpose.msra.mxu0 0.0
        %1273 = vmatprep.subr.mxu0 0.0
        %1274 = vmatpush1.xpose.msra.mxu0 0.0
        %1275 = vmatprep.subr.mxu0 0.0
        %1276 = vmatpush1.xpose.msra.mxu0 0.0
        %1277 = vmatprep.subr.mxu0 0.0
        %1278 = vmatpush1.xpose.msra.mxu0 0.0
        %1279 = vmatprep.subr.mxu0 0.0
        %1280 = vmatpush1.xpose.msra.mxu0 0.0
        %1281 = vmatprep.subr.mxu0 0.0
        %1282 = vmatpush1.xpose.msra.mxu0 0.0
        %1283 = vmatprep.subr.mxu0 0.0
        %1284 = vmatpush1.xpose.msra.mxu0 0.0
        %1285 = vmatprep.subr.mxu0 0.0
        %1286 = vmatpush1.xpose.msra.mxu0 0.0
        %1287 = vmatprep.subr.mxu0 0.0
        %1288 = vmatpush1.xpose.msra.mxu0 0.0
        %1289 = vmatprep.subr.mxu0 0.0
        %1290 = vmatpush1.xpose.msra.mxu0 0.0
        %1291 = vmatprep.subr.mxu0 0.0
        %1292 = vmatpush1.xpose.msra.mxu0 0.0
        %1293 = vmatprep.subr.mxu0 0.0
        %1294 = vmatpush1.xpose.msra.mxu0 %v1263
        %1295 = vmatprep.subr.mxu0 0.0
        %1296 = vmatpush1.xpose.msra.mxu0 %v1261
        %1297 = vmatprep.subr.mxu0 0.0
        %1298 = vmatpush2.xpose.msra.mxu0 0.0
        %1299 = vmatprep.subr.mxu0 0.0
        %1300 = vmatpush2.xpose.msra.mxu0 0.0
        %1301 = vmatprep.subr.mxu0 0.0
        %1302 = vmatpush2.xpose.msra.mxu0 0.0
        %1303 = vmatprep.subr.mxu0 0.0
        %1304 = vmatpush2.xpose.msra.mxu0 0.0
        %1305 = vmatprep.subr.mxu0 0.0
        %1306 = vmatpush2.xpose.msra.mxu0 0.0
        %1307 = vmatprep.subr.mxu0 0.0
        %1308 = vmatpush2.xpose.msra.mxu0 0.0
        %1309 = vmatprep.subr.mxu0 0.0
        %1310 = vmatpush2.xpose.msra.mxu0 0.0
        %1311 = vmatprep.subr.mxu0 0.0
        %1312 = vmatpush2.xpose.msra.mxu0 0.0
        %1313 = vmatprep.subr.mxu0 0.0
        %1314 = vmatpush2.xpose.msra.mxu0 0.0
        %1315 = vmatprep.subr.mxu0 0.0
        %1316 = vmatpush2.xpose.msra.mxu0 0.0
        %1317 = vmatprep.subr.mxu0 0.0
        %1318 = vmatpush2.xpose.msra.mxu0 0.0
        %1319 = vmatprep.subr.mxu0 0.0
        %1320 = vmatpush2.xpose.msra.mxu0 0.0
        %1321 = vmatprep.subr.mxu0 0.0
        %1322 = vmatpush2.xpose.msra.mxu0 0.0
        %1323 = vmatprep.subr.mxu0 0.0
        %1324 = vmatpush2.xpose.msra.mxu0 0.0
        %1325 = vmatprep.subr.mxu0 0.0
        %1326 = vmatpush2.xpose.msra.mxu0 0.0
        %1327 = vmatprep.subr.mxu0 0.0
        %1328 = vmatpush2.xpose.msra.mxu0 0.0
        %1329 = vmatprep.mubr.f32.mxu0 0.0
        %1330 = vmatmul.mubr.f32.gmra.mxu0 %v1257
        %v1331 = vpop.f32.mrf.mxu0
        %v1332 = vadd.f32 %v672, %v1331
        %v1333 = vpop.f32.mrf.mxu0
        %1334 = vmatprep.mubr.f32.mxu0 0.0
        %1335 = vmatmul.mubr.f32.gmra.mxu0 %v1259
        %v1336 = vpop.f32.mrf.mxu0
        %v1337 = vadd.f32 %v673, %v1336
        %v1338 = vpop.f32.mrf.mxu0
        %1339 = vdwg.mxu0
        %v1340 = vsel %vm773, %v1332, -inf
        %1341 = vmax.xlane.f32.xlu0 %v1340
        %v1342 = vpop.xlane.xlu0 %1341
        %v1343 = vsel %vm773, %v1337, -inf
        %1344 = vmax.xlane.f32.xlu0 %v1343
        %v1345 = vpop.xlane.xlu0 %1344
        %v1346 = vsub.f32 %v1332, %v1342
        %v1347 = vsub.f32 %v1337, %v1345
        %v1348 = vmul.f32 %v1346, 1.442695
        %v1349 = vpow.pop %v1348
        %v1350 = vmul.f32 %v1347, 1.442695
        %v1351 = vpow.pop %v1350
        %v1352 = vsel %vm773, %v1349, 0.0
        %1353 = vadd.xlane.f32.xlu0 %v1352
        %v1354 = vpop.xlane.xlu0 %1353
        %v1355 = vsel %vm773, %v1351, 0.0
        %1356 = vadd.xlane.f32.xlu0 %v1355
        %v1357 = vpop.xlane.xlu0 %1356
        %v1358 = vrcp.pop %v1354
        %v1359 = vmul.f32 %v1349, %v1358
        %v1360 = vrcp.pop %v1357
        %v1361 = vmul.f32 %v1351, %v1360
        %1362 = vrot.lane.b32.xlu0 %v660, 48
        %v1363 = vpop.permute.xlu0 %1362
        %1364 = vrot.lane.b32.xlu0 %v665, 48
        %v1365 = vpop.permute.xlu0 %1364
        %v1369 = vsel %vm773, %v1359, 0
        %v1372 = vsel %vm773, %v1361, 0
        %1374 = vmatprep.subr.mxu0 0.0
        %1375 = vmatpush1.msra.mxu0 0.0
        %1376 = vmatprep.subr.mxu0 0.0
        %1377 = vmatpush1.msra.mxu0 0.0
        %1378 = vmatprep.subr.mxu0 0.0
        %1379 = vmatpush1.msra.mxu0 0.0
        %1380 = vmatprep.subr.mxu0 0.0
        %1381 = vmatpush1.msra.mxu0 0.0
        %1382 = vmatprep.subr.mxu0 0.0
        %1383 = vmatpush1.msra.mxu0 0.0
        %1384 = vmatprep.subr.mxu0 0.0
        %1385 = vmatpush1.msra.mxu0 0.0
        %1386 = vmatprep.subr.mxu0 0.0
        %1387 = vmatpush1.msra.mxu0 0.0
        %1388 = vmatprep.subr.mxu0 0.0
        %1389 = vmatpush1.msra.mxu0 0.0
        %1390 = vmatprep.subr.mxu0 0.0
        %1391 = vmatpush1.msra.mxu0 0.0
        %1392 = vmatprep.subr.mxu0 0.0
        %1393 = vmatpush1.msra.mxu0 0.0
        %1394 = vmatprep.subr.mxu0 0.0
        %1395 = vmatpush1.msra.mxu0 0.0
        %1396 = vmatprep.subr.mxu0 0.0
        %1397 = vmatpush1.msra.mxu0 0.0
        %1398 = vmatprep.subr.mxu0 0.0
        %1399 = vmatpush1.msra.mxu0 0.0
        %1400 = vmatprep.subr.mxu0 0.0
        %1401 = vmatpush1.msra.mxu0 0.0
        %1402 = vmatprep.subr.mxu0 0.0
        %1403 = vmatpush1.msra.mxu0 %v1365
        %1404 = vmatprep.subr.mxu0 0.0
        %1405 = vmatpush1.msra.mxu0 %v1363
        %1406 = vmatprep.subr.mxu0 0.0
        %1407 = vmatpush2.msra.mxu0 0.0
        %1408 = vmatprep.subr.mxu0 0.0
        %1409 = vmatpush2.msra.mxu0 0.0
        %1410 = vmatprep.subr.mxu0 0.0
        %1411 = vmatpush2.msra.mxu0 0.0
        %1412 = vmatprep.subr.mxu0 0.0
        %1413 = vmatpush2.msra.mxu0 0.0
        %1414 = vmatprep.subr.mxu0 0.0
        %1415 = vmatpush2.msra.mxu0 0.0
        %1416 = vmatprep.subr.mxu0 0.0
        %1417 = vmatpush2.msra.mxu0 0.0
        %1418 = vmatprep.subr.mxu0 0.0
        %1419 = vmatpush2.msra.mxu0 0.0
        %1420 = vmatprep.subr.mxu0 0.0
        %1421 = vmatpush2.msra.mxu0 0.0
        %1422 = vmatprep.subr.mxu0 0.0
        %1423 = vmatpush2.msra.mxu0 0.0
        %1424 = vmatprep.subr.mxu0 0.0
        %1425 = vmatpush2.msra.mxu0 0.0
        %1426 = vmatprep.subr.mxu0 0.0
        %1427 = vmatpush2.msra.mxu0 0.0
        %1428 = vmatprep.subr.mxu0 0.0
        %1429 = vmatpush2.msra.mxu0 0.0
        %1430 = vmatprep.subr.mxu0 0.0
        %1431 = vmatpush2.msra.mxu0 0.0
        %1432 = vmatprep.subr.mxu0 0.0
        %1433 = vmatpush2.msra.mxu0 0.0
        %1434 = vmatprep.subr.mxu0 0.0
        %1435 = vmatpush2.msra.mxu0 0.0
        %1436 = vmatprep.subr.mxu0 0.0
        %1437 = vmatpush2.msra.mxu0 0.0
        %1438 = vmatprep.mubr.f32.mxu0 0.0
        %1439 = vmatmul.mubr.f32.gmra.mxu0 %v1369
        %v1440 = vpop.f32.mrf.mxu0
        %v1441 = vadd.f32 0.0, %v1440
        %v1442 = vpop.f32.mrf.mxu0
        %1443 = vmatprep.mubr.f32.mxu0 0.0
        %1444 = vmatmul.mubr.f32.gmra.mxu0 %v1372
        %v1445 = vpop.f32.mrf.mxu0
        %v1446 = vadd.f32 0.0, %v1445
        %v1447 = vpop.f32.mrf.mxu0
        %1448 = vdwg.mxu0
        %v1450 = vsel %vm687, %v1441, 0
        %v1453 = vsel %vm687, %v1446, 0
        %1455 = vmatprep.subr.mxu0 0.0
        %1456 = vmatpush1.msra.mxu0 0.0
        %1457 = vmatprep.subr.mxu0 0.0
        %1458 = vmatpush1.msra.mxu0 0.0
        %1459 = vmatprep.subr.mxu0 0.0
        %1460 = vmatpush1.msra.mxu0 0.0
        %1461 = vmatprep.subr.mxu0 0.0
        %1462 = vmatpush1.msra.mxu0 0.0
        %1463 = vmatprep.subr.mxu0 0.0
        %1464 = vmatpush1.msra.mxu0 0.0
        %1465 = vmatprep.subr.mxu0 0.0
        %1466 = vmatpush1.msra.mxu0 0.0
        %1467 = vmatprep.subr.mxu0 0.0
        %1468 = vmatpush1.msra.mxu0 0.0
        %1469 = vmatprep.subr.mxu0 0.0
        %1470 = vmatpush1.msra.mxu0 0.0
        %1471 = vmatprep.subr.mxu0 0.0
        %1472 = vmatpush1.msra.mxu0 0.0
        %1473 = vmatprep.subr.mxu0 0.0
        %1474 = vmatpush1.msra.mxu0 0.0
        %1475 = vmatprep.subr.mxu0 0.0
        %1476 = vmatpush1.msra.mxu0 0.0
        %1477 = vmatprep.subr.mxu0 0.0
        %1478 = vmatpush1.msra.mxu0 0.0
        %1479 = vmatprep.subr.mxu0 0.0
        %1480 = vmatpush1.msra.mxu0 0.0
        %1481 = vmatprep.subr.mxu0 0.0
        %1482 = vmatpush1.msra.mxu0 0.0
        %1483 = vmatprep.subr.mxu0 0.0
        %1484 = vmatpush1.msra.mxu0 0.0
        %1485 = vmatprep.subr.mxu0 0.0
        %1486 = vmatpush1.msra.mxu0 %v670
        %1487 = vmatprep.subr.mxu0 0.0
        %1488 = vmatpush2.msra.mxu0 0.0
        %1489 = vmatprep.subr.mxu0 0.0
        %1490 = vmatpush2.msra.mxu0 0.0
        %1491 = vmatprep.subr.mxu0 0.0
        %1492 = vmatpush2.msra.mxu0 0.0
        %1493 = vmatprep.subr.mxu0 0.0
        %1494 = vmatpush2.msra.mxu0 0.0
        %1495 = vmatprep.subr.mxu0 0.0
        %1496 = vmatpush2.msra.mxu0 0.0
        %1497 = vmatprep.subr.mxu0 0.0
        %1498 = vmatpush2.msra.mxu0 0.0
        %1499 = vmatprep.subr.mxu0 0.0
        %1500 = vmatpush2.msra.mxu0 0.0
        %1501 = vmatprep.subr.mxu0 0.0
        %1502 = vmatpush2.msra.mxu0 0.0
        %1503 = vmatprep.subr.mxu0 0.0
        %1504 = vmatpush2.msra.mxu0 0.0
        %1505 = vmatprep.subr.mxu0 0.0
        %1506 = vmatpush2.msra.mxu0 0.0
        %1507 = vmatprep.subr.mxu0 0.0
        %1508 = vmatpush2.msra.mxu0 0.0
        %1509 = vmatprep.subr.mxu0 0.0
        %1510 = vmatpush2.msra.mxu0 0.0
        %1511 = vmatprep.subr.mxu0 0.0
        %1512 = vmatpush2.msra.mxu0 0.0
        %1513 = vmatprep.subr.mxu0 0.0
        %1514 = vmatpush2.msra.mxu0 0.0
        %1515 = vmatprep.subr.mxu0 0.0
        %1516 = vmatpush2.msra.mxu0 0.0
        %1517 = vmatprep.subr.mxu0 0.0
        %1518 = vmatpush2.msra.mxu0 0.0
        %1519 = vmatprep.mubr.f32.mxu0 0.0
        %1520 = vmatmul.mubr.f32.gmra.mxu0 %v1450
        %v1521 = vpop.f32.mrf.mxu0
        %v1522 = vadd.f32 0.0, %v1521
        %v1523 = vpop.f32.mrf.mxu0
        %1524 = vmatprep.mubr.f32.mxu0 0.0
        %1525 = vmatmul.mubr.f32.gmra.mxu0 %v1453
        %v1526 = vpop.f32.mrf.mxu0
        %v1527 = vadd.f32 0.0, %v1526
        %v1528 = vpop.f32.mrf.mxu0
        %1529 = vdwg.mxu0
        %v1530 = vadd.f32 %v1247, %v1522
        %v1531 = vadd.f32 %v1248, %v1527
        %1532 = vrot.lane.b32.xlu0 %v679, 104
        %v1533 = vpop.permute.xlu0 %1532
        %1534 = vrot.lane.b32.xlu0 %v680, 104
        %v1535 = vpop.permute.xlu0 %1534
        %1536 = vrot.lane.b32.xlu0 %v660, 72
        %v1537 = vpop.permute.xlu0 %1536
        %1538 = vrot.lane.b32.xlu0 %v665, 72
        %v1539 = vpop.permute.xlu0 %1538
        %v1540 = vsel %vm687, %v1533, 0
        %v1542 = vsel %vm687, %v1535, 0
        %v1544 = vsel %vm687, %v1537, 0
        %v1546 = vsel %vm687, %v1539, 0
        %1548 = vmatprep.subr.mxu0 0.0
        %1549 = vmatpush1.xpose.msra.mxu0 0.0
        %1550 = vmatprep.subr.mxu0 0.0
        %1551 = vmatpush1.xpose.msra.mxu0 0.0
        %1552 = vmatprep.subr.mxu0 0.0
        %1553 = vmatpush1.xpose.msra.mxu0 0.0
        %1554 = vmatprep.subr.mxu0 0.0
        %1555 = vmatpush1.xpose.msra.mxu0 0.0
        %1556 = vmatprep.subr.mxu0 0.0
        %1557 = vmatpush1.xpose.msra.mxu0 0.0
        %1558 = vmatprep.subr.mxu0 0.0
        %1559 = vmatpush1.xpose.msra.mxu0 0.0
        %1560 = vmatprep.subr.mxu0 0.0
        %1561 = vmatpush1.xpose.msra.mxu0 0.0
        %1562 = vmatprep.subr.mxu0 0.0
        %1563 = vmatpush1.xpose.msra.mxu0 0.0
        %1564 = vmatprep.subr.mxu0 0.0
        %1565 = vmatpush1.xpose.msra.mxu0 0.0
        %1566 = vmatprep.subr.mxu0 0.0
        %1567 = vmatpush1.xpose.msra.mxu0 0.0
        %1568 = vmatprep.subr.mxu0 0.0
        %1569 = vmatpush1.xpose.msra.mxu0 0.0
        %1570 = vmatprep.subr.mxu0 0.0
        %1571 = vmatpush1.xpose.msra.mxu0 0.0
        %1572 = vmatprep.subr.mxu0 0.0
        %1573 = vmatpush1.xpose.msra.mxu0 0.0
        %1574 = vmatprep.subr.mxu0 0.0
        %1575 = vmatpush1.xpose.msra.mxu0 0.0
        %1576 = vmatprep.subr.mxu0 0.0
        %1577 = vmatpush1.xpose.msra.mxu0 %v1546
        %1578 = vmatprep.subr.mxu0 0.0
        %1579 = vmatpush1.xpose.msra.mxu0 %v1544
        %1580 = vmatprep.subr.mxu0 0.0
        %1581 = vmatpush2.xpose.msra.mxu0 0.0
        %1582 = vmatprep.subr.mxu0 0.0
        %1583 = vmatpush2.xpose.msra.mxu0 0.0
        %1584 = vmatprep.subr.mxu0 0.0
        %1585 = vmatpush2.xpose.msra.mxu0 0.0
        %1586 = vmatprep.subr.mxu0 0.0
        %1587 = vmatpush2.xpose.msra.mxu0 0.0
        %1588 = vmatprep.subr.mxu0 0.0
        %1589 = vmatpush2.xpose.msra.mxu0 0.0
        %1590 = vmatprep.subr.mxu0 0.0
        %1591 = vmatpush2.xpose.msra.mxu0 0.0
        %1592 = vmatprep.subr.mxu0 0.0
        %1593 = vmatpush2.xpose.msra.mxu0 0.0
        %1594 = vmatprep.subr.mxu0 0.0
        %1595 = vmatpush2.xpose.msra.mxu0 0.0
        %1596 = vmatprep.subr.mxu0 0.0
        %1597 = vmatpush2.xpose.msra.mxu0 0.0
        %1598 = vmatprep.subr.mxu0 0.0
        %1599 = vmatpush2.xpose.msra.mxu0 0.0
        %1600 = vmatprep.subr.mxu0 0.0
        %1601 = vmatpush2.xpose.msra.mxu0 0.0
        %1602 = vmatprep.subr.mxu0 0.0
        %1603 = vmatpush2.xpose.msra.mxu0 0.0
        %1604 = vmatprep.subr.mxu0 0.0
        %1605 = vmatpush2.xpose.msra.mxu0 0.0
        %1606 = vmatprep.subr.mxu0 0.0
        %1607 = vmatpush2.xpose.msra.mxu0 0.0
        %1608 = vmatprep.subr.mxu0 0.0
        %1609 = vmatpush2.xpose.msra.mxu0 0.0
        %1610 = vmatprep.subr.mxu0 0.0
        %1611 = vmatpush2.xpose.msra.mxu0 0.0
        %1612 = vmatprep.mubr.f32.mxu0 0.0
        %1613 = vmatmul.mubr.f32.gmra.mxu0 %v1540
        %v1614 = vpop.f32.mrf.mxu0
        %v1615 = vadd.f32 %v672, %v1614
        %v1616 = vpop.f32.mrf.mxu0
        %1617 = vmatprep.mubr.f32.mxu0 0.0
        %1618 = vmatmul.mubr.f32.gmra.mxu0 %v1542
        %v1619 = vpop.f32.mrf.mxu0
        %v1620 = vadd.f32 %v673, %v1619
        %v1621 = vpop.f32.mrf.mxu0
        %1622 = vdwg.mxu0
        %v1623 = vsel %vm773, %v1615, -inf
        %1624 = vmax.xlane.f32.xlu0 %v1623
        %v1625 = vpop.xlane.xlu0 %1624
        %v1626 = vsel %vm773, %v1620, -inf
        %1627 = vmax.xlane.f32.xlu0 %v1626
        %v1628 = vpop.xlane.xlu0 %1627
        %v1629 = vsub.f32 %v1615, %v1625
        %v1630 = vsub.f32 %v1620, %v1628
        %v1631 = vmul.f32 %v1629, 1.442695
        %v1632 = vpow.pop %v1631
        %v1633 = vmul.f32 %v1630, 1.442695
        %v1634 = vpow.pop %v1633
        %v1635 = vsel %vm773, %v1632, 0.0
        %1636 = vadd.xlane.f32.xlu0 %v1635
        %v1637 = vpop.xlane.xlu0 %1636
        %v1638 = vsel %vm773, %v1634, 0.0
        %1639 = vadd.xlane.f32.xlu0 %v1638
        %v1640 = vpop.xlane.xlu0 %1639
        %v1641 = vrcp.pop %v1637
        %v1642 = vmul.f32 %v1632, %v1641
        %v1643 = vrcp.pop %v1640
        %v1644 = vmul.f32 %v1634, %v1643
        %1645 = vrot.lane.b32.xlu0 %v660, 40
        %v1646 = vpop.permute.xlu0 %1645
        %1647 = vrot.lane.b32.xlu0 %v665, 40
        %v1648 = vpop.permute.xlu0 %1647
        %v1652 = vsel %vm773, %v1642, 0
        %v1655 = vsel %vm773, %v1644, 0
        %1657 = vmatprep.subr.mxu0 0.0
        %1658 = vmatpush1.msra.mxu0 0.0
        %1659 = vmatprep.subr.mxu0 0.0
        %1660 = vmatpush1.msra.mxu0 0.0
        %1661 = vmatprep.subr.mxu0 0.0
        %1662 = vmatpush1.msra.mxu0 0.0
        %1663 = vmatprep.subr.mxu0 0.0
        %1664 = vmatpush1.msra.mxu0 0.0
        %1665 = vmatprep.subr.mxu0 0.0
        %1666 = vmatpush1.msra.mxu0 0.0
        %1667 = vmatprep.subr.mxu0 0.0
        %1668 = vmatpush1.msra.mxu0 0.0
        %1669 = vmatprep.subr.mxu0 0.0
        %1670 = vmatpush1.msra.mxu0 0.0
        %1671 = vmatprep.subr.mxu0 0.0
        %1672 = vmatpush1.msra.mxu0 0.0
        %1673 = vmatprep.subr.mxu0 0.0
        %1674 = vmatpush1.msra.mxu0 0.0
        %1675 = vmatprep.subr.mxu0 0.0
        %1676 = vmatpush1.msra.mxu0 0.0
        %1677 = vmatprep.subr.mxu0 0.0
        %1678 = vmatpush1.msra.mxu0 0.0
        %1679 = vmatprep.subr.mxu0 0.0
        %1680 = vmatpush1.msra.mxu0 0.0
        %1681 = vmatprep.subr.mxu0 0.0
        %1682 = vmatpush1.msra.mxu0 0.0
        %1683 = vmatprep.subr.mxu0 0.0
        %1684 = vmatpush1.msra.mxu0 0.0
        %1685 = vmatprep.subr.mxu0 0.0
        %1686 = vmatpush1.msra.mxu0 %v1648
        %1687 = vmatprep.subr.mxu0 0.0
        %1688 = vmatpush1.msra.mxu0 %v1646
        %1689 = vmatprep.subr.mxu0 0.0
        %1690 = vmatpush2.msra.mxu0 0.0
        %1691 = vmatprep.subr.mxu0 0.0
        %1692 = vmatpush2.msra.mxu0 0.0
        %1693 = vmatprep.subr.mxu0 0.0
        %1694 = vmatpush2.msra.mxu0 0.0
        %1695 = vmatprep.subr.mxu0 0.0
        %1696 = vmatpush2.msra.mxu0 0.0
        %1697 = vmatprep.subr.mxu0 0.0
        %1698 = vmatpush2.msra.mxu0 0.0
        %1699 = vmatprep.subr.mxu0 0.0
        %1700 = vmatpush2.msra.mxu0 0.0
        %1701 = vmatprep.subr.mxu0 0.0
        %1702 = vmatpush2.msra.mxu0 0.0
        %1703 = vmatprep.subr.mxu0 0.0
        %1704 = vmatpush2.msra.mxu0 0.0
        %1705 = vmatprep.subr.mxu0 0.0
        %1706 = vmatpush2.msra.mxu0 0.0
        %1707 = vmatprep.subr.mxu0 0.0
        %1708 = vmatpush2.msra.mxu0 0.0
        %1709 = vmatprep.subr.mxu0 0.0
        %1710 = vmatpush2.msra.mxu0 0.0
        %1711 = vmatprep.subr.mxu0 0.0
        %1712 = vmatpush2.msra.mxu0 0.0
        %1713 = vmatprep.subr.mxu0 0.0
        %1714 = vmatpush2.msra.mxu0 0.0
        %1715 = vmatprep.subr.mxu0 0.0
        %1716 = vmatpush2.msra.mxu0 0.0
        %1717 = vmatprep.subr.mxu0 0.0
        %1718 = vmatpush2.msra.mxu0 0.0
        %1719 = vmatprep.subr.mxu0 0.0
        %1720 = vmatpush2.msra.mxu0 0.0
        %1721 = vmatprep.mubr.f32.mxu0 0.0
        %1722 = vmatmul.mubr.f32.gmra.mxu0 %v1652
        %v1723 = vpop.f32.mrf.mxu0
        %v1724 = vadd.f32 0.0, %v1723
        %v1725 = vpop.f32.mrf.mxu0
        %1726 = vmatprep.mubr.f32.mxu0 0.0
        %1727 = vmatmul.mubr.f32.gmra.mxu0 %v1655
        %v1728 = vpop.f32.mrf.mxu0
        %v1729 = vadd.f32 0.0, %v1728
        %v1730 = vpop.f32.mrf.mxu0
        %1731 = vdwg.mxu0
        %v1733 = vsel %vm687, %v1724, 0
        %v1736 = vsel %vm687, %v1729, 0
        %1738 = vmatprep.subr.mxu0 0.0
        %1739 = vmatpush1.msra.mxu0 0.0
        %1740 = vmatprep.subr.mxu0 0.0
        %1741 = vmatpush1.msra.mxu0 0.0
        %1742 = vmatprep.subr.mxu0 0.0
        %1743 = vmatpush1.msra.mxu0 0.0
        %1744 = vmatprep.subr.mxu0 0.0
        %1745 = vmatpush1.msra.mxu0 0.0
        %1746 = vmatprep.subr.mxu0 0.0
        %1747 = vmatpush1.msra.mxu0 0.0
        %1748 = vmatprep.subr.mxu0 0.0
        %1749 = vmatpush1.msra.mxu0 0.0
        %1750 = vmatprep.subr.mxu0 0.0
        %1751 = vmatpush1.msra.mxu0 0.0
        %1752 = vmatprep.subr.mxu0 0.0
        %1753 = vmatpush1.msra.mxu0 0.0
        %1754 = vmatprep.subr.mxu0 0.0
        %1755 = vmatpush1.msra.mxu0 0.0
        %1756 = vmatprep.subr.mxu0 0.0
        %1757 = vmatpush1.msra.mxu0 0.0
        %1758 = vmatprep.subr.mxu0 0.0
        %1759 = vmatpush1.msra.mxu0 0.0
        %1760 = vmatprep.subr.mxu0 0.0
        %1761 = vmatpush1.msra.mxu0 0.0
        %1762 = vmatprep.subr.mxu0 0.0
        %1763 = vmatpush1.msra.mxu0 0.0
        %1764 = vmatprep.subr.mxu0 0.0
        %1765 = vmatpush1.msra.mxu0 0.0
        %1766 = vmatprep.subr.mxu0 0.0
        %1767 = vmatpush1.msra.mxu0 0.0
        %1768 = vmatprep.subr.mxu0 0.0
        %1769 = vmatpush1.msra.mxu0 %v671
        %1770 = vmatprep.subr.mxu0 0.0
        %1771 = vmatpush2.msra.mxu0 0.0
        %1772 = vmatprep.subr.mxu0 0.0
        %1773 = vmatpush2.msra.mxu0 0.0
        %1774 = vmatprep.subr.mxu0 0.0
        %1775 = vmatpush2.msra.mxu0 0.0
        %1776 = vmatprep.subr.mxu0 0.0
        %1777 = vmatpush2.msra.mxu0 0.0
        %1778 = vmatprep.subr.mxu0 0.0
        %1779 = vmatpush2.msra.mxu0 0.0
        %1780 = vmatprep.subr.mxu0 0.0
        %1781 = vmatpush2.msra.mxu0 0.0
        %1782 = vmatprep.subr.mxu0 0.0
        %1783 = vmatpush2.msra.mxu0 0.0
        %1784 = vmatprep.subr.mxu0 0.0
        %1785 = vmatpush2.msra.mxu0 0.0
        %1786 = vmatprep.subr.mxu0 0.0
        %1787 = vmatpush2.msra.mxu0 0.0
        %1788 = vmatprep.subr.mxu0 0.0
        %1789 = vmatpush2.msra.mxu0 0.0
        %1790 = vmatprep.subr.mxu0 0.0
        %1791 = vmatpush2.msra.mxu0 0.0
        %1792 = vmatprep.subr.mxu0 0.0
        %1793 = vmatpush2.msra.mxu0 0.0
        %1794 = vmatprep.subr.mxu0 0.0
        %1795 = vmatpush2.msra.mxu0 0.0
        %1796 = vmatprep.subr.mxu0 0.0
        %1797 = vmatpush2.msra.mxu0 0.0
        %1798 = vmatprep.subr.mxu0 0.0
        %1799 = vmatpush2.msra.mxu0 0.0
        %1800 = vmatprep.subr.mxu0 0.0
        %1801 = vmatpush2.msra.mxu0 0.0
        %1802 = vmatprep.mubr.f32.mxu0 0.0
        %1803 = vmatmul.mubr.f32.gmra.mxu0 %v1733
        %v1804 = vpop.f32.mrf.mxu0
        %v1805 = vadd.f32 0.0, %v1804
        %v1806 = vpop.f32.mrf.mxu0
        %1807 = vmatprep.mubr.f32.mxu0 0.0
        %1808 = vmatmul.mubr.f32.gmra.mxu0 %v1736
        %v1809 = vpop.f32.mrf.mxu0
        %v1810 = vadd.f32 0.0, %v1809
        %v1811 = vpop.f32.mrf.mxu0
        %1812 = vdwg.mxu0
        %v1813 = vadd.f32 %v1530, %v1805
        %v1814 = vadd.f32 %v1531, %v1810
        %v1815 = vadd.f32 %v575, %v1813
        %v1816 = vadd.f32 %v576, %v1814
        %v1817 = vsel %vm586, %v1815, 0.0
        %1818 = vadd.xlane.f32.xlu0 %v1817
        %v1819 = vpop.xlane.xlu0 %1818
        %v1820 = vsel %vm586, %v1816, 0.0
        %1821 = vadd.xlane.f32.xlu0 %v1820
        %v1822 = vpop.xlane.xlu0 %1821
        %v1823 = vrcp.pop 32.0
        %v1824 = vmul.f32 %v1819, %v1823
        %v1825 = vmul.f32 %v1822, %v1823
        %v1826 = vsub.f32 %v1815, %v1824
        %v1827 = vsub.f32 %v1816, %v1825
        %v1828 = vmul.f32 %v1826, %v1826
        %v1829 = vmul.f32 %v1827, %v1827
        %v1830 = vsel %vm586, %v1828, 0.0
        %1831 = vadd.xlane.f32.xlu0 %v1830
        %v1832 = vpop.xlane.xlu0 %1831
        %v1833 = vsel %vm586, %v1829, 0.0
        %1834 = vadd.xlane.f32.xlu0 %v1833
        %v1835 = vpop.xlane.xlu0 %1834
        %v1836 = vmul.f32 %v1832, %v1823
        %v1837 = vmul.f32 %v1835, %v1823
        %v1838 = vadd.f32 %v1836, 1e-05
        %v1839 = vadd.f32 %v1837, 1e-05
        %v1840 = vrsqrt.pop %v1838
        %v1841 = vrsqrt.pop %v1839
        %v1842 = vmul.f32 %v1826, %v1840
        %v1843 = vmul.f32 %v1827, %v1841
        %v1844 = vlaneseq
        %v1845 = vshrl.u32 %v1844, 7
        %v1846 = vsub.s32 2, %v1845
        %v1847 = vrot.slane %v577, %v1846
        %v1848 = vmul.f32 %v1842, %v1847
        %v1849 = vmul.f32 %v1843, %v1847
        %v1850 = vlaneseq
        %v1851 = vshrl.u32 %v1850, 7
        %v1852 = vsub.s32 3, %v1851
        %v1853 = vrot.slane %v577, %v1852
        %v1854 = vadd.f32 %v1848, %v1853
        %v1855 = vadd.f32 %v1849, %v1853
        %v1856 = vpack.c.bf16 %v1855, %v1854
        %v1857 = vld [vmem:[%s453] sm:$0xff]
        %v1858 = vld [vmem:[%s453 + $0x8] sm:$0xff]
        %v1859 = vld [vmem:[%s453 + $0x10] sm:$0xff]
        %v1860 = vld [vmem:[%s453 + $0x18] sm:$0xff]
        %v1861 = vld [vmem:[%s453 + $0x20] sm:$0xff]
        %v1862 = vld [vmem:[%s453 + $0x28] sm:$0xff]
        %v1863 = vld [vmem:[%s453 + $0x30] sm:$0xff]
        %v1864 = vld [vmem:[%s453 + $0x38] sm:$0xff]
        %v1865 = vld [vmem:[%s453 + $0x40] sm:$0xff]
        %v1866 = vld [vmem:[%s453 + $0x48] sm:$0xff]
        %v1867 = vld [vmem:[%s453 + $0x50] sm:$0xff]
        %v1868 = vld [vmem:[%s453 + $0x58] sm:$0xff]
        %v1869 = vld [vmem:[%s453 + $0x60] sm:$0xff]
        %v1870 = vld [vmem:[%s453 + $0x68] sm:$0xff]
        %v1871 = vld [vmem:[%s453 + $0x70] sm:$0xff]
        %v1872 = vld [vmem:[%s453 + $0x78] sm:$0xff]
        %v1873 = vld [vmem:[%s453 + $0x80] sm:$0xff]
        %v1874 = vld [vmem:[%s453 + $0x88] sm:$0xff]
        %v1875 = vld [vmem:[%s453 + $0x90] sm:$0xff]
        %v1876 = vld [vmem:[%s453 + $0x98] sm:$0xff]
        %v1877 = vld [vmem:[%s453 + $0xa0] sm:$0xff]
        %v1878 = vld [vmem:[%s453 + $0xa8] sm:$0xff]
        %v1879 = vld [vmem:[%s453 + $0xb0] sm:$0xff]
        %v1880 = vld [vmem:[%s453 + $0xb8] sm:$0xff]
        %v1881 = vld [vmem:[%s453 + $0xc0] sm:$0xff]
        %v1882 = vld [vmem:[%s453 + $0xc8] sm:$0xff]
        %v1883 = vld [vmem:[%s453 + $0xd0] sm:$0xff]
        %v1884 = vld [vmem:[%s453 + $0xd8] sm:$0xff]
        %v1885 = vld [vmem:[%s453 + $0xe0] sm:$0xff]
        %v1886 = vld [vmem:[%s453 + $0xe8] sm:$0xff]
        %v1887 = vld [vmem:[%s453 + $0xf0] sm:$0xff]
        %v1888 = vld [vmem:[%s453 + $0xf8] sm:$0xff]
        %v1889 = vld [vmem:[%s462] sm:$0xff]
        %v1890 = vld [vmem:[%s462 + $0x8] sm:$0xff]
        %v1893 = vlaneseq
        %v1894 = vshrl.u32 %v1893, 7
        %v1895 = vsub.s32 0, %v1894
        %v1896 = vrot.slane %v1889, %v1895
        %v1897 = vlaneseq
        %v1898 = vshrl.u32 %v1897, 7
        %v1899 = vsub.s32 1, %v1898
        %v1900 = vrot.slane %v1889, %v1899
        %v1901 = vlaneseq
        %v1902 = vshrl.u32 %v1901, 7
        %v1903 = vsub.s32 2, %v1902
        %v1904 = vrot.slane %v1889, %v1903
        %v1905 = vlaneseq
        %v1906 = vshrl.u32 %v1905, 7
        %v1907 = vsub.s32 3, %v1906
        %v1908 = vrot.slane %v1889, %v1907
        %v1909 = vlaneseq
        %v1910 = vshrl.u32 %v1909, 7
        %v1911 = vsub.s32 4, %v1910
        %v1912 = vrot.slane %v1889, %v1911
        %v1913 = vlaneseq
        %v1914 = vshrl.u32 %v1913, 7
        %v1915 = vsub.s32 5, %v1914
        %v1916 = vrot.slane %v1889, %v1915
        %v1917 = vlaneseq
        %v1918 = vshrl.u32 %v1917, 7
        %v1919 = vsub.s32 6, %v1918
        %v1920 = vrot.slane %v1889, %v1919
        %v1921 = vlaneseq
        %v1922 = vshrl.u32 %v1921, 7
        %v1923 = vsub.s32 7, %v1922
        %v1924 = vrot.slane %v1889, %v1923
        %v1925 = vlaneseq
        %v1926 = vshrl.u32 %v1925, 7
        %v1927 = vsub.s32 0, %v1926
        %v1928 = vrot.slane %v1890, %v1927
        %v1929 = vlaneseq
        %v1930 = vshrl.u32 %v1929, 7
        %v1931 = vsub.s32 1, %v1930
        %v1932 = vrot.slane %v1890, %v1931
        %v1933 = vlaneseq
        %v1934 = vshrl.u32 %v1933, 7
        %v1935 = vsub.s32 2, %v1934
        %v1936 = vrot.slane %v1890, %v1935
        %v1937 = vlaneseq
        %v1938 = vshrl.u32 %v1937, 7
        %v1939 = vsub.s32 3, %v1938
        %v1940 = vrot.slane %v1890, %v1939
        %v1941 = vlaneseq
        %v1942 = vshrl.u32 %v1941, 7
        %v1943 = vsub.s32 4, %v1942
        %v1944 = vrot.slane %v1890, %v1943
        %v1945 = vlaneseq
        %v1946 = vshrl.u32 %v1945, 7
        %v1947 = vsub.s32 5, %v1946
        %v1948 = vrot.slane %v1890, %v1947
        %v1949 = vlaneseq
        %v1950 = vshrl.u32 %v1949, 7
        %v1951 = vsub.s32 6, %v1950
        %v1952 = vrot.slane %v1890, %v1951
        %v1953 = vlaneseq
        %v1954 = vshrl.u32 %v1953, 7
        %v1955 = vsub.s32 7, %v1954
        %v1956 = vrot.slane %v1890, %v1955
        %v2005 = vunpack.c.l.b16 %v1857
        %v2006 = vunpack.c.h.b16 %v1857
        %v2007 = vunpack.c.l.b16 %v1858
        %v2008 = vunpack.c.h.b16 %v1858
        %v2009 = vunpack.c.l.b16 %v1859
        %v2010 = vunpack.c.h.b16 %v1859
        %v2011 = vunpack.c.l.b16 %v1860
        %v2012 = vunpack.c.h.b16 %v1860
        %v2013 = vunpack.c.l.b16 %v1861
        %v2014 = vunpack.c.h.b16 %v1861
        %v2015 = vunpack.c.l.b16 %v1862
        %v2016 = vunpack.c.h.b16 %v1862
        %v2017 = vunpack.c.l.b16 %v1863
        %v2018 = vunpack.c.h.b16 %v1863
        %v2019 = vunpack.c.l.b16 %v1864
        %v2020 = vunpack.c.h.b16 %v1864
        %v2021 = vunpack.c.l.b16 %v1865
        %v2022 = vunpack.c.h.b16 %v1865
        %v2023 = vunpack.c.l.b16 %v1866
        %v2024 = vunpack.c.h.b16 %v1866
        %v2025 = vunpack.c.l.b16 %v1867
        %v2026 = vunpack.c.h.b16 %v1867
        %v2027 = vunpack.c.l.b16 %v1868
        %v2028 = vunpack.c.h.b16 %v1868
        %v2029 = vunpack.c.l.b16 %v1869
        %v2030 = vunpack.c.h.b16 %v1869
        %v2031 = vunpack.c.l.b16 %v1870
        %v2032 = vunpack.c.h.b16 %v1870
        %v2033 = vunpack.c.l.b16 %v1871
        %v2034 = vunpack.c.h.b16 %v1871
        %v2035 = vunpack.c.l.b16 %v1872
        %v2036 = vunpack.c.h.b16 %v1872
        %v2037 = vunpack.c.l.b16 %v1873
        %v2038 = vunpack.c.h.b16 %v1873
        %v2039 = vunpack.c.l.b16 %v1874
        %v2040 = vunpack.c.h.b16 %v1874
        %v2041 = vunpack.c.l.b16 %v1875
        %v2042 = vunpack.c.h.b16 %v1875
        %v2043 = vunpack.c.l.b16 %v1876
        %v2044 = vunpack.c.h.b16 %v1876
        %v2045 = vunpack.c.l.b16 %v1877
        %v2046 = vunpack.c.h.b16 %v1877
        %v2047 = vunpack.c.l.b16 %v1878
        %v2048 = vunpack.c.h.b16 %v1878
        %v2049 = vunpack.c.l.b16 %v1879
        %v2050 = vunpack.c.h.b16 %v1879
        %v2051 = vunpack.c.l.b16 %v1880
        %v2052 = vunpack.c.h.b16 %v1880
        %v2053 = vunpack.c.l.b16 %v1881
        %v2054 = vunpack.c.h.b16 %v1881
        %v2055 = vunpack.c.l.b16 %v1882
        %v2056 = vunpack.c.h.b16 %v1882
        %v2057 = vunpack.c.l.b16 %v1883
        %v2058 = vunpack.c.h.b16 %v1883
        %v2059 = vunpack.c.l.b16 %v1884
        %v2060 = vunpack.c.h.b16 %v1884
        %v2061 = vunpack.c.l.b16 %v1885
        %v2062 = vunpack.c.h.b16 %v1885
        %v2063 = vunpack.c.l.b16 %v1886
        %v2064 = vunpack.c.h.b16 %v1886
        %v2065 = vunpack.c.l.b16 %v1887
        %v2066 = vunpack.c.h.b16 %v1887
        %v2067 = vunpack.c.l.b16 %v1888
        %v2068 = vunpack.c.h.b16 %v1888
        %v2069 = vpack.c.b16 %v2021, %v2005
        %v2070 = vpack.c.b16 %v2022, %v2006
        %v2071 = vpack.c.b16 %v2023, %v2007
        %v2072 = vpack.c.b16 %v2024, %v2008
        %v2073 = vpack.c.b16 %v2025, %v2009
        %v2074 = vpack.c.b16 %v2026, %v2010
        %v2075 = vpack.c.b16 %v2027, %v2011
        %v2076 = vpack.c.b16 %v2028, %v2012
        %v2077 = vpack.c.b16 %v2029, %v2013
        %v2078 = vpack.c.b16 %v2030, %v2014
        %v2079 = vpack.c.b16 %v2031, %v2015
        %v2080 = vpack.c.b16 %v2032, %v2016
        %v2081 = vpack.c.b16 %v2033, %v2017
        %v2082 = vpack.c.b16 %v2034, %v2018
        %v2083 = vpack.c.b16 %v2035, %v2019
        %v2084 = vpack.c.b16 %v2036, %v2020
        %v2085 = vpack.c.b16 %v2053, %v2037
        %v2086 = vpack.c.b16 %v2054, %v2038
        %v2087 = vpack.c.b16 %v2055, %v2039
        %v2088 = vpack.c.b16 %v2056, %v2040
        %v2089 = vpack.c.b16 %v2057, %v2041
        %v2090 = vpack.c.b16 %v2058, %v2042
        %v2091 = vpack.c.b16 %v2059, %v2043
        %v2092 = vpack.c.b16 %v2060, %v2044
        %v2093 = vpack.c.b16 %v2061, %v2045
        %v2094 = vpack.c.b16 %v2062, %v2046
        %v2095 = vpack.c.b16 %v2063, %v2047
        %v2096 = vpack.c.b16 %v2064, %v2048
        %v2097 = vpack.c.b16 %v2065, %v2049
        %v2098 = vpack.c.b16 %v2066, %v2050
        %v2099 = vpack.c.b16 %v2067, %v2051
        %v2100 = vpack.c.b16 %v2068, %v2052
        %v2134 = vsel %vm586, %v1856, 0
        %2136 = vmatprep.subr.bf16.mxu0 0
        %2137 = vmatpush1.bf16.msra.mxu0 0
        %2138 = vmatprep.subr.bf16.mxu0 0
        %2139 = vmatpush1.bf16.msra.mxu0 0
        %2140 = vmatprep.subr.bf16.mxu0 0
        %2141 = vmatpush1.bf16.msra.mxu0 0
        %2142 = vmatprep.subr.bf16.mxu0 0
        %2143 = vmatpush1.bf16.msra.mxu0 0
        %2144 = vmatprep.subr.bf16.mxu0 0
        %2145 = vmatpush1.bf16.msra.mxu0 0
        %2146 = vmatprep.subr.bf16.mxu0 0
        %2147 = vmatpush1.bf16.msra.mxu0 0
        %2148 = vmatprep.subr.bf16.mxu0 %v2086
        %2149 = vmatpush1.bf16.msra.mxu0 %v2085
        %2150 = vmatprep.subr.bf16.mxu0 %v2070
        %2151 = vmatpush1.bf16.msra.mxu0 %v2069
        %2152 = vmatprep.subr.bf16.mxu0 0
        %2153 = vmatpush2.bf16.msra.mxu0 0
        %2154 = vmatprep.subr.bf16.mxu0 0
        %2155 = vmatpush2.bf16.msra.mxu0 0
        %2156 = vmatprep.subr.bf16.mxu0 0
        %2157 = vmatpush2.bf16.msra.mxu0 0
        %2158 = vmatprep.subr.bf16.mxu0 0
        %2159 = vmatpush2.bf16.msra.mxu0 0
        %2160 = vmatprep.subr.bf16.mxu0 0
        %2161 = vmatpush2.bf16.msra.mxu0 0
        %2162 = vmatprep.subr.bf16.mxu0 0
        %2163 = vmatpush2.bf16.msra.mxu0 0
        %2164 = vmatprep.subr.bf16.mxu0 0
        %2165 = vmatpush2.bf16.msra.mxu0 0
        %2166 = vmatprep.subr.bf16.mxu0 0
        %2167 = vmatpush2.bf16.msra.mxu0 0
        %2168 = vmatprep.mubr.bf16.mxu0 0
        %2169 = vmatmul.mubr.bf16.gmra.mxu0 %v2134
        %v2170 = vpop.f32.mrf.mxu0
        %v2171 = vadd.f32 %v1896, %v2170
        %v2172 = vpop.f32.mrf.mxu0
        %v2173 = vadd.f32 %v1900, %v2172
        %v2174 = vpop.f32.mrf.mxu0
        %v2175 = vadd.f32 %v1896, %v2174
        %v2176 = vpop.f32.mrf.mxu0
        %v2177 = vadd.f32 %v1900, %v2176
        %2178 = vdwg.mxu0
        %2179 = vmatprep.subr.bf16.mxu0 0
        %2180 = vmatpush1.bf16.msra.mxu0 0
        %2181 = vmatprep.subr.bf16.mxu0 0
        %2182 = vmatpush1.bf16.msra.mxu0 0
        %2183 = vmatprep.subr.bf16.mxu0 0
        %2184 = vmatpush1.bf16.msra.mxu0 0
        %2185 = vmatprep.subr.bf16.mxu0 0
        %2186 = vmatpush1.bf16.msra.mxu0 0
        %2187 = vmatprep.subr.bf16.mxu0 0
        %2188 = vmatpush1.bf16.msra.mxu0 0
        %2189 = vmatprep.subr.bf16.mxu0 0
        %2190 = vmatpush1.bf16.msra.mxu0 0
        %2191 = vmatprep.subr.bf16.mxu0 %v2088
        %2192 = vmatpush1.bf16.msra.mxu0 %v2087
        %2193 = vmatprep.subr.bf16.mxu0 %v2072
        %2194 = vmatpush1.bf16.msra.mxu0 %v2071
        %2195 = vmatprep.subr.bf16.mxu0 0
        %2196 = vmatpush2.bf16.msra.mxu0 0
        %2197 = vmatprep.subr.bf16.mxu0 0
        %2198 = vmatpush2.bf16.msra.mxu0 0
        %2199 = vmatprep.subr.bf16.mxu0 0
        %2200 = vmatpush2.bf16.msra.mxu0 0
        %2201 = vmatprep.subr.bf16.mxu0 0
        %2202 = vmatpush2.bf16.msra.mxu0 0
        %2203 = vmatprep.subr.bf16.mxu0 0
        %2204 = vmatpush2.bf16.msra.mxu0 0
        %2205 = vmatprep.subr.bf16.mxu0 0
        %2206 = vmatpush2.bf16.msra.mxu0 0
        %2207 = vmatprep.subr.bf16.mxu0 0
        %2208 = vmatpush2.bf16.msra.mxu0 0
        %2209 = vmatprep.subr.bf16.mxu0 0
        %2210 = vmatpush2.bf16.msra.mxu0 0
        %2211 = vmatprep.mubr.bf16.mxu0 0
        %2212 = vmatmul.mubr.bf16.gmra.mxu0 %v2134
        %v2213 = vpop.f32.mrf.mxu0
        %v2214 = vadd.f32 %v1904, %v2213
        %v2215 = vpop.f32.mrf.mxu0
        %v2216 = vadd.f32 %v1908, %v2215
        %v2217 = vpop.f32.mrf.mxu0
        %v2218 = vadd.f32 %v1904, %v2217
        %v2219 = vpop.f32.mrf.mxu0
        %v2220 = vadd.f32 %v1908, %v2219
        %2221 = vdwg.mxu0
        %2222 = vmatprep.subr.bf16.mxu0 0
        %2223 = vmatpush1.bf16.msra.mxu0 0
        %2224 = vmatprep.subr.bf16.mxu0 0
        %2225 = vmatpush1.bf16.msra.mxu0 0
        %2226 = vmatprep.subr.bf16.mxu0 0
        %2227 = vmatpush1.bf16.msra.mxu0 0
        %2228 = vmatprep.subr.bf16.mxu0 0
        %2229 = vmatpush1.bf16.msra.mxu0 0
        %2230 = vmatprep.subr.bf16.mxu0 0
        %2231 = vmatpush1.bf16.msra.mxu0 0
        %2232 = vmatprep.subr.bf16.mxu0 0
        %2233 = vmatpush1.bf16.msra.mxu0 0
        %2234 = vmatprep.subr.bf16.mxu0 %v2090
        %2235 = vmatpush1.bf16.msra.mxu0 %v2089
        %2236 = vmatprep.subr.bf16.mxu0 %v2074
        %2237 = vmatpush1.bf16.msra.mxu0 %v2073
        %2238 = vmatprep.subr.bf16.mxu0 0
        %2239 = vmatpush2.bf16.msra.mxu0 0
        %2240 = vmatprep.subr.bf16.mxu0 0
        %2241 = vmatpush2.bf16.msra.mxu0 0
        %2242 = vmatprep.subr.bf16.mxu0 0
        %2243 = vmatpush2.bf16.msra.mxu0 0
        %2244 = vmatprep.subr.bf16.mxu0 0
        %2245 = vmatpush2.bf16.msra.mxu0 0
        %2246 = vmatprep.subr.bf16.mxu0 0
        %2247 = vmatpush2.bf16.msra.mxu0 0
        %2248 = vmatprep.subr.bf16.mxu0 0
        %2249 = vmatpush2.bf16.msra.mxu0 0
        %2250 = vmatprep.subr.bf16.mxu0 0
        %2251 = vmatpush2.bf16.msra.mxu0 0
        %2252 = vmatprep.subr.bf16.mxu0 0
        %2253 = vmatpush2.bf16.msra.mxu0 0
        %2254 = vmatprep.mubr.bf16.mxu0 0
        %2255 = vmatmul.mubr.bf16.gmra.mxu0 %v2134
        %v2256 = vpop.f32.mrf.mxu0
        %v2257 = vadd.f32 %v1912, %v2256
        %v2258 = vpop.f32.mrf.mxu0
        %v2259 = vadd.f32 %v1916, %v2258
        %v2260 = vpop.f32.mrf.mxu0
        %v2261 = vadd.f32 %v1912, %v2260
        %v2262 = vpop.f32.mrf.mxu0
        %v2263 = vadd.f32 %v1916, %v2262
        %2264 = vdwg.mxu0
        %2265 = vmatprep.subr.bf16.mxu0 0
        %2266 = vmatpush1.bf16.msra.mxu0 0
        %2267 = vmatprep.subr.bf16.mxu0 0
        %2268 = vmatpush1.bf16.msra.mxu0 0
        %2269 = vmatprep.subr.bf16.mxu0 0
        %2270 = vmatpush1.bf16.msra.mxu0 0
        %2271 = vmatprep.subr.bf16.mxu0 0
        %2272 = vmatpush1.bf16.msra.mxu0 0
        %2273 = vmatprep.subr.bf16.mxu0 0
        %2274 = vmatpush1.bf16.msra.mxu0 0
        %2275 = vmatprep.subr.bf16.mxu0 0
        %2276 = vmatpush1.bf16.msra.mxu0 0
        %2277 = vmatprep.subr.bf16.mxu0 %v2092
        %2278 = vmatpush1.bf16.msra.mxu0 %v2091
        %2279 = vmatprep.subr.bf16.mxu0 %v2076
        %2280 = vmatpush1.bf16.msra.mxu0 %v2075
        %2281 = vmatprep.subr.bf16.mxu0 0
        %2282 = vmatpush2.bf16.msra.mxu0 0
        %2283 = vmatprep.subr.bf16.mxu0 0
        %2284 = vmatpush2.bf16.msra.mxu0 0
        %2285 = vmatprep.subr.bf16.mxu0 0
        %2286 = vmatpush2.bf16.msra.mxu0 0
        %2287 = vmatprep.subr.bf16.mxu0 0
        %2288 = vmatpush2.bf16.msra.mxu0 0
        %2289 = vmatprep.subr.bf16.mxu0 0
        %2290 = vmatpush2.bf16.msra.mxu0 0
        %2291 = vmatprep.subr.bf16.mxu0 0
        %2292 = vmatpush2.bf16.msra.mxu0 0
        %2293 = vmatprep.subr.bf16.mxu0 0
        %2294 = vmatpush2.bf16.msra.mxu0 0
        %2295 = vmatprep.subr.bf16.mxu0 0
        %2296 = vmatpush2.bf16.msra.mxu0 0
        %2297 = vmatprep.mubr.bf16.mxu0 0
        %2298 = vmatmul.mubr.bf16.gmra.mxu0 %v2134
        %v2299 = vpop.f32.mrf.mxu0
        %v2300 = vadd.f32 %v1920, %v2299
        %v2301 = vpop.f32.mrf.mxu0
        %v2302 = vadd.f32 %v1924, %v2301
        %v2303 = vpop.f32.mrf.mxu0
        %v2304 = vadd.f32 %v1920, %v2303
        %v2305 = vpop.f32.mrf.mxu0
        %v2306 = vadd.f32 %v1924, %v2305
        %2307 = vdwg.mxu0
        %2308 = vmatprep.subr.bf16.mxu0 0
        %2309 = vmatpush1.bf16.msra.mxu0 0
        %2310 = vmatprep.subr.bf16.mxu0 0
        %2311 = vmatpush1.bf16.msra.mxu0 0
        %2312 = vmatprep.subr.bf16.mxu0 0
        %2313 = vmatpush1.bf16.msra.mxu0 0
        %2314 = vmatprep.subr.bf16.mxu0 0
        %2315 = vmatpush1.bf16.msra.mxu0 0
        %2316 = vmatprep.subr.bf16.mxu0 0
        %2317 = vmatpush1.bf16.msra.mxu0 0
        %2318 = vmatprep.subr.bf16.mxu0 0
        %2319 = vmatpush1.bf16.msra.mxu0 0
        %2320 = vmatprep.subr.bf16.mxu0 %v2094
        %2321 = vmatpush1.bf16.msra.mxu0 %v2093
        %2322 = vmatprep.subr.bf16.mxu0 %v2078
        %2323 = vmatpush1.bf16.msra.mxu0 %v2077
        %2324 = vmatprep.subr.bf16.mxu0 0
        %2325 = vmatpush2.bf16.msra.mxu0 0
        %2326 = vmatprep.subr.bf16.mxu0 0
        %2327 = vmatpush2.bf16.msra.mxu0 0
        %2328 = vmatprep.subr.bf16.mxu0 0
        %2329 = vmatpush2.bf16.msra.mxu0 0
        %2330 = vmatprep.subr.bf16.mxu0 0
        %2331 = vmatpush2.bf16.msra.mxu0 0
        %2332 = vmatprep.subr.bf16.mxu0 0
        %2333 = vmatpush2.bf16.msra.mxu0 0
        %2334 = vmatprep.subr.bf16.mxu0 0
        %2335 = vmatpush2.bf16.msra.mxu0 0
        %2336 = vmatprep.subr.bf16.mxu0 0
        %2337 = vmatpush2.bf16.msra.mxu0 0
        %2338 = vmatprep.subr.bf16.mxu0 0
        %2339 = vmatpush2.bf16.msra.mxu0 0
        %2340 = vmatprep.mubr.bf16.mxu0 0
        %2341 = vmatmul.mubr.bf16.gmra.mxu0 %v2134
        %v2342 = vpop.f32.mrf.mxu0
        %v2343 = vadd.f32 %v1928, %v2342
        %v2344 = vpop.f32.mrf.mxu0
        %v2345 = vadd.f32 %v1932, %v2344
        %v2346 = vpop.f32.mrf.mxu0
        %v2347 = vadd.f32 %v1928, %v2346
        %v2348 = vpop.f32.mrf.mxu0
        %v2349 = vadd.f32 %v1932, %v2348
        %2350 = vdwg.mxu0
        %2351 = vmatprep.subr.bf16.mxu0 0
        %2352 = vmatpush1.bf16.msra.mxu0 0
        %2353 = vmatprep.subr.bf16.mxu0 0
        %2354 = vmatpush1.bf16.msra.mxu0 0
        %2355 = vmatprep.subr.bf16.mxu0 0
        %2356 = vmatpush1.bf16.msra.mxu0 0
        %2357 = vmatprep.subr.bf16.mxu0 0
        %2358 = vmatpush1.bf16.msra.mxu0 0
        %2359 = vmatprep.subr.bf16.mxu0 0
        %2360 = vmatpush1.bf16.msra.mxu0 0
        %2361 = vmatprep.subr.bf16.mxu0 0
        %2362 = vmatpush1.bf16.msra.mxu0 0
        %2363 = vmatprep.subr.bf16.mxu0 %v2096
        %2364 = vmatpush1.bf16.msra.mxu0 %v2095
        %2365 = vmatprep.subr.bf16.mxu0 %v2080
        %2366 = vmatpush1.bf16.msra.mxu0 %v2079
        %2367 = vmatprep.subr.bf16.mxu0 0
        %2368 = vmatpush2.bf16.msra.mxu0 0
        %2369 = vmatprep.subr.bf16.mxu0 0
        %2370 = vmatpush2.bf16.msra.mxu0 0
        %2371 = vmatprep.subr.bf16.mxu0 0
        %2372 = vmatpush2.bf16.msra.mxu0 0
        %2373 = vmatprep.subr.bf16.mxu0 0
        %2374 = vmatpush2.bf16.msra.mxu0 0
        %2375 = vmatprep.subr.bf16.mxu0 0
        %2376 = vmatpush2.bf16.msra.mxu0 0
        %2377 = vmatprep.subr.bf16.mxu0 0
        %2378 = vmatpush2.bf16.msra.mxu0 0
        %2379 = vmatprep.subr.bf16.mxu0 0
        %2380 = vmatpush2.bf16.msra.mxu0 0
        %2381 = vmatprep.subr.bf16.mxu0 0
        %2382 = vmatpush2.bf16.msra.mxu0 0
        %2383 = vmatprep.mubr.bf16.mxu0 0
        %2384 = vmatmul.mubr.bf16.gmra.mxu0 %v2134
        %v2385 = vpop.f32.mrf.mxu0
        %v2386 = vadd.f32 %v1936, %v2385
        %v2387 = vpop.f32.mrf.mxu0
        %v2388 = vadd.f32 %v1940, %v2387
        %v2389 = vpop.f32.mrf.mxu0
        %v2390 = vadd.f32 %v1936, %v2389
        %v2391 = vpop.f32.mrf.mxu0
        %v2392 = vadd.f32 %v1940, %v2391
        %2393 = vdwg.mxu0
        %2394 = vmatprep.subr.bf16.mxu0 0
        %2395 = vmatpush1.bf16.msra.mxu0 0
        %2396 = vmatprep.subr.bf16.mxu0 0
        %2397 = vmatpush1.bf16.msra.mxu0 0
        %2398 = vmatprep.subr.bf16.mxu0 0
        %2399 = vmatpush1.bf16.msra.mxu0 0
        %2400 = vmatprep.subr.bf16.mxu0 0
        %2401 = vmatpush1.bf16.msra.mxu0 0
        %2402 = vmatprep.subr.bf16.mxu0 0
        %2403 = vmatpush1.bf16.msra.mxu0 0
        %2404 = vmatprep.subr.bf16.mxu0 0
        %2405 = vmatpush1.bf16.msra.mxu0 0
        %2406 = vmatprep.subr.bf16.mxu0 %v2098
        %2407 = vmatpush1.bf16.msra.mxu0 %v2097
        %2408 = vmatprep.subr.bf16.mxu0 %v2082
        %2409 = vmatpush1.bf16.msra.mxu0 %v2081
        %2410 = vmatprep.subr.bf16.mxu0 0
        %2411 = vmatpush2.bf16.msra.mxu0 0
        %2412 = vmatprep.subr.bf16.mxu0 0
        %2413 = vmatpush2.bf16.msra.mxu0 0
        %2414 = vmatprep.subr.bf16.mxu0 0
        %2415 = vmatpush2.bf16.msra.mxu0 0
        %2416 = vmatprep.subr.bf16.mxu0 0
        %2417 = vmatpush2.bf16.msra.mxu0 0
        %2418 = vmatprep.subr.bf16.mxu0 0
        %2419 = vmatpush2.bf16.msra.mxu0 0
        %2420 = vmatprep.subr.bf16.mxu0 0
        %2421 = vmatpush2.bf16.msra.mxu0 0
        %2422 = vmatprep.subr.bf16.mxu0 0
        %2423 = vmatpush2.bf16.msra.mxu0 0
        %2424 = vmatprep.subr.bf16.mxu0 0
        %2425 = vmatpush2.bf16.msra.mxu0 0
        %2426 = vmatprep.mubr.bf16.mxu0 0
        %2427 = vmatmul.mubr.bf16.gmra.mxu0 %v2134
        %v2428 = vpop.f32.mrf.mxu0
        %v2429 = vadd.f32 %v1944, %v2428
        %v2430 = vpop.f32.mrf.mxu0
        %v2431 = vadd.f32 %v1948, %v2430
        %v2432 = vpop.f32.mrf.mxu0
        %v2433 = vadd.f32 %v1944, %v2432
        %v2434 = vpop.f32.mrf.mxu0
        %v2435 = vadd.f32 %v1948, %v2434
        %2436 = vdwg.mxu0
        %2437 = vmatprep.subr.bf16.mxu0 0
        %2438 = vmatpush1.bf16.msra.mxu0 0
        %2439 = vmatprep.subr.bf16.mxu0 0
        %2440 = vmatpush1.bf16.msra.mxu0 0
        %2441 = vmatprep.subr.bf16.mxu0 0
        %2442 = vmatpush1.bf16.msra.mxu0 0
        %2443 = vmatprep.subr.bf16.mxu0 0
        %2444 = vmatpush1.bf16.msra.mxu0 0
        %2445 = vmatprep.subr.bf16.mxu0 0
        %2446 = vmatpush1.bf16.msra.mxu0 0
        %2447 = vmatprep.subr.bf16.mxu0 0
        %2448 = vmatpush1.bf16.msra.mxu0 0
        %2449 = vmatprep.subr.bf16.mxu0 %v2100
        %2450 = vmatpush1.bf16.msra.mxu0 %v2099
        %2451 = vmatprep.subr.bf16.mxu0 %v2084
        %2452 = vmatpush1.bf16.msra.mxu0 %v2083
        %2453 = vmatprep.subr.bf16.mxu0 0
        %2454 = vmatpush2.bf16.msra.mxu0 0
        %2455 = vmatprep.subr.bf16.mxu0 0
        %2456 = vmatpush2.bf16.msra.mxu0 0
        %2457 = vmatprep.subr.bf16.mxu0 0
        %2458 = vmatpush2.bf16.msra.mxu0 0
        %2459 = vmatprep.subr.bf16.mxu0 0
        %2460 = vmatpush2.bf16.msra.mxu0 0
        %2461 = vmatprep.subr.bf16.mxu0 0
        %2462 = vmatpush2.bf16.msra.mxu0 0
        %2463 = vmatprep.subr.bf16.mxu0 0
        %2464 = vmatpush2.bf16.msra.mxu0 0
        %2465 = vmatprep.subr.bf16.mxu0 0
        %2466 = vmatpush2.bf16.msra.mxu0 0
        %2467 = vmatprep.subr.bf16.mxu0 0
        %2468 = vmatpush2.bf16.msra.mxu0 0
        %2469 = vmatprep.mubr.bf16.mxu0 0
        %2470 = vmatmul.mubr.bf16.gmra.mxu0 %v2134
        %v2471 = vpop.f32.mrf.mxu0
        %v2472 = vadd.f32 %v1952, %v2471
        %v2473 = vpop.f32.mrf.mxu0
        %v2474 = vadd.f32 %v1956, %v2473
        %v2475 = vpop.f32.mrf.mxu0
        %v2476 = vadd.f32 %v1952, %v2475
        %v2477 = vpop.f32.mrf.mxu0
        %v2478 = vadd.f32 %v1956, %v2477
        %2479 = vdwg.mxu0
        %v2480 = vmax.f32 %v2171, 0.0
        %v2481 = vmax.f32 %v2173, 0.0
        %v2482 = vmax.f32 %v2214, 0.0
        %v2483 = vmax.f32 %v2216, 0.0
        %v2484 = vmax.f32 %v2257, 0.0
        %v2485 = vmax.f32 %v2259, 0.0
        %v2486 = vmax.f32 %v2300, 0.0
        %v2487 = vmax.f32 %v2302, 0.0
        %v2488 = vmax.f32 %v2343, 0.0
        %v2489 = vmax.f32 %v2345, 0.0
        %v2490 = vmax.f32 %v2386, 0.0
        %v2491 = vmax.f32 %v2388, 0.0
        %v2492 = vmax.f32 %v2429, 0.0
        %v2493 = vmax.f32 %v2431, 0.0
        %v2494 = vmax.f32 %v2472, 0.0
        %v2495 = vmax.f32 %v2474, 0.0
        %v2496 = vmax.f32 %v2175, 0.0
        %v2497 = vmax.f32 %v2177, 0.0
        %v2498 = vmax.f32 %v2218, 0.0
        %v2499 = vmax.f32 %v2220, 0.0
        %v2500 = vmax.f32 %v2261, 0.0
        %v2501 = vmax.f32 %v2263, 0.0
        %v2502 = vmax.f32 %v2304, 0.0
        %v2503 = vmax.f32 %v2306, 0.0
        %v2504 = vmax.f32 %v2347, 0.0
        %v2505 = vmax.f32 %v2349, 0.0
        %v2506 = vmax.f32 %v2390, 0.0
        %v2507 = vmax.f32 %v2392, 0.0
        %v2508 = vmax.f32 %v2433, 0.0
        %v2509 = vmax.f32 %v2435, 0.0
        %v2510 = vmax.f32 %v2476, 0.0
        %v2511 = vmax.f32 %v2478, 0.0
        %v2512 = vpack.c.bf16 %v2496, %v2480
        %v2513 = vpack.c.bf16 %v2497, %v2481
        %v2514 = vpack.c.bf16 %v2498, %v2482
        %v2515 = vpack.c.bf16 %v2499, %v2483
        %v2516 = vpack.c.bf16 %v2500, %v2484
        %v2517 = vpack.c.bf16 %v2501, %v2485
        %v2518 = vpack.c.bf16 %v2502, %v2486
        %v2519 = vpack.c.bf16 %v2503, %v2487
        %v2520 = vpack.c.bf16 %v2504, %v2488
        %v2521 = vpack.c.bf16 %v2505, %v2489
        %v2522 = vpack.c.bf16 %v2506, %v2490
        %v2523 = vpack.c.bf16 %v2507, %v2491
        %v2524 = vpack.c.bf16 %v2508, %v2492
        %v2525 = vpack.c.bf16 %v2509, %v2493
        %v2526 = vpack.c.bf16 %v2510, %v2494
        %v2527 = vpack.c.bf16 %v2511, %v2495
        %v2528 = vld [vmem:[%s458] sm:$0xf]
        %v2529 = vld [vmem:[%s458 + $0x4] sm:$0xf]
        %v2530 = vld [vmem:[%s458 + $0x8] sm:$0xf]
        %v2531 = vld [vmem:[%s458 + $0xc] sm:$0xf]
        %v2532 = vld [vmem:[%s458 + $0x10] sm:$0xf]
        %v2533 = vld [vmem:[%s458 + $0x14] sm:$0xf]
        %v2534 = vld [vmem:[%s458 + $0x18] sm:$0xf]
        %v2535 = vld [vmem:[%s458 + $0x1c] sm:$0xf]
        %v2536 = vld [vmem:[%s458 + $0x20] sm:$0xf]
        %v2537 = vld [vmem:[%s458 + $0x24] sm:$0xf]
        %v2538 = vld [vmem:[%s458 + $0x28] sm:$0xf]
        %v2539 = vld [vmem:[%s458 + $0x2c] sm:$0xf]
        %v2540 = vld [vmem:[%s458 + $0x30] sm:$0xf]
        %v2541 = vld [vmem:[%s458 + $0x34] sm:$0xf]
        %v2542 = vld [vmem:[%s458 + $0x38] sm:$0xf]
        %v2543 = vld [vmem:[%s458 + $0x3c] sm:$0xf]
        %v2544 = vld [vmem:[%s458 + $0x40] sm:$0xf]
        %v2545 = vld [vmem:[%s458 + $0x44] sm:$0xf]
        %v2546 = vld [vmem:[%s458 + $0x48] sm:$0xf]
        %v2547 = vld [vmem:[%s458 + $0x4c] sm:$0xf]
        %v2548 = vld [vmem:[%s458 + $0x50] sm:$0xf]
        %v2549 = vld [vmem:[%s458 + $0x54] sm:$0xf]
        %v2550 = vld [vmem:[%s458 + $0x58] sm:$0xf]
        %v2551 = vld [vmem:[%s458 + $0x5c] sm:$0xf]
        %v2552 = vld [vmem:[%s458 + $0x60] sm:$0xf]
        %v2553 = vld [vmem:[%s458 + $0x64] sm:$0xf]
        %v2554 = vld [vmem:[%s458 + $0x68] sm:$0xf]
        %v2555 = vld [vmem:[%s458 + $0x6c] sm:$0xf]
        %v2556 = vld [vmem:[%s458 + $0x70] sm:$0xf]
        %v2557 = vld [vmem:[%s458 + $0x74] sm:$0xf]
        %v2558 = vld [vmem:[%s458 + $0x78] sm:$0xf]
        %v2559 = vld [vmem:[%s458 + $0x7c] sm:$0xf]
        %v2560 = vld [vmem:[%s458 + $0x80] sm:$0xf]
        %v2561 = vld [vmem:[%s458 + $0x84] sm:$0xf]
        %v2562 = vld [vmem:[%s458 + $0x88] sm:$0xf]
        %v2563 = vld [vmem:[%s458 + $0x8c] sm:$0xf]
        %v2564 = vld [vmem:[%s458 + $0x90] sm:$0xf]
        %v2565 = vld [vmem:[%s458 + $0x94] sm:$0xf]
        %v2566 = vld [vmem:[%s458 + $0x98] sm:$0xf]
        %v2567 = vld [vmem:[%s458 + $0x9c] sm:$0xf]
        %v2568 = vld [vmem:[%s458 + $0xa0] sm:$0xf]
        %v2569 = vld [vmem:[%s458 + $0xa4] sm:$0xf]
        %v2570 = vld [vmem:[%s458 + $0xa8] sm:$0xf]
        %v2571 = vld [vmem:[%s458 + $0xac] sm:$0xf]
        %v2572 = vld [vmem:[%s458 + $0xb0] sm:$0xf]
        %v2573 = vld [vmem:[%s458 + $0xb4] sm:$0xf]
        %v2574 = vld [vmem:[%s458 + $0xb8] sm:$0xf]
        %v2575 = vld [vmem:[%s458 + $0xbc] sm:$0xf]
        %v2576 = vld [vmem:[%s458 + $0xc0] sm:$0xf]
        %v2577 = vld [vmem:[%s458 + $0xc4] sm:$0xf]
        %v2578 = vld [vmem:[%s458 + $0xc8] sm:$0xf]
        %v2579 = vld [vmem:[%s458 + $0xcc] sm:$0xf]
        %v2580 = vld [vmem:[%s458 + $0xd0] sm:$0xf]
        %v2581 = vld [vmem:[%s458 + $0xd4] sm:$0xf]
        %v2582 = vld [vmem:[%s458 + $0xd8] sm:$0xf]
        %v2583 = vld [vmem:[%s458 + $0xdc] sm:$0xf]
        %v2584 = vld [vmem:[%s458 + $0xe0] sm:$0xf]
        %v2585 = vld [vmem:[%s458 + $0xe4] sm:$0xf]
        %v2586 = vld [vmem:[%s458 + $0xe8] sm:$0xf]
        %v2587 = vld [vmem:[%s458 + $0xec] sm:$0xf]
        %v2588 = vld [vmem:[%s458 + $0xf0] sm:$0xf]
        %v2589 = vld [vmem:[%s458 + $0xf4] sm:$0xf]
        %v2590 = vld [vmem:[%s458 + $0xf8] sm:$0xf]
        %v2591 = vld [vmem:[%s458 + $0xfc] sm:$0xf]
        %v2592 = vld [vmem:[%s458 + $0x100] sm:$0xf]
        %v2593 = vld [vmem:[%s458 + $0x104] sm:$0xf]
        %v2594 = vld [vmem:[%s458 + $0x108] sm:$0xf]
        %v2595 = vld [vmem:[%s458 + $0x10c] sm:$0xf]
        %v2596 = vld [vmem:[%s458 + $0x110] sm:$0xf]
        %v2597 = vld [vmem:[%s458 + $0x114] sm:$0xf]
        %v2598 = vld [vmem:[%s458 + $0x118] sm:$0xf]
        %v2599 = vld [vmem:[%s458 + $0x11c] sm:$0xf]
        %v2600 = vld [vmem:[%s458 + $0x120] sm:$0xf]
        %v2601 = vld [vmem:[%s458 + $0x124] sm:$0xf]
        %v2602 = vld [vmem:[%s458 + $0x128] sm:$0xf]
        %v2603 = vld [vmem:[%s458 + $0x12c] sm:$0xf]
        %v2604 = vld [vmem:[%s458 + $0x130] sm:$0xf]
        %v2605 = vld [vmem:[%s458 + $0x134] sm:$0xf]
        %v2606 = vld [vmem:[%s458 + $0x138] sm:$0xf]
        %v2607 = vld [vmem:[%s458 + $0x13c] sm:$0xf]
        %v2608 = vld [vmem:[%s458 + $0x140] sm:$0xf]
        %v2609 = vld [vmem:[%s458 + $0x144] sm:$0xf]
        %v2610 = vld [vmem:[%s458 + $0x148] sm:$0xf]
        %v2611 = vld [vmem:[%s458 + $0x14c] sm:$0xf]
        %v2612 = vld [vmem:[%s458 + $0x150] sm:$0xf]
        %v2613 = vld [vmem:[%s458 + $0x154] sm:$0xf]
        %v2614 = vld [vmem:[%s458 + $0x158] sm:$0xf]
        %v2615 = vld [vmem:[%s458 + $0x15c] sm:$0xf]
        %v2616 = vld [vmem:[%s458 + $0x160] sm:$0xf]
        %v2617 = vld [vmem:[%s458 + $0x164] sm:$0xf]
        %v2618 = vld [vmem:[%s458 + $0x168] sm:$0xf]
        %v2619 = vld [vmem:[%s458 + $0x16c] sm:$0xf]
        %v2620 = vld [vmem:[%s458 + $0x170] sm:$0xf]
        %v2621 = vld [vmem:[%s458 + $0x174] sm:$0xf]
        %v2622 = vld [vmem:[%s458 + $0x178] sm:$0xf]
        %v2623 = vld [vmem:[%s458 + $0x17c] sm:$0xf]
        %v2624 = vld [vmem:[%s458 + $0x180] sm:$0xf]
        %v2625 = vld [vmem:[%s458 + $0x184] sm:$0xf]
        %v2626 = vld [vmem:[%s458 + $0x188] sm:$0xf]
        %v2627 = vld [vmem:[%s458 + $0x18c] sm:$0xf]
        %v2628 = vld [vmem:[%s458 + $0x190] sm:$0xf]
        %v2629 = vld [vmem:[%s458 + $0x194] sm:$0xf]
        %v2630 = vld [vmem:[%s458 + $0x198] sm:$0xf]
        %v2631 = vld [vmem:[%s458 + $0x19c] sm:$0xf]
        %v2632 = vld [vmem:[%s458 + $0x1a0] sm:$0xf]
        %v2633 = vld [vmem:[%s458 + $0x1a4] sm:$0xf]
        %v2634 = vld [vmem:[%s458 + $0x1a8] sm:$0xf]
        %v2635 = vld [vmem:[%s458 + $0x1ac] sm:$0xf]
        %v2636 = vld [vmem:[%s458 + $0x1b0] sm:$0xf]
        %v2637 = vld [vmem:[%s458 + $0x1b4] sm:$0xf]
        %v2638 = vld [vmem:[%s458 + $0x1b8] sm:$0xf]
        %v2639 = vld [vmem:[%s458 + $0x1bc] sm:$0xf]
        %v2640 = vld [vmem:[%s458 + $0x1c0] sm:$0xf]
        %v2641 = vld [vmem:[%s458 + $0x1c4] sm:$0xf]
        %v2642 = vld [vmem:[%s458 + $0x1c8] sm:$0xf]
        %v2643 = vld [vmem:[%s458 + $0x1cc] sm:$0xf]
        %v2644 = vld [vmem:[%s458 + $0x1d0] sm:$0xf]
        %v2645 = vld [vmem:[%s458 + $0x1d4] sm:$0xf]
        %v2646 = vld [vmem:[%s458 + $0x1d8] sm:$0xf]
        %v2647 = vld [vmem:[%s458 + $0x1dc] sm:$0xf]
        %v2648 = vld [vmem:[%s458 + $0x1e0] sm:$0xf]
        %v2649 = vld [vmem:[%s458 + $0x1e4] sm:$0xf]
        %v2650 = vld [vmem:[%s458 + $0x1e8] sm:$0xf]
        %v2651 = vld [vmem:[%s458 + $0x1ec] sm:$0xf]
        %v2652 = vld [vmem:[%s458 + $0x1f0] sm:$0xf]
        %v2653 = vld [vmem:[%s458 + $0x1f4] sm:$0xf]
        %v2654 = vld [vmem:[%s458 + $0x1f8] sm:$0xf]
        %v2655 = vld [vmem:[%s458 + $0x1fc] sm:$0xf]
        %v2656 = vld [vmem:[%s458 + $0x200] sm:$0xf]
        %v2657 = vld [vmem:[%s458 + $0x204] sm:$0xf]
        %v2658 = vld [vmem:[%s458 + $0x208] sm:$0xf]
        %v2659 = vld [vmem:[%s458 + $0x20c] sm:$0xf]
        %v2660 = vld [vmem:[%s458 + $0x210] sm:$0xf]
        %v2661 = vld [vmem:[%s458 + $0x214] sm:$0xf]
        %v2662 = vld [vmem:[%s458 + $0x218] sm:$0xf]
        %v2663 = vld [vmem:[%s458 + $0x21c] sm:$0xf]
        %v2664 = vld [vmem:[%s458 + $0x220] sm:$0xf]
        %v2665 = vld [vmem:[%s458 + $0x224] sm:$0xf]
        %v2666 = vld [vmem:[%s458 + $0x228] sm:$0xf]
        %v2667 = vld [vmem:[%s458 + $0x22c] sm:$0xf]
        %v2668 = vld [vmem:[%s458 + $0x230] sm:$0xf]
        %v2669 = vld [vmem:[%s458 + $0x234] sm:$0xf]
        %v2670 = vld [vmem:[%s458 + $0x238] sm:$0xf]
        %v2671 = vld [vmem:[%s458 + $0x23c] sm:$0xf]
        %v2672 = vld [vmem:[%s458 + $0x240] sm:$0xf]
        %v2673 = vld [vmem:[%s458 + $0x244] sm:$0xf]
        %v2674 = vld [vmem:[%s458 + $0x248] sm:$0xf]
        %v2675 = vld [vmem:[%s458 + $0x24c] sm:$0xf]
        %v2676 = vld [vmem:[%s458 + $0x250] sm:$0xf]
        %v2677 = vld [vmem:[%s458 + $0x254] sm:$0xf]
        %v2678 = vld [vmem:[%s458 + $0x258] sm:$0xf]
        %v2679 = vld [vmem:[%s458 + $0x25c] sm:$0xf]
        %v2680 = vld [vmem:[%s458 + $0x260] sm:$0xf]
        %v2681 = vld [vmem:[%s458 + $0x264] sm:$0xf]
        %v2682 = vld [vmem:[%s458 + $0x268] sm:$0xf]
        %v2683 = vld [vmem:[%s458 + $0x26c] sm:$0xf]
        %v2684 = vld [vmem:[%s458 + $0x270] sm:$0xf]
        %v2685 = vld [vmem:[%s458 + $0x274] sm:$0xf]
        %v2686 = vld [vmem:[%s458 + $0x278] sm:$0xf]
        %v2687 = vld [vmem:[%s458 + $0x27c] sm:$0xf]
        %v2688 = vld [vmem:[%s458 + $0x280] sm:$0xf]
        %v2689 = vld [vmem:[%s458 + $0x284] sm:$0xf]
        %v2690 = vld [vmem:[%s458 + $0x288] sm:$0xf]
        %v2691 = vld [vmem:[%s458 + $0x28c] sm:$0xf]
        %v2692 = vld [vmem:[%s458 + $0x290] sm:$0xf]
        %v2693 = vld [vmem:[%s458 + $0x294] sm:$0xf]
        %v2694 = vld [vmem:[%s458 + $0x298] sm:$0xf]
        %v2695 = vld [vmem:[%s458 + $0x29c] sm:$0xf]
        %v2696 = vld [vmem:[%s458 + $0x2a0] sm:$0xf]
        %v2697 = vld [vmem:[%s458 + $0x2a4] sm:$0xf]
        %v2698 = vld [vmem:[%s458 + $0x2a8] sm:$0xf]
        %v2699 = vld [vmem:[%s458 + $0x2ac] sm:$0xf]
        %v2700 = vld [vmem:[%s458 + $0x2b0] sm:$0xf]
        %v2701 = vld [vmem:[%s458 + $0x2b4] sm:$0xf]
        %v2702 = vld [vmem:[%s458 + $0x2b8] sm:$0xf]
        %v2703 = vld [vmem:[%s458 + $0x2bc] sm:$0xf]
        %v2704 = vld [vmem:[%s458 + $0x2c0] sm:$0xf]
        %v2705 = vld [vmem:[%s458 + $0x2c4] sm:$0xf]
        %v2706 = vld [vmem:[%s458 + $0x2c8] sm:$0xf]
        %v2707 = vld [vmem:[%s458 + $0x2cc] sm:$0xf]
        %v2708 = vld [vmem:[%s458 + $0x2d0] sm:$0xf]
        %v2709 = vld [vmem:[%s458 + $0x2d4] sm:$0xf]
        %v2710 = vld [vmem:[%s458 + $0x2d8] sm:$0xf]
        %v2711 = vld [vmem:[%s458 + $0x2dc] sm:$0xf]
        %v2712 = vld [vmem:[%s458 + $0x2e0] sm:$0xf]
        %v2713 = vld [vmem:[%s458 + $0x2e4] sm:$0xf]
        %v2714 = vld [vmem:[%s458 + $0x2e8] sm:$0xf]
        %v2715 = vld [vmem:[%s458 + $0x2ec] sm:$0xf]
        %v2716 = vld [vmem:[%s458 + $0x2f0] sm:$0xf]
        %v2717 = vld [vmem:[%s458 + $0x2f4] sm:$0xf]
        %v2718 = vld [vmem:[%s458 + $0x2f8] sm:$0xf]
        %v2719 = vld [vmem:[%s458 + $0x2fc] sm:$0xf]
        %v2720 = vld [vmem:[%s458 + $0x300] sm:$0xf]
        %v2721 = vld [vmem:[%s458 + $0x304] sm:$0xf]
        %v2722 = vld [vmem:[%s458 + $0x308] sm:$0xf]
        %v2723 = vld [vmem:[%s458 + $0x30c] sm:$0xf]
        %v2724 = vld [vmem:[%s458 + $0x310] sm:$0xf]
        %v2725 = vld [vmem:[%s458 + $0x314] sm:$0xf]
        %v2726 = vld [vmem:[%s458 + $0x318] sm:$0xf]
        %v2727 = vld [vmem:[%s458 + $0x31c] sm:$0xf]
        %v2728 = vld [vmem:[%s458 + $0x320] sm:$0xf]
        %v2729 = vld [vmem:[%s458 + $0x324] sm:$0xf]
        %v2730 = vld [vmem:[%s458 + $0x328] sm:$0xf]
        %v2731 = vld [vmem:[%s458 + $0x32c] sm:$0xf]
        %v2732 = vld [vmem:[%s458 + $0x330] sm:$0xf]
        %v2733 = vld [vmem:[%s458 + $0x334] sm:$0xf]
        %v2734 = vld [vmem:[%s458 + $0x338] sm:$0xf]
        %v2735 = vld [vmem:[%s458 + $0x33c] sm:$0xf]
        %v2736 = vld [vmem:[%s458 + $0x340] sm:$0xf]
        %v2737 = vld [vmem:[%s458 + $0x344] sm:$0xf]
        %v2738 = vld [vmem:[%s458 + $0x348] sm:$0xf]
        %v2739 = vld [vmem:[%s458 + $0x34c] sm:$0xf]
        %v2740 = vld [vmem:[%s458 + $0x350] sm:$0xf]
        %v2741 = vld [vmem:[%s458 + $0x354] sm:$0xf]
        %v2742 = vld [vmem:[%s458 + $0x358] sm:$0xf]
        %v2743 = vld [vmem:[%s458 + $0x35c] sm:$0xf]
        %v2744 = vld [vmem:[%s458 + $0x360] sm:$0xf]
        %v2745 = vld [vmem:[%s458 + $0x364] sm:$0xf]
        %v2746 = vld [vmem:[%s458 + $0x368] sm:$0xf]
        %v2747 = vld [vmem:[%s458 + $0x36c] sm:$0xf]
        %v2748 = vld [vmem:[%s458 + $0x370] sm:$0xf]
        %v2749 = vld [vmem:[%s458 + $0x374] sm:$0xf]
        %v2750 = vld [vmem:[%s458 + $0x378] sm:$0xf]
        %v2751 = vld [vmem:[%s458 + $0x37c] sm:$0xf]
        %v2752 = vld [vmem:[%s458 + $0x380] sm:$0xf]
        %v2753 = vld [vmem:[%s458 + $0x384] sm:$0xf]
        %v2754 = vld [vmem:[%s458 + $0x388] sm:$0xf]
        %v2755 = vld [vmem:[%s458 + $0x38c] sm:$0xf]
        %v2756 = vld [vmem:[%s458 + $0x390] sm:$0xf]
        %v2757 = vld [vmem:[%s458 + $0x394] sm:$0xf]
        %v2758 = vld [vmem:[%s458 + $0x398] sm:$0xf]
        %v2759 = vld [vmem:[%s458 + $0x39c] sm:$0xf]
        %v2760 = vld [vmem:[%s458 + $0x3a0] sm:$0xf]
        %v2761 = vld [vmem:[%s458 + $0x3a4] sm:$0xf]
        %v2762 = vld [vmem:[%s458 + $0x3a8] sm:$0xf]
        %v2763 = vld [vmem:[%s458 + $0x3ac] sm:$0xf]
        %v2764 = vld [vmem:[%s458 + $0x3b0] sm:$0xf]
        %v2765 = vld [vmem:[%s458 + $0x3b4] sm:$0xf]
        %v2766 = vld [vmem:[%s458 + $0x3b8] sm:$0xf]
        %v2767 = vld [vmem:[%s458 + $0x3bc] sm:$0xf]
        %v2768 = vld [vmem:[%s458 + $0x3c0] sm:$0xf]
        %v2769 = vld [vmem:[%s458 + $0x3c4] sm:$0xf]
        %v2770 = vld [vmem:[%s458 + $0x3c8] sm:$0xf]
        %v2771 = vld [vmem:[%s458 + $0x3cc] sm:$0xf]
        %v2772 = vld [vmem:[%s458 + $0x3d0] sm:$0xf]
        %v2773 = vld [vmem:[%s458 + $0x3d4] sm:$0xf]
        %v2774 = vld [vmem:[%s458 + $0x3d8] sm:$0xf]
        %v2775 = vld [vmem:[%s458 + $0x3dc] sm:$0xf]
        %v2776 = vld [vmem:[%s458 + $0x3e0] sm:$0xf]
        %v2777 = vld [vmem:[%s458 + $0x3e4] sm:$0xf]
        %v2778 = vld [vmem:[%s458 + $0x3e8] sm:$0xf]
        %v2779 = vld [vmem:[%s458 + $0x3ec] sm:$0xf]
        %v2780 = vld [vmem:[%s458 + $0x3f0] sm:$0xf]
        %v2781 = vld [vmem:[%s458 + $0x3f4] sm:$0xf]
        %v2782 = vld [vmem:[%s458 + $0x3f8] sm:$0xf]
        %v2783 = vld [vmem:[%s458 + $0x3fc] sm:$0xf]
        %v2784 = vlaneseq
        %v2785 = vshrl.u32 %v2784, 7
        %v2786 = vsub.s32 4, %v2785
        %v2787 = vrot.slane %v577, %v2786
        %v3044 = vunpack.c.l.b16 %v2528
        %v3045 = vunpack.c.l.b16 %v2529
        %v3046 = vunpack.c.l.b16 %v2530
        %v3047 = vunpack.c.l.b16 %v2531
        %v3048 = vunpack.c.l.b16 %v2532
        %v3049 = vunpack.c.l.b16 %v2533
        %v3050 = vunpack.c.l.b16 %v2534
        %v3051 = vunpack.c.l.b16 %v2535
        %v3052 = vunpack.c.l.b16 %v2536
        %v3053 = vunpack.c.l.b16 %v2537
        %v3054 = vunpack.c.l.b16 %v2538
        %v3055 = vunpack.c.l.b16 %v2539
        %v3056 = vunpack.c.l.b16 %v2540
        %v3057 = vunpack.c.l.b16 %v2541
        %v3058 = vunpack.c.l.b16 %v2542
        %v3059 = vunpack.c.l.b16 %v2543
        %v3060 = vunpack.c.l.b16 %v2544
        %v3061 = vunpack.c.l.b16 %v2545
        %v3062 = vunpack.c.l.b16 %v2546
        %v3063 = vunpack.c.l.b16 %v2547
        %v3064 = vunpack.c.l.b16 %v2548
        %v3065 = vunpack.c.l.b16 %v2549
        %v3066 = vunpack.c.l.b16 %v2550
        %v3067 = vunpack.c.l.b16 %v2551
        %v3068 = vunpack.c.l.b16 %v2552
        %v3069 = vunpack.c.l.b16 %v2553
        %v3070 = vunpack.c.l.b16 %v2554
        %v3071 = vunpack.c.l.b16 %v2555
        %v3072 = vunpack.c.l.b16 %v2556
        %v3073 = vunpack.c.l.b16 %v2557
        %v3074 = vunpack.c.l.b16 %v2558
        %v3075 = vunpack.c.l.b16 %v2559
        %v3076 = vunpack.c.l.b16 %v2560
        %v3077 = vunpack.c.l.b16 %v2561
        %v3078 = vunpack.c.l.b16 %v2562
        %v3079 = vunpack.c.l.b16 %v2563
        %v3080 = vunpack.c.l.b16 %v2564
        %v3081 = vunpack.c.l.b16 %v2565
        %v3082 = vunpack.c.l.b16 %v2566
        %v3083 = vunpack.c.l.b16 %v2567
        %v3084 = vunpack.c.l.b16 %v2568
        %v3085 = vunpack.c.l.b16 %v2569
        %v3086 = vunpack.c.l.b16 %v2570
        %v3087 = vunpack.c.l.b16 %v2571
        %v3088 = vunpack.c.l.b16 %v2572
        %v3089 = vunpack.c.l.b16 %v2573
        %v3090 = vunpack.c.l.b16 %v2574
        %v3091 = vunpack.c.l.b16 %v2575
        %v3092 = vunpack.c.l.b16 %v2576
        %v3093 = vunpack.c.l.b16 %v2577
        %v3094 = vunpack.c.l.b16 %v2578
        %v3095 = vunpack.c.l.b16 %v2579
        %v3096 = vunpack.c.l.b16 %v2580
        %v3097 = vunpack.c.l.b16 %v2581
        %v3098 = vunpack.c.l.b16 %v2582
        %v3099 = vunpack.c.l.b16 %v2583
        %v3100 = vunpack.c.l.b16 %v2584
        %v3101 = vunpack.c.l.b16 %v2585
        %v3102 = vunpack.c.l.b16 %v2586
        %v3103 = vunpack.c.l.b16 %v2587
        %v3104 = vunpack.c.l.b16 %v2588
        %v3105 = vunpack.c.l.b16 %v2589
        %v3106 = vunpack.c.l.b16 %v2590
        %v3107 = vunpack.c.l.b16 %v2591
        %v3108 = vunpack.c.l.b16 %v2592
        %v3109 = vunpack.c.l.b16 %v2593
        %v3110 = vunpack.c.l.b16 %v2594
        %v3111 = vunpack.c.l.b16 %v2595
        %v3112 = vunpack.c.l.b16 %v2596
        %v3113 = vunpack.c.l.b16 %v2597
        %v3114 = vunpack.c.l.b16 %v2598
        %v3115 = vunpack.c.l.b16 %v2599
        %v3116 = vunpack.c.l.b16 %v2600
        %v3117 = vunpack.c.l.b16 %v2601
        %v3118 = vunpack.c.l.b16 %v2602
        %v3119 = vunpack.c.l.b16 %v2603
        %v3120 = vunpack.c.l.b16 %v2604
        %v3121 = vunpack.c.l.b16 %v2605
        %v3122 = vunpack.c.l.b16 %v2606
        %v3123 = vunpack.c.l.b16 %v2607
        %v3124 = vunpack.c.l.b16 %v2608
        %v3125 = vunpack.c.l.b16 %v2609
        %v3126 = vunpack.c.l.b16 %v2610
        %v3127 = vunpack.c.l.b16 %v2611
        %v3128 = vunpack.c.l.b16 %v2612
        %v3129 = vunpack.c.l.b16 %v2613
        %v3130 = vunpack.c.l.b16 %v2614
        %v3131 = vunpack.c.l.b16 %v2615
        %v3132 = vunpack.c.l.b16 %v2616
        %v3133 = vunpack.c.l.b16 %v2617
        %v3134 = vunpack.c.l.b16 %v2618
        %v3135 = vunpack.c.l.b16 %v2619
        %v3136 = vunpack.c.l.b16 %v2620
        %v3137 = vunpack.c.l.b16 %v2621
        %v3138 = vunpack.c.l.b16 %v2622
        %v3139 = vunpack.c.l.b16 %v2623
        %v3140 = vunpack.c.l.b16 %v2624
        %v3141 = vunpack.c.l.b16 %v2625
        %v3142 = vunpack.c.l.b16 %v2626
        %v3143 = vunpack.c.l.b16 %v2627
        %v3144 = vunpack.c.l.b16 %v2628
        %v3145 = vunpack.c.l.b16 %v2629
        %v3146 = vunpack.c.l.b16 %v2630
        %v3147 = vunpack.c.l.b16 %v2631
        %v3148 = vunpack.c.l.b16 %v2632
        %v3149 = vunpack.c.l.b16 %v2633
        %v3150 = vunpack.c.l.b16 %v2634
        %v3151 = vunpack.c.l.b16 %v2635
        %v3152 = vunpack.c.l.b16 %v2636
        %v3153 = vunpack.c.l.b16 %v2637
        %v3154 = vunpack.c.l.b16 %v2638
        %v3155 = vunpack.c.l.b16 %v2639
        %v3156 = vunpack.c.l.b16 %v2640
        %v3157 = vunpack.c.l.b16 %v2641
        %v3158 = vunpack.c.l.b16 %v2642
        %v3159 = vunpack.c.l.b16 %v2643
        %v3160 = vunpack.c.l.b16 %v2644
        %v3161 = vunpack.c.l.b16 %v2645
        %v3162 = vunpack.c.l.b16 %v2646
        %v3163 = vunpack.c.l.b16 %v2647
        %v3164 = vunpack.c.l.b16 %v2648
        %v3165 = vunpack.c.l.b16 %v2649
        %v3166 = vunpack.c.l.b16 %v2650
        %v3167 = vunpack.c.l.b16 %v2651
        %v3168 = vunpack.c.l.b16 %v2652
        %v3169 = vunpack.c.l.b16 %v2653
        %v3170 = vunpack.c.l.b16 %v2654
        %v3171 = vunpack.c.l.b16 %v2655
        %v3172 = vunpack.c.l.b16 %v2656
        %v3173 = vunpack.c.l.b16 %v2657
        %v3174 = vunpack.c.l.b16 %v2658
        %v3175 = vunpack.c.l.b16 %v2659
        %v3176 = vunpack.c.l.b16 %v2660
        %v3177 = vunpack.c.l.b16 %v2661
        %v3178 = vunpack.c.l.b16 %v2662
        %v3179 = vunpack.c.l.b16 %v2663
        %v3180 = vunpack.c.l.b16 %v2664
        %v3181 = vunpack.c.l.b16 %v2665
        %v3182 = vunpack.c.l.b16 %v2666
        %v3183 = vunpack.c.l.b16 %v2667
        %v3184 = vunpack.c.l.b16 %v2668
        %v3185 = vunpack.c.l.b16 %v2669
        %v3186 = vunpack.c.l.b16 %v2670
        %v3187 = vunpack.c.l.b16 %v2671
        %v3188 = vunpack.c.l.b16 %v2672
        %v3189 = vunpack.c.l.b16 %v2673
        %v3190 = vunpack.c.l.b16 %v2674
        %v3191 = vunpack.c.l.b16 %v2675
        %v3192 = vunpack.c.l.b16 %v2676
        %v3193 = vunpack.c.l.b16 %v2677
        %v3194 = vunpack.c.l.b16 %v2678
        %v3195 = vunpack.c.l.b16 %v2679
        %v3196 = vunpack.c.l.b16 %v2680
        %v3197 = vunpack.c.l.b16 %v2681
        %v3198 = vunpack.c.l.b16 %v2682
        %v3199 = vunpack.c.l.b16 %v2683
        %v3200 = vunpack.c.l.b16 %v2684
        %v3201 = vunpack.c.l.b16 %v2685
        %v3202 = vunpack.c.l.b16 %v2686
        %v3203 = vunpack.c.l.b16 %v2687
        %v3204 = vunpack.c.l.b16 %v2688
        %v3205 = vunpack.c.l.b16 %v2689
        %v3206 = vunpack.c.l.b16 %v2690
        %v3207 = vunpack.c.l.b16 %v2691
        %v3208 = vunpack.c.l.b16 %v2692
        %v3209 = vunpack.c.l.b16 %v2693
        %v3210 = vunpack.c.l.b16 %v2694
        %v3211 = vunpack.c.l.b16 %v2695
        %v3212 = vunpack.c.l.b16 %v2696
        %v3213 = vunpack.c.l.b16 %v2697
        %v3214 = vunpack.c.l.b16 %v2698
        %v3215 = vunpack.c.l.b16 %v2699
        %v3216 = vunpack.c.l.b16 %v2700
        %v3217 = vunpack.c.l.b16 %v2701
        %v3218 = vunpack.c.l.b16 %v2702
        %v3219 = vunpack.c.l.b16 %v2703
        %v3220 = vunpack.c.l.b16 %v2704
        %v3221 = vunpack.c.l.b16 %v2705
        %v3222 = vunpack.c.l.b16 %v2706
        %v3223 = vunpack.c.l.b16 %v2707
        %v3224 = vunpack.c.l.b16 %v2708
        %v3225 = vunpack.c.l.b16 %v2709
        %v3226 = vunpack.c.l.b16 %v2710
        %v3227 = vunpack.c.l.b16 %v2711
        %v3228 = vunpack.c.l.b16 %v2712
        %v3229 = vunpack.c.l.b16 %v2713
        %v3230 = vunpack.c.l.b16 %v2714
        %v3231 = vunpack.c.l.b16 %v2715
        %v3232 = vunpack.c.l.b16 %v2716
        %v3233 = vunpack.c.l.b16 %v2717
        %v3234 = vunpack.c.l.b16 %v2718
        %v3235 = vunpack.c.l.b16 %v2719
        %v3236 = vunpack.c.l.b16 %v2720
        %v3237 = vunpack.c.l.b16 %v2721
        %v3238 = vunpack.c.l.b16 %v2722
        %v3239 = vunpack.c.l.b16 %v2723
        %v3240 = vunpack.c.l.b16 %v2724
        %v3241 = vunpack.c.l.b16 %v2725
        %v3242 = vunpack.c.l.b16 %v2726
        %v3243 = vunpack.c.l.b16 %v2727
        %v3244 = vunpack.c.l.b16 %v2728
        %v3245 = vunpack.c.l.b16 %v2729
        %v3246 = vunpack.c.l.b16 %v2730
        %v3247 = vunpack.c.l.b16 %v2731
        %v3248 = vunpack.c.l.b16 %v2732
        %v3249 = vunpack.c.l.b16 %v2733
        %v3250 = vunpack.c.l.b16 %v2734
        %v3251 = vunpack.c.l.b16 %v2735
        %v3252 = vunpack.c.l.b16 %v2736
        %v3253 = vunpack.c.l.b16 %v2737
        %v3254 = vunpack.c.l.b16 %v2738
        %v3255 = vunpack.c.l.b16 %v2739
        %v3256 = vunpack.c.l.b16 %v2740
        %v3257 = vunpack.c.l.b16 %v2741
        %v3258 = vunpack.c.l.b16 %v2742
        %v3259 = vunpack.c.l.b16 %v2743
        %v3260 = vunpack.c.l.b16 %v2744
        %v3261 = vunpack.c.l.b16 %v2745
        %v3262 = vunpack.c.l.b16 %v2746
        %v3263 = vunpack.c.l.b16 %v2747
        %v3264 = vunpack.c.l.b16 %v2748
        %v3265 = vunpack.c.l.b16 %v2749
        %v3266 = vunpack.c.l.b16 %v2750
        %v3267 = vunpack.c.l.b16 %v2751
        %v3268 = vunpack.c.l.b16 %v2752
        %v3269 = vunpack.c.l.b16 %v2753
        %v3270 = vunpack.c.l.b16 %v2754
        %v3271 = vunpack.c.l.b16 %v2755
        %v3272 = vunpack.c.l.b16 %v2756
        %v3273 = vunpack.c.l.b16 %v2757
        %v3274 = vunpack.c.l.b16 %v2758
        %v3275 = vunpack.c.l.b16 %v2759
        %v3276 = vunpack.c.l.b16 %v2760
        %v3277 = vunpack.c.l.b16 %v2761
        %v3278 = vunpack.c.l.b16 %v2762
        %v3279 = vunpack.c.l.b16 %v2763
        %v3280 = vunpack.c.l.b16 %v2764
        %v3281 = vunpack.c.l.b16 %v2765
        %v3282 = vunpack.c.l.b16 %v2766
        %v3283 = vunpack.c.l.b16 %v2767
        %v3284 = vunpack.c.l.b16 %v2768
        %v3285 = vunpack.c.l.b16 %v2769
        %v3286 = vunpack.c.l.b16 %v2770
        %v3287 = vunpack.c.l.b16 %v2771
        %v3288 = vunpack.c.l.b16 %v2772
        %v3289 = vunpack.c.l.b16 %v2773
        %v3290 = vunpack.c.l.b16 %v2774
        %v3291 = vunpack.c.l.b16 %v2775
        %v3292 = vunpack.c.l.b16 %v2776
        %v3293 = vunpack.c.l.b16 %v2777
        %v3294 = vunpack.c.l.b16 %v2778
        %v3295 = vunpack.c.l.b16 %v2779
        %v3296 = vunpack.c.l.b16 %v2780
        %v3297 = vunpack.c.l.b16 %v2781
        %v3298 = vunpack.c.l.b16 %v2782
        %v3299 = vunpack.c.l.b16 %v2783
        %v3300 = vpack.c.b16 %v3045, %v3044
        %v3301 = vpack.c.b16 %v3047, %v3046
        %v3302 = vpack.c.b16 %v3049, %v3048
        %v3303 = vpack.c.b16 %v3051, %v3050
        %v3304 = vpack.c.b16 %v3053, %v3052
        %v3305 = vpack.c.b16 %v3055, %v3054
        %v3306 = vpack.c.b16 %v3057, %v3056
        %v3307 = vpack.c.b16 %v3059, %v3058
        %v3308 = vpack.c.b16 %v3061, %v3060
        %v3309 = vpack.c.b16 %v3063, %v3062
        %v3310 = vpack.c.b16 %v3065, %v3064
        %v3311 = vpack.c.b16 %v3067, %v3066
        %v3312 = vpack.c.b16 %v3069, %v3068
        %v3313 = vpack.c.b16 %v3071, %v3070
        %v3314 = vpack.c.b16 %v3073, %v3072
        %v3315 = vpack.c.b16 %v3075, %v3074
        %v3316 = vpack.c.b16 %v3077, %v3076
        %v3317 = vpack.c.b16 %v3079, %v3078
        %v3318 = vpack.c.b16 %v3081, %v3080
        %v3319 = vpack.c.b16 %v3083, %v3082
        %v3320 = vpack.c.b16 %v3085, %v3084
        %v3321 = vpack.c.b16 %v3087, %v3086
        %v3322 = vpack.c.b16 %v3089, %v3088
        %v3323 = vpack.c.b16 %v3091, %v3090
        %v3324 = vpack.c.b16 %v3093, %v3092
        %v3325 = vpack.c.b16 %v3095, %v3094
        %v3326 = vpack.c.b16 %v3097, %v3096
        %v3327 = vpack.c.b16 %v3099, %v3098
        %v3328 = vpack.c.b16 %v3101, %v3100
        %v3329 = vpack.c.b16 %v3103, %v3102
        %v3330 = vpack.c.b16 %v3105, %v3104
        %v3331 = vpack.c.b16 %v3107, %v3106
        %v3332 = vpack.c.b16 %v3109, %v3108
        %v3333 = vpack.c.b16 %v3111, %v3110
        %v3334 = vpack.c.b16 %v3113, %v3112
        %v3335 = vpack.c.b16 %v3115, %v3114
        %v3336 = vpack.c.b16 %v3117, %v3116
        %v3337 = vpack.c.b16 %v3119, %v3118
        %v3338 = vpack.c.b16 %v3121, %v3120
        %v3339 = vpack.c.b16 %v3123, %v3122
        %v3340 = vpack.c.b16 %v3125, %v3124
        %v3341 = vpack.c.b16 %v3127, %v3126
        %v3342 = vpack.c.b16 %v3129, %v3128
        %v3343 = vpack.c.b16 %v3131, %v3130
        %v3344 = vpack.c.b16 %v3133, %v3132
        %v3345 = vpack.c.b16 %v3135, %v3134
        %v3346 = vpack.c.b16 %v3137, %v3136
        %v3347 = vpack.c.b16 %v3139, %v3138
        %v3348 = vpack.c.b16 %v3141, %v3140
        %v3349 = vpack.c.b16 %v3143, %v3142
        %v3350 = vpack.c.b16 %v3145, %v3144
        %v3351 = vpack.c.b16 %v3147, %v3146
        %v3352 = vpack.c.b16 %v3149, %v3148
        %v3353 = vpack.c.b16 %v3151, %v3150
        %v3354 = vpack.c.b16 %v3153, %v3152
        %v3355 = vpack.c.b16 %v3155, %v3154
        %v3356 = vpack.c.b16 %v3157, %v3156
        %v3357 = vpack.c.b16 %v3159, %v3158
        %v3358 = vpack.c.b16 %v3161, %v3160
        %v3359 = vpack.c.b16 %v3163, %v3162
        %v3360 = vpack.c.b16 %v3165, %v3164
        %v3361 = vpack.c.b16 %v3167, %v3166
        %v3362 = vpack.c.b16 %v3169, %v3168
        %v3363 = vpack.c.b16 %v3171, %v3170
        %v3364 = vpack.c.b16 %v3173, %v3172
        %v3365 = vpack.c.b16 %v3175, %v3174
        %v3366 = vpack.c.b16 %v3177, %v3176
        %v3367 = vpack.c.b16 %v3179, %v3178
        %v3368 = vpack.c.b16 %v3181, %v3180
        %v3369 = vpack.c.b16 %v3183, %v3182
        %v3370 = vpack.c.b16 %v3185, %v3184
        %v3371 = vpack.c.b16 %v3187, %v3186
        %v3372 = vpack.c.b16 %v3189, %v3188
        %v3373 = vpack.c.b16 %v3191, %v3190
        %v3374 = vpack.c.b16 %v3193, %v3192
        %v3375 = vpack.c.b16 %v3195, %v3194
        %v3376 = vpack.c.b16 %v3197, %v3196
        %v3377 = vpack.c.b16 %v3199, %v3198
        %v3378 = vpack.c.b16 %v3201, %v3200
        %v3379 = vpack.c.b16 %v3203, %v3202
        %v3380 = vpack.c.b16 %v3205, %v3204
        %v3381 = vpack.c.b16 %v3207, %v3206
        %v3382 = vpack.c.b16 %v3209, %v3208
        %v3383 = vpack.c.b16 %v3211, %v3210
        %v3384 = vpack.c.b16 %v3213, %v3212
        %v3385 = vpack.c.b16 %v3215, %v3214
        %v3386 = vpack.c.b16 %v3217, %v3216
        %v3387 = vpack.c.b16 %v3219, %v3218
        %v3388 = vpack.c.b16 %v3221, %v3220
        %v3389 = vpack.c.b16 %v3223, %v3222
        %v3390 = vpack.c.b16 %v3225, %v3224
        %v3391 = vpack.c.b16 %v3227, %v3226
        %v3392 = vpack.c.b16 %v3229, %v3228
        %v3393 = vpack.c.b16 %v3231, %v3230
        %v3394 = vpack.c.b16 %v3233, %v3232
        %v3395 = vpack.c.b16 %v3235, %v3234
        %v3396 = vpack.c.b16 %v3237, %v3236
        %v3397 = vpack.c.b16 %v3239, %v3238
        %v3398 = vpack.c.b16 %v3241, %v3240
        %v3399 = vpack.c.b16 %v3243, %v3242
        %v3400 = vpack.c.b16 %v3245, %v3244
        %v3401 = vpack.c.b16 %v3247, %v3246
        %v3402 = vpack.c.b16 %v3249, %v3248
        %v3403 = vpack.c.b16 %v3251, %v3250
        %v3404 = vpack.c.b16 %v3253, %v3252
        %v3405 = vpack.c.b16 %v3255, %v3254
        %v3406 = vpack.c.b16 %v3257, %v3256
        %v3407 = vpack.c.b16 %v3259, %v3258
        %v3408 = vpack.c.b16 %v3261, %v3260
        %v3409 = vpack.c.b16 %v3263, %v3262
        %v3410 = vpack.c.b16 %v3265, %v3264
        %v3411 = vpack.c.b16 %v3267, %v3266
        %v3412 = vpack.c.b16 %v3269, %v3268
        %v3413 = vpack.c.b16 %v3271, %v3270
        %v3414 = vpack.c.b16 %v3273, %v3272
        %v3415 = vpack.c.b16 %v3275, %v3274
        %v3416 = vpack.c.b16 %v3277, %v3276
        %v3417 = vpack.c.b16 %v3279, %v3278
        %v3418 = vpack.c.b16 %v3281, %v3280
        %v3419 = vpack.c.b16 %v3283, %v3282
        %v3420 = vpack.c.b16 %v3285, %v3284
        %v3421 = vpack.c.b16 %v3287, %v3286
        %v3422 = vpack.c.b16 %v3289, %v3288
        %v3423 = vpack.c.b16 %v3291, %v3290
        %v3424 = vpack.c.b16 %v3293, %v3292
        %v3425 = vpack.c.b16 %v3295, %v3294
        %v3426 = vpack.c.b16 %v3297, %v3296
        %v3427 = vpack.c.b16 %v3299, %v3298
        %3556 = vmatprep.subr.bf16.mxu0 0
        %3557 = vmatpush1.bf16.msra.mxu0 %v3307
        %3558 = vmatprep.subr.bf16.mxu0 0
        %3559 = vmatpush1.bf16.msra.mxu0 %v3306
        %3560 = vmatprep.subr.bf16.mxu0 0
        %3561 = vmatpush1.bf16.msra.mxu0 %v3305
        %3562 = vmatprep.subr.bf16.mxu0 0
        %3563 = vmatpush1.bf16.msra.mxu0 %v3304
        %3564 = vmatprep.subr.bf16.mxu0 0
        %3565 = vmatpush1.bf16.msra.mxu0 %v3303
        %3566 = vmatprep.subr.bf16.mxu0 0
        %3567 = vmatpush1.bf16.msra.mxu0 %v3302
        %3568 = vmatprep.subr.bf16.mxu0 0
        %3569 = vmatpush1.bf16.msra.mxu0 %v3301
        %3570 = vmatprep.subr.bf16.mxu0 0
        %3571 = vmatpush1.bf16.msra.mxu0 %v3300
        %3572 = vmatprep.subr.bf16.mxu0 0
        %3573 = vmatpush2.bf16.msra.mxu0 %v3315
        %3574 = vmatprep.subr.bf16.mxu0 0
        %3575 = vmatpush2.bf16.msra.mxu0 %v3314
        %3576 = vmatprep.subr.bf16.mxu0 0
        %3577 = vmatpush2.bf16.msra.mxu0 %v3313
        %3578 = vmatprep.subr.bf16.mxu0 0
        %3579 = vmatpush2.bf16.msra.mxu0 %v3312
        %3580 = vmatprep.subr.bf16.mxu0 0
        %3581 = vmatpush2.bf16.msra.mxu0 %v3311
        %3582 = vmatprep.subr.bf16.mxu0 0
        %3583 = vmatpush2.bf16.msra.mxu0 %v3310
        %3584 = vmatprep.subr.bf16.mxu0 0
        %3585 = vmatpush2.bf16.msra.mxu0 %v3309
        %3586 = vmatprep.subr.bf16.mxu0 0
        %3587 = vmatpush2.bf16.msra.mxu0 %v3308
        %3588 = vmatprep.mubr.bf16.mxu0 %v2513
        %3589 = vmatmul.mubr.bf16.gmra.mxu0 %v2512
        %v3590 = vpop.f32.mrf.mxu0
        %v3591 = vadd.f32 %v2787, %v3590
        %v3592 = vpop.f32.mrf.mxu0
        %v3593 = vpop.f32.mrf.mxu0
        %v3594 = vadd.f32 %v2787, %v3593
        %v3595 = vpop.f32.mrf.mxu0
        %3596 = vdwg.mxu0
        %3597 = vmatprep.subr.bf16.mxu0 0
        %3598 = vmatpush1.bf16.msra.mxu0 %v3323
        %3599 = vmatprep.subr.bf16.mxu0 0
        %3600 = vmatpush1.bf16.msra.mxu0 %v3322
        %3601 = vmatprep.subr.bf16.mxu0 0
        %3602 = vmatpush1.bf16.msra.mxu0 %v3321
        %3603 = vmatprep.subr.bf16.mxu0 0
        %3604 = vmatpush1.bf16.msra.mxu0 %v3320
        %3605 = vmatprep.subr.bf16.mxu0 0
        %3606 = vmatpush1.bf16.msra.mxu0 %v3319
        %3607 = vmatprep.subr.bf16.mxu0 0
        %3608 = vmatpush1.bf16.msra.mxu0 %v3318
        %3609 = vmatprep.subr.bf16.mxu0 0
        %3610 = vmatpush1.bf16.msra.mxu0 %v3317
        %3611 = vmatprep.subr.bf16.mxu0 0
        %3612 = vmatpush1.bf16.msra.mxu0 %v3316
        %3613 = vmatprep.subr.bf16.mxu0 0
        %3614 = vmatpush2.bf16.msra.mxu0 %v3331
        %3615 = vmatprep.subr.bf16.mxu0 0
        %3616 = vmatpush2.bf16.msra.mxu0 %v3330
        %3617 = vmatprep.subr.bf16.mxu0 0
        %3618 = vmatpush2.bf16.msra.mxu0 %v3329
        %3619 = vmatprep.subr.bf16.mxu0 0
        %3620 = vmatpush2.bf16.msra.mxu0 %v3328
        %3621 = vmatprep.subr.bf16.mxu0 0
        %3622 = vmatpush2.bf16.msra.mxu0 %v3327
        %3623 = vmatprep.subr.bf16.mxu0 0
        %3624 = vmatpush2.bf16.msra.mxu0 %v3326
        %3625 = vmatprep.subr.bf16.mxu0 0
        %3626 = vmatpush2.bf16.msra.mxu0 %v3325
        %3627 = vmatprep.subr.bf16.mxu0 0
        %3628 = vmatpush2.bf16.msra.mxu0 %v3324
        %3629 = vmatprep.mubr.bf16.mxu0 %v2515
        %3630 = vmatmul.mubr.bf16.gmra.mxu0 %v2514
        %v3631 = vpop.f32.mrf.mxu0
        %v3632 = vadd.f32 %v3591, %v3631
        %v3633 = vpop.f32.mrf.mxu0
        %v3634 = vpop.f32.mrf.mxu0
        %v3635 = vadd.f32 %v3594, %v3634
        %v3636 = vpop.f32.mrf.mxu0
        %3637 = vdwg.mxu0
        %3638 = vmatprep.subr.bf16.mxu0 0
        %3639 = vmatpush1.bf16.msra.mxu0 %v3339
        %3640 = vmatprep.subr.bf16.mxu0 0
        %3641 = vmatpush1.bf16.msra.mxu0 %v3338
        %3642 = vmatprep.subr.bf16.mxu0 0
        %3643 = vmatpush1.bf16.msra.mxu0 %v3337
        %3644 = vmatprep.subr.bf16.mxu0 0
        %3645 = vmatpush1.bf16.msra.mxu0 %v3336
        %3646 = vmatprep.subr.bf16.mxu0 0
        %3647 = vmatpush1.bf16.msra.mxu0 %v3335
        %3648 = vmatprep.subr.bf16.mxu0 0
        %3649 = vmatpush1.bf16.msra.mxu0 %v3334
        %3650 = vmatprep.subr.bf16.mxu0 0
        %3651 = vmatpush1.bf16.msra.mxu0 %v3333
        %3652 = vmatprep.subr.bf16.mxu0 0
        %3653 = vmatpush1.bf16.msra.mxu0 %v3332
        %3654 = vmatprep.subr.bf16.mxu0 0
        %3655 = vmatpush2.bf16.msra.mxu0 %v3347
        %3656 = vmatprep.subr.bf16.mxu0 0
        %3657 = vmatpush2.bf16.msra.mxu0 %v3346
        %3658 = vmatprep.subr.bf16.mxu0 0
        %3659 = vmatpush2.bf16.msra.mxu0 %v3345
        %3660 = vmatprep.subr.bf16.mxu0 0
        %3661 = vmatpush2.bf16.msra.mxu0 %v3344
        %3662 = vmatprep.subr.bf16.mxu0 0
        %3663 = vmatpush2.bf16.msra.mxu0 %v3343
        %3664 = vmatprep.subr.bf16.mxu0 0
        %3665 = vmatpush2.bf16.msra.mxu0 %v3342
        %3666 = vmatprep.subr.bf16.mxu0 0
        %3667 = vmatpush2.bf16.msra.mxu0 %v3341
        %3668 = vmatprep.subr.bf16.mxu0 0
        %3669 = vmatpush2.bf16.msra.mxu0 %v3340
        %3670 = vmatprep.mubr.bf16.mxu0 %v2517
        %3671 = vmatmul.mubr.bf16.gmra.mxu0 %v2516
        %v3672 = vpop.f32.mrf.mxu0
        %v3673 = vadd.f32 %v3632, %v3672
        %v3674 = vpop.f32.mrf.mxu0
        %v3675 = vpop.f32.mrf.mxu0
        %v3676 = vadd.f32 %v3635, %v3675
        %v3677 = vpop.f32.mrf.mxu0
        %3678 = vdwg.mxu0
        %3679 = vmatprep.subr.bf16.mxu0 0
        %3680 = vmatpush1.bf16.msra.mxu0 %v3355
        %3681 = vmatprep.subr.bf16.mxu0 0
        %3682 = vmatpush1.bf16.msra.mxu0 %v3354
        %3683 = vmatprep.subr.bf16.mxu0 0
        %3684 = vmatpush1.bf16.msra.mxu0 %v3353
        %3685 = vmatprep.subr.bf16.mxu0 0
        %3686 = vmatpush1.bf16.msra.mxu0 %v3352
        %3687 = vmatprep.subr.bf16.mxu0 0
        %3688 = vmatpush1.bf16.msra.mxu0 %v3351
        %3689 = vmatprep.subr.bf16.mxu0 0
        %3690 = vmatpush1.bf16.msra.mxu0 %v3350
        %3691 = vmatprep.subr.bf16.mxu0 0
        %3692 = vmatpush1.bf16.msra.mxu0 %v3349
        %3693 = vmatprep.subr.bf16.mxu0 0
        %3694 = vmatpush1.bf16.msra.mxu0 %v3348
        %3695 = vmatprep.subr.bf16.mxu0 0
        %3696 = vmatpush2.bf16.msra.mxu0 %v3363
        %3697 = vmatprep.subr.bf16.mxu0 0
        %3698 = vmatpush2.bf16.msra.mxu0 %v3362
        %3699 = vmatprep.subr.bf16.mxu0 0
        %3700 = vmatpush2.bf16.msra.mxu0 %v3361
        %3701 = vmatprep.subr.bf16.mxu0 0
        %3702 = vmatpush2.bf16.msra.mxu0 %v3360
        %3703 = vmatprep.subr.bf16.mxu0 0
        %3704 = vmatpush2.bf16.msra.mxu0 %v3359
        %3705 = vmatprep.subr.bf16.mxu0 0
        %3706 = vmatpush2.bf16.msra.mxu0 %v3358
        %3707 = vmatprep.subr.bf16.mxu0 0
        %3708 = vmatpush2.bf16.msra.mxu0 %v3357
        %3709 = vmatprep.subr.bf16.mxu0 0
        %3710 = vmatpush2.bf16.msra.mxu0 %v3356
        %3711 = vmatprep.mubr.bf16.mxu0 %v2519
        %3712 = vmatmul.mubr.bf16.gmra.mxu0 %v2518
        %v3713 = vpop.f32.mrf.mxu0
        %v3714 = vadd.f32 %v3673, %v3713
        %v3715 = vpop.f32.mrf.mxu0
        %v3716 = vpop.f32.mrf.mxu0
        %v3717 = vadd.f32 %v3676, %v3716
        %v3718 = vpop.f32.mrf.mxu0
        %3719 = vdwg.mxu0
        %3720 = vmatprep.subr.bf16.mxu0 0
        %3721 = vmatpush1.bf16.msra.mxu0 %v3371
        %3722 = vmatprep.subr.bf16.mxu0 0
        %3723 = vmatpush1.bf16.msra.mxu0 %v3370
        %3724 = vmatprep.subr.bf16.mxu0 0
        %3725 = vmatpush1.bf16.msra.mxu0 %v3369
        %3726 = vmatprep.subr.bf16.mxu0 0
        %3727 = vmatpush1.bf16.msra.mxu0 %v3368
        %3728 = vmatprep.subr.bf16.mxu0 0
        %3729 = vmatpush1.bf16.msra.mxu0 %v3367
        %3730 = vmatprep.subr.bf16.mxu0 0
        %3731 = vmatpush1.bf16.msra.mxu0 %v3366
        %3732 = vmatprep.subr.bf16.mxu0 0
        %3733 = vmatpush1.bf16.msra.mxu0 %v3365
        %3734 = vmatprep.subr.bf16.mxu0 0
        %3735 = vmatpush1.bf16.msra.mxu0 %v3364
        %3736 = vmatprep.subr.bf16.mxu0 0
        %3737 = vmatpush2.bf16.msra.mxu0 %v3379
        %3738 = vmatprep.subr.bf16.mxu0 0
        %3739 = vmatpush2.bf16.msra.mxu0 %v3378
        %3740 = vmatprep.subr.bf16.mxu0 0
        %3741 = vmatpush2.bf16.msra.mxu0 %v3377
        %3742 = vmatprep.subr.bf16.mxu0 0
        %3743 = vmatpush2.bf16.msra.mxu0 %v3376
        %3744 = vmatprep.subr.bf16.mxu0 0
        %3745 = vmatpush2.bf16.msra.mxu0 %v3375
        %3746 = vmatprep.subr.bf16.mxu0 0
        %3747 = vmatpush2.bf16.msra.mxu0 %v3374
        %3748 = vmatprep.subr.bf16.mxu0 0
        %3749 = vmatpush2.bf16.msra.mxu0 %v3373
        %3750 = vmatprep.subr.bf16.mxu0 0
        %3751 = vmatpush2.bf16.msra.mxu0 %v3372
        %3752 = vmatprep.mubr.bf16.mxu0 %v2521
        %3753 = vmatmul.mubr.bf16.gmra.mxu0 %v2520
        %v3754 = vpop.f32.mrf.mxu0
        %v3755 = vadd.f32 %v3714, %v3754
        %v3756 = vpop.f32.mrf.mxu0
        %v3757 = vpop.f32.mrf.mxu0
        %v3758 = vadd.f32 %v3717, %v3757
        %v3759 = vpop.f32.mrf.mxu0
        %3760 = vdwg.mxu0
        %3761 = vmatprep.subr.bf16.mxu0 0
        %3762 = vmatpush1.bf16.msra.mxu0 %v3387
        %3763 = vmatprep.subr.bf16.mxu0 0
        %3764 = vmatpush1.bf16.msra.mxu0 %v3386
        %3765 = vmatprep.subr.bf16.mxu0 0
        %3766 = vmatpush1.bf16.msra.mxu0 %v3385
        %3767 = vmatprep.subr.bf16.mxu0 0
        %3768 = vmatpush1.bf16.msra.mxu0 %v3384
        %3769 = vmatprep.subr.bf16.mxu0 0
        %3770 = vmatpush1.bf16.msra.mxu0 %v3383
        %3771 = vmatprep.subr.bf16.mxu0 0
        %3772 = vmatpush1.bf16.msra.mxu0 %v3382
        %3773 = vmatprep.subr.bf16.mxu0 0
        %3774 = vmatpush1.bf16.msra.mxu0 %v3381
        %3775 = vmatprep.subr.bf16.mxu0 0
        %3776 = vmatpush1.bf16.msra.mxu0 %v3380
        %3777 = vmatprep.subr.bf16.mxu0 0
        %3778 = vmatpush2.bf16.msra.mxu0 %v3395
        %3779 = vmatprep.subr.bf16.mxu0 0
        %3780 = vmatpush2.bf16.msra.mxu0 %v3394
        %3781 = vmatprep.subr.bf16.mxu0 0
        %3782 = vmatpush2.bf16.msra.mxu0 %v3393
        %3783 = vmatprep.subr.bf16.mxu0 0
        %3784 = vmatpush2.bf16.msra.mxu0 %v3392
        %3785 = vmatprep.subr.bf16.mxu0 0
        %3786 = vmatpush2.bf16.msra.mxu0 %v3391
        %3787 = vmatprep.subr.bf16.mxu0 0
        %3788 = vmatpush2.bf16.msra.mxu0 %v3390
        %3789 = vmatprep.subr.bf16.mxu0 0
        %3790 = vmatpush2.bf16.msra.mxu0 %v3389
        %3791 = vmatprep.subr.bf16.mxu0 0
        %3792 = vmatpush2.bf16.msra.mxu0 %v3388
        %3793 = vmatprep.mubr.bf16.mxu0 %v2523
        %3794 = vmatmul.mubr.bf16.gmra.mxu0 %v2522
        %v3795 = vpop.f32.mrf.mxu0
        %v3796 = vadd.f32 %v3755, %v3795
        %v3797 = vpop.f32.mrf.mxu0
        %v3798 = vpop.f32.mrf.mxu0
        %v3799 = vadd.f32 %v3758, %v3798
        %v3800 = vpop.f32.mrf.mxu0
        %3801 = vdwg.mxu0
        %3802 = vmatprep.subr.bf16.mxu0 0
        %3803 = vmatpush1.bf16.msra.mxu0 %v3403
        %3804 = vmatprep.subr.bf16.mxu0 0
        %3805 = vmatpush1.bf16.msra.mxu0 %v3402
        %3806 = vmatprep.subr.bf16.mxu0 0
        %3807 = vmatpush1.bf16.msra.mxu0 %v3401
        %3808 = vmatprep.subr.bf16.mxu0 0
        %3809 = vmatpush1.bf16.msra.mxu0 %v3400
        %3810 = vmatprep.subr.bf16.mxu0 0
        %3811 = vmatpush1.bf16.msra.mxu0 %v3399
        %3812 = vmatprep.subr.bf16.mxu0 0
        %3813 = vmatpush1.bf16.msra.mxu0 %v3398
        %3814 = vmatprep.subr.bf16.mxu0 0
        %3815 = vmatpush1.bf16.msra.mxu0 %v3397
        %3816 = vmatprep.subr.bf16.mxu0 0
        %3817 = vmatpush1.bf16.msra.mxu0 %v3396
        %3818 = vmatprep.subr.bf16.mxu0 0
        %3819 = vmatpush2.bf16.msra.mxu0 %v3411
        %3820 = vmatprep.subr.bf16.mxu0 0
        %3821 = vmatpush2.bf16.msra.mxu0 %v3410
        %3822 = vmatprep.subr.bf16.mxu0 0
        %3823 = vmatpush2.bf16.msra.mxu0 %v3409
        %3824 = vmatprep.subr.bf16.mxu0 0
        %3825 = vmatpush2.bf16.msra.mxu0 %v3408
        %3826 = vmatprep.subr.bf16.mxu0 0
        %3827 = vmatpush2.bf16.msra.mxu0 %v3407
        %3828 = vmatprep.subr.bf16.mxu0 0
        %3829 = vmatpush2.bf16.msra.mxu0 %v3406
        %3830 = vmatprep.subr.bf16.mxu0 0
        %3831 = vmatpush2.bf16.msra.mxu0 %v3405
        %3832 = vmatprep.subr.bf16.mxu0 0
        %3833 = vmatpush2.bf16.msra.mxu0 %v3404
        %3834 = vmatprep.mubr.bf16.mxu0 %v2525
        %3835 = vmatmul.mubr.bf16.gmra.mxu0 %v2524
        %v3836 = vpop.f32.mrf.mxu0
        %v3837 = vadd.f32 %v3796, %v3836
        %v3838 = vpop.f32.mrf.mxu0
        %v3839 = vpop.f32.mrf.mxu0
        %v3840 = vadd.f32 %v3799, %v3839
        %v3841 = vpop.f32.mrf.mxu0
        %3842 = vdwg.mxu0
        %3843 = vmatprep.subr.bf16.mxu0 0
        %3844 = vmatpush1.bf16.msra.mxu0 %v3419
        %3845 = vmatprep.subr.bf16.mxu0 0
        %3846 = vmatpush1.bf16.msra.mxu0 %v3418
        %3847 = vmatprep.subr.bf16.mxu0 0
        %3848 = vmatpush1.bf16.msra.mxu0 %v3417
        %3849 = vmatprep.subr.bf16.mxu0 0
        %3850 = vmatpush1.bf16.msra.mxu0 %v3416
        %3851 = vmatprep.subr.bf16.mxu0 0
        %3852 = vmatpush1.bf16.msra.mxu0 %v3415
        %3853 = vmatprep.subr.bf16.mxu0 0
        %3854 = vmatpush1.bf16.msra.mxu0 %v3414
        %3855 = vmatprep.subr.bf16.mxu0 0
        %3856 = vmatpush1.bf16.msra.mxu0 %v3413
        %3857 = vmatprep.subr.bf16.mxu0 0
        %3858 = vmatpush1.bf16.msra.mxu0 %v3412
        %3859 = vmatprep.subr.bf16.mxu0 0
        %3860 = vmatpush2.bf16.msra.mxu0 %v3427
        %3861 = vmatprep.subr.bf16.mxu0 0
        %3862 = vmatpush2.bf16.msra.mxu0 %v3426
        %3863 = vmatprep.subr.bf16.mxu0 0
        %3864 = vmatpush2.bf16.msra.mxu0 %v3425
        %3865 = vmatprep.subr.bf16.mxu0 0
        %3866 = vmatpush2.bf16.msra.mxu0 %v3424
        %3867 = vmatprep.subr.bf16.mxu0 0
        %3868 = vmatpush2.bf16.msra.mxu0 %v3423
        %3869 = vmatprep.subr.bf16.mxu0 0
        %3870 = vmatpush2.bf16.msra.mxu0 %v3422
        %3871 = vmatprep.subr.bf16.mxu0 0
        %3872 = vmatpush2.bf16.msra.mxu0 %v3421
        %3873 = vmatprep.subr.bf16.mxu0 0
        %3874 = vmatpush2.bf16.msra.mxu0 %v3420
        %3875 = vmatprep.mubr.bf16.mxu0 %v2527
        %3876 = vmatmul.mubr.bf16.gmra.mxu0 %v2526
        %v3877 = vpop.f32.mrf.mxu0
        %v3878 = vadd.f32 %v3837, %v3877
        %v3879 = vpop.f32.mrf.mxu0
        %v3880 = vpop.f32.mrf.mxu0
        %v3881 = vadd.f32 %v3840, %v3880
        %v3882 = vpop.f32.mrf.mxu0
        %3883 = vdwg.mxu0
        %v3884 = vadd.f32 %v1854, %v3878
        %v3885 = vadd.f32 %v1855, %v3881
        %v3886 = vsel %vm586, %v3884, 0.0
        %3887 = vadd.xlane.f32.xlu0 %v3886
        %v3888 = vpop.xlane.xlu0 %3887
        %v3889 = vsel %vm586, %v3885, 0.0
        %3890 = vadd.xlane.f32.xlu0 %v3889
        %v3891 = vpop.xlane.xlu0 %3890
        %v3892 = vmul.f32 %v3888, %v1823
        %v3893 = vmul.f32 %v3891, %v1823
        %v3894 = vsub.f32 %v3884, %v3892
        %v3895 = vsub.f32 %v3885, %v3893
        %v3896 = vmul.f32 %v3894, %v3894
        %v3897 = vmul.f32 %v3895, %v3895
        %v3898 = vsel %vm586, %v3896, 0.0
        %3899 = vadd.xlane.f32.xlu0 %v3898
        %v3900 = vpop.xlane.xlu0 %3899
        %v3901 = vsel %vm586, %v3897, 0.0
        %3902 = vadd.xlane.f32.xlu0 %v3901
        %v3903 = vpop.xlane.xlu0 %3902
        %v3904 = vmul.f32 %v3900, %v1823
        %v3905 = vmul.f32 %v3903, %v1823
        %v3906 = vadd.f32 %v3904, 1e-05
        %v3907 = vadd.f32 %v3905, 1e-05
        %v3908 = vrsqrt.pop %v3906
        %v3909 = vrsqrt.pop %v3907
        %v3910 = vmul.f32 %v3894, %v3908
        %v3911 = vmul.f32 %v3895, %v3909
        %v3912 = vlaneseq
        %v3913 = vshrl.u32 %v3912, 7
        %v3914 = vsub.s32 5, %v3913
        %v3915 = vrot.slane %v577, %v3914
        %v3916 = vmul.f32 %v3910, %v3915
        %v3917 = vmul.f32 %v3911, %v3915
        %v3918 = vlaneseq
        %v3919 = vshrl.u32 %v3918, 7
        %v3920 = vsub.s32 6, %v3919
        %v3921 = vrot.slane %v577, %v3920
        %v3922 = vadd.f32 %v3916, %v3921
        %v3923 = vadd.f32 %v3917, %v3921
        %3924 = vst.msk [vmem:[#allocation2] sm:$0xff] %vm586, %v3922
        %3925 = vst.msk [vmem:[#allocation2 + $0x8] sm:$0xff] %vm586, %v3923
        %p3926 = scmp.eq.s32.totalorder %s23, 1
        // Predicated region
        $region69: #{positional_transformer_forward.1} parent=63 // pred_check
          %p3927 = pneg %p3926
        $region70: #{positional_transformer_forward.1} parent=63 // pred_check_branch
          %3929 = sbr.rel (%p3927) target = $region72
        $region71: #{positional_transformer_forward.1} parent=63 // pred_region
          %v3930 = vld [vmem:[%s4] sm:$0xff]
          %v3931 = vld [vmem:[%s4 + $0x8] sm:$0xff]
          %v3932 = vld [vmem:[%s4 + $0x10] sm:$0xff]
          %v3933 = vld [vmem:[%s4 + $0x18] sm:$0xff]
          %v3934 = vld [vmem:[%s4 + $0x20] sm:$0x1]
          %v3935 = vlaneseq
          %v3936 = vshrl.u32 %v3935, 7
          %v3937 = vsub.s32 0, %v3936
          %v3938 = vrot.slane %v3934, %v3937
          %v3940 = vsel %vm586, %v3922, 0
          %3942 = vmatprep.subr.mxu0 0.0
          %3943 = vmatpush1.msra.mxu0 0.0
          %3944 = vmatprep.subr.mxu0 0.0
          %3945 = vmatpush1.msra.mxu0 0.0
          %3946 = vmatprep.subr.mxu0 0.0
          %3947 = vmatpush1.msra.mxu0 0.0
          %3948 = vmatprep.subr.mxu0 0.0
          %3949 = vmatpush1.msra.mxu0 0.0
          %3950 = vmatprep.subr.mxu0 0.0
          %3951 = vmatpush1.msra.mxu0 0.0
          %3952 = vmatprep.subr.mxu0 0.0
          %3953 = vmatpush1.msra.mxu0 0.0
          %3954 = vmatprep.subr.mxu0 0.0
          %3955 = vmatpush1.msra.mxu0 0.0
          %3956 = vmatprep.subr.mxu0 0.0
          %3957 = vmatpush1.msra.mxu0 0.0
          %3958 = vmatprep.subr.mxu0 0.0
          %3959 = vmatpush1.msra.mxu0 0.0
          %3960 = vmatprep.subr.mxu0 0.0
          %3961 = vmatpush1.msra.mxu0 0.0
          %3962 = vmatprep.subr.mxu0 0.0
          %3963 = vmatpush1.msra.mxu0 0.0
          %3964 = vmatprep.subr.mxu0 0.0
          %3965 = vmatpush1.msra.mxu0 0.0
          %3966 = vmatprep.subr.mxu0 0.0
          %3967 = vmatpush1.msra.mxu0 %v3933
          %3968 = vmatprep.subr.mxu0 0.0
          %3969 = vmatpush1.msra.mxu0 %v3932
          %3970 = vmatprep.subr.mxu0 0.0
          %3971 = vmatpush1.msra.mxu0 %v3931
          %3972 = vmatprep.subr.mxu0 0.0
          %3973 = vmatpush1.msra.mxu0 %v3930
          %3974 = vmatprep.subr.mxu0 0.0
          %3975 = vmatpush2.msra.mxu0 0.0
          %3976 = vmatprep.subr.mxu0 0.0
          %3977 = vmatpush2.msra.mxu0 0.0
          %3978 = vmatprep.subr.mxu0 0.0
          %3979 = vmatpush2.msra.mxu0 0.0
          %3980 = vmatprep.subr.mxu0 0.0
          %3981 = vmatpush2.msra.mxu0 0.0
          %3982 = vmatprep.subr.mxu0 0.0
          %3983 = vmatpush2.msra.mxu0 0.0
          %3984 = vmatprep.subr.mxu0 0.0
          %3985 = vmatpush2.msra.mxu0 0.0
          %3986 = vmatprep.subr.mxu0 0.0
          %3987 = vmatpush2.msra.mxu0 0.0
          %3988 = vmatprep.subr.mxu0 0.0
          %3989 = vmatpush2.msra.mxu0 0.0
          %3990 = vmatprep.subr.mxu0 0.0
          %3991 = vmatpush2.msra.mxu0 0.0
          %3992 = vmatprep.subr.mxu0 0.0
          %3993 = vmatpush2.msra.mxu0 0.0
          %3994 = vmatprep.subr.mxu0 0.0
          %3995 = vmatpush2.msra.mxu0 0.0
          %3996 = vmatprep.subr.mxu0 0.0
          %3997 = vmatpush2.msra.mxu0 0.0
          %3998 = vmatprep.subr.mxu0 0.0
          %3999 = vmatpush2.msra.mxu0 0.0
          %4000 = vmatprep.subr.mxu0 0.0
          %4001 = vmatpush2.msra.mxu0 0.0
          %4002 = vmatprep.subr.mxu0 0.0
          %4003 = vmatpush2.msra.mxu0 0.0
          %4004 = vmatprep.subr.mxu0 0.0
          %4005 = vmatpush2.msra.mxu0 0.0
          %4006 = vmatprep.mubr.f32.mxu0 0.0
          %4007 = vmatmul.mubr.f32.gmra.mxu0 %v3940
          %v4008 = vpop.f32.mrf.mxu0
          %v4009 = vadd.f32 %v3938, %v4008
          %v4010 = vpop.f32.mrf.mxu0
          %4011 = vdwg.mxu0
          %vm4012 = vcmask 33792
          %4013 = vst.msk [vmem:[#allocation3] sm:$0x3] %vm4012, %v4009
        $region72: #{positional_transformer_forward.1} parent=63 // pred_fallthru
          _
        // Predicated region
        $region73: #{positional_transformer_forward.1} parent=63 // pred_check
          %p4014 = pneg %p297
        $region74: #{positional_transformer_forward.1} parent=63 // pred_check_branch
          %4016 = sbr.rel (%p4014) target = $region76
        $region75: #{positional_transformer_forward.1} parent=63 // pred_region
          %s4018 = ssub.s32 32, 32
          %4019 = vsyncadd [#allocation4], %s4018
          %s4021 = sshll.u32 [#allocation3], 4
          %s4022 = int_to_ptr.vmem [resolvable:$true] %s4021
          %4024 = dma.vmem_to_hbm [thread:$0]  %s4022, 32, %s11, [#allocation4]
        $region76: #{positional_transformer_forward.1} parent=63 // pred_fallthru
          _
        // Predicated region
        $region77: #{positional_transformer_forward.1} parent=63 // pred_check
          %p4025 = pneg %p297
        $region78: #{positional_transformer_forward.1} parent=63 // pred_check_branch
          %4027 = sbr.rel (%p4025) target = $region80
        $region79: #{positional_transformer_forward.1} parent=63 // pred_region
          %4028 = dma.done [#allocation4], 32
        $region80: #{positional_transformer_forward.1} parent=63 // pred_fallthru
          _
      $region64: #{positional_transformer_forward.1} parent=5 // pred_fallthru
        _
      %p4029 = scmp.le.s32.totalorder 2, %s18
      // Predicated region
      $region81: #{positional_transformer_forward.1} parent=5 // pred_check
        %p4030 = pneg %p4029
      $region82: #{positional_transformer_forward.1} parent=5 // pred_check_branch
        %4032 = sbr.rel (%p4030) target = $region84
      $region83: #{positional_transformer_forward.1} parent=5 // pred_region
        %s4033 = ssub.s32 %s18, 2
      $region84: #{positional_transformer_forward.1} parent=5 // pred_fallthru
        _
    $region6: #{positional_transformer_forward.1} parent=1 // loop_footer
      %s22 = sadd.s32 1, %s18
    $region7: #{positional_transformer_forward.1} parent=1 // loop_footer_branch
      %17 = sbr.rel target = $region3
    $region8: #{positional_transformer_forward.1} parent=1 // loop_exit
      _
    %4034 = vsyncpa [#allocation4], 1
    %s4035 = scalar_lea.sflag [#allocation4], 1
    %4036 = vsyncpa %s4035, 1

</llo_original>
